<compile_context>
chip_gen: v7x
topology: tpu7x:2x2x1
jax: 0.10.0
libtpu: 0.0.40
codegen_flags: <defaults>
</compile_context>

<pallas_src>
import numpy as np
import jax
import jax.numpy as jnp
from jax.experimental import pallas as pl
from jax.experimental.pallas import tpu as pltpu


# ----------------------------------------------------------------------------
# Fused kernel: one (subgraph b, layer l) step of the EGAT encoder; MF decode
# fused into the last layer step.
# ----------------------------------------------------------------------------
def _make_kernel(HF, multiply_by):
    f32 = jnp.float32
    bf16 = jnp.bfloat16

    def kernel(x_ref, w_ref, eemb_ref, aeb_ref, s_ref, d_ref, dt_ref,
               u_ref, v_ref, o_ref, h_ref):
        l = pl.program_id(1)

        @pl.when(l == 0)
        def _():
            h_ref[...] = x_ref[...]          # (Nb, HF) padded input features

        h = h_ref[...]                       # (Nb, HF) f32 node state
        W = w_ref[0]                         # (HF, 3HF) bf16: [W | W.diag(a_src).B | W.diag(a_dst).B]
        hl = jnp.dot(h.astype(bf16), W, preferred_element_type=f32)      # (Nb, 3HF)
        hl_b = hl.astype(bf16)

        S = s_ref[0]                         # (Eb, Nb) bf16 edge -> source one-hot
        Dm = d_ref[0]                        # (Eb, Nb) bf16 edge -> destination one-hot
        DT = dt_ref[0]                       # (Nb, Eb) bf16 (host-precomputed D^T)

        # node -> edge gathers; each RHS is a 64-lane aligned slice of hl_b
        h_src = jnp.dot(S, hl_b[:, :HF], preferred_element_type=f32)          # (Eb, HF)
        slg = jnp.dot(S, hl_b[:, HF:2 * HF], preferred_element_type=f32)      # (Eb, HF)
        dlg = jnp.dot(Dm, hl_b[:, 2 * HF:], preferred_element_type=f32)       # (Eb, HF)

        # per-head attention logits, already replicated over each head's channels
        raw = slg + dlg + aeb_ref[0]                                           # (Eb, HF)
        lg = jnp.where(raw > 0, raw, 0.2 * raw)                                # LeakyReLU(0.2)

        # per-destination softmax (per-subgraph max shift; constant cancels)
        c = jnp.max(lg, axis=0, keepdims=True)                                 # (1, HF)
        p = jnp.exp(lg - c)                                                    # (Eb, HF)
        denom = jnp.dot(DT, p.astype(bf16), preferred_element_type=f32)        # (Nb, HF)
        inv = pl.reciprocal(denom + 1e-12, approx=True)                        # (Nb, HF)
        inv_e = jnp.dot(Dm, inv.astype(bf16), preferred_element_type=f32)      # (Eb, HF)
        alpha = p * inv_e                                                      # (Eb, HF)

        msg = alpha * (h_src + eemb_ref[0])                                    # (Eb, HF)
        agg = jnp.dot(DT, msg.astype(bf16), preferred_element_type=f32)        # (Nb, HF)
        h_new = jnp.where(agg > 0, agg, jnp.exp(agg) - 1.0)                    # ELU
        h_ref[...] = h_new

        # fused MF decoder on the last layer: select target user/item rows
        @pl.when(l == pl.num_programs(1) - 1)
        def _():
            hb = h_new.astype(bf16)
            u = jnp.dot(u_ref[0], hb, preferred_element_type=f32)              # (1, HF)
            v = jnp.dot(v_ref[0], hb, preferred_element_type=f32)              # (1, HF)
            pred = jnp.sum(u * v, axis=-1, keepdims=True) * multiply_by        # (1, 1)
            o_ref[...] = jnp.broadcast_to(pred.reshape(1, 1, 1),
                                          o_ref.shape).astype(o_ref.dtype)

    return kernel


def gatirec_forward(x_pad, W_all, e_emb, aeB, S_blk, D_blk, DT_blk,
                    U_sel, V_sel, *, layers, HF, multiply_by=1.0):
    B, Eb, Nb = S_blk.shape
    kernel = _make_kernel(HF, multiply_by)

    grid_spec = pltpu.PrefetchScalarGridSpec(
        num_scalar_prefetch=0,
        grid=(B, layers),                                        # b parallel, l arbitrary
        in_specs=[
            pl.BlockSpec((Nb, HF), lambda b, l: (b, 0)),             # x (layer-0 input)
            pl.BlockSpec((1, HF, 3 * HF), lambda b, l: (l, 0, 0)),   # fused weights
            pl.BlockSpec((1, Eb, HF), lambda b, l: (l, b, 0)),       # e_emb (streamed)
            pl.BlockSpec((1, Eb, HF), lambda b, l: (l, b, 0)),       # (a_edge*e)@Bmat
            pl.BlockSpec((1, Eb, Nb), lambda b, l: (b, 0, 0)),       # S  (edge->src)
            pl.BlockSpec((1, Eb, Nb), lambda b, l: (b, 0, 0)),       # D  (edge->dst)
            pl.BlockSpec((1, Nb, Eb), lambda b, l: (b, 0, 0)),       # D^T
            pl.BlockSpec((1, 1, Nb), lambda b, l: (b, 0, 0)),        # target user selector
            pl.BlockSpec((1, 1, Nb), lambda b, l: (b, 0, 0)),        # target item selector
        ],
        out_specs=pl.BlockSpec((1, 1, 128), lambda b, l: (b, 0, 0)),
        scratch_shapes=[pltpu.VMEM((Nb, HF), jnp.float32)],          # carried node state h
    )
    out = pl.pallas_call(
        kernel,
        out_shape=jax.ShapeDtypeStruct((B, 1, 128), jnp.float32),
        grid_spec=grid_spec,
        compiler_params=pltpu.CompilerParams(
            dimension_semantics=("parallel", "arbitrary"),
            vmem_limit_bytes=32 * 1024 * 1024),
    )(x_pad, W_all, e_emb, aeB, S_blk, D_blk, DT_blk, U_sel, V_sel)
    return out[:, 0, 0]                                              # (B,) predictions


if __name__ == "__main__":
    # ---------------- synthetic bipartite graph (host-side glue) -------------
    B = 4                              # number of (target user, target item) subgraphs
    users_per_g, items_per_g = 16, 16
    Nb = users_per_g + items_per_g     # 32 nodes / subgraph
    N = B * Nb                         # 128 nodes
    input_channels = 4                 # labels: 0=target user, 1=target item,
                                       #         2=context user, 3=context item
    heads, out_ch, layers, edge_classes = 2, 32, 4, 5
    HF = heads * out_ch                # 64
    Eb = 2 * users_per_g * items_per_g # 512 edges / subgraph
    E = B * Eb                         # 2048 edges
    multiply_by = 1.0

    labels_local = np.array([0] + [2] * (users_per_g - 1)
                            + [1] + [3] * (items_per_g - 1), dtype=np.int32)
    labels = np.tile(labels_local, B)
    x_nodes = np.eye(input_channels, dtype=np.float32)[labels]              # (N, 4)
    x_pad_np = np.zeros((N, HF), np.float32)
    x_pad_np[:, :input_channels] = x_nodes                                  # zero-pad to HF
    x_pad = jnp.asarray(x_pad_np)

    # identical local edge structure per subgraph: complete bipartite, both directions
    src_local, dst_local = [], []
    for u in range(users_per_g):
        for v in range(items_per_g):
            un, vn = u, users_per_g + v
            src_local += [un, vn]
            dst_local += [vn, un]
    src_local = np.array(src_local, np.int32)
    dst_local = np.array(dst_local, np.int32)

    eyeNb = np.eye(Nb, dtype=np.float32)
    S_loc = eyeNb[src_local]                                                # (Eb, Nb)
    D_loc = eyeNb[dst_local]                                                # (Eb, Nb)
    S_blk = jnp.asarray(np.broadcast_to(S_loc, (B, Eb, Nb)), jnp.bfloat16)
    D_blk = jnp.asarray(np.broadcast_to(D_loc, (B, Eb, Nb)), jnp.bfloat16)
    DT_blk = jnp.asarray(np.broadcast_to(D_loc.T, (B, Nb, Eb)), jnp.bfloat16)

    # target user / item row selectors (x[:,0]==1 -> local row 0, x[:,1]==1 -> row 16)
    U_np = np.zeros((B, 1, Nb), np.float32); U_np[:, 0, 0] = 1.0
    V_np = np.zeros((B, 1, Nb), np.float32); V_np[:, 0, users_per_g] = 1.0
    U_sel = jnp.asarray(U_np, jnp.bfloat16)
    V_sel = jnp.asarray(V_np, jnp.bfloat16)

    # ---------------- deterministic parameters / edge types ------------------
    key = jax.random.PRNGKey(0)
    keys = iter(jax.random.split(key, 64))
    edge_type = jax.random.randint(next(keys), (E,), 0, edge_classes)
    e_onehot = jax.nn.one_hot(edge_type, edge_classes, dtype=jnp.float32)   # (E, 5)

    def xavier(k, shape):
        fan_in, fan_out = shape
        std = (2.0 / (fan_in + fan_out)) ** 0.5
        return std * jax.random.normal(k, shape, jnp.float32)

    # 0/1 per-head block-sum matrix Bmat = head_sel @ head_sel^T  (HF, HF)
    ch = np.arange(HF)
    Bmat = jnp.asarray((ch[:, None] // out_ch == ch[None, :] // out_ch)
                       .astype(np.float32))

    in_dims = [input_channels] + [HF] * (layers - 1)
    W_all_l, eemb_l, aeb_l = [], [], []
    for l in range(layers):
        W = xavier(next(keys), (in_dims[l], HF))
        if in_dims[l] < HF:        # zero-pad layer-0 weight -> uniform (HF, HF)
            W = jnp.concatenate([W, jnp.zeros((HF - in_dims[l], HF), jnp.float32)], 0)
        a_src = 0.1 * jax.random.normal(next(keys), (HF,), jnp.float32)
        a_dst = 0.1 * jax.random.normal(next(keys), (HF,), jnp.float32)
        a_edge = 0.1 * jax.random.normal(next(keys), (HF,), jnp.float32)
        e_tab = jax.random.normal(next(keys), (edge_classes, HF), jnp.float32)

        # fold per-channel attention scalings + per-head channel sums into the weights
        W_all_l.append(jnp.concatenate(
            [W, W @ (a_src[:, None] * Bmat), W @ (a_dst[:, None] * Bmat)], axis=1))
        e_emb_layer = e_onehot @ e_tab                                       # (E, HF)
        eemb_l.append(e_emb_layer)
        aeb_l.append((a_edge[None, :] * e_emb_layer) @ Bmat)                 # (E, HF)

    W_all = jnp.stack(W_all_l).astype(jnp.bfloat16)     # (L, HF, 3HF)
    e_emb = jnp.stack(eemb_l).astype(jnp.bfloat16)      # (L, E, HF)  bf16 HBM traffic
    aeB = jnp.stack(aeb_l).astype(jnp.bfloat16)         # (L, E, HF)

    # ---------------- run fused encoder + MF decoder (one Pallas call) -------
    pred = gatirec_forward(x_pad, W_all, e_emb, aeB, S_blk, D_blk, DT_blk,
                           U_sel, V_sel, layers=layers, HF=HF,
                           multiply_by=multiply_by)                           # (B,)
    pred = jax.block_until_ready(pred)
    assert pred.shape == (B,)
    assert bool(jnp.all(jnp.isfinite(pred)))
    print("KERNEL_OK")
</pallas_src>

<mosaic_0001>
module attributes {stable_mosaic.version = 11 : i64} {
  func.func @kernel(%arg0: i32, %arg1: i32, %arg2: memref<32x64xf32, #tpu.memory_space<vmem>>, %arg3: memref<1x64x192xbf16, #tpu.memory_space<vmem>>, %arg4: memref<1x512x64xbf16, #tpu.memory_space<vmem>>, %arg5: memref<1x512x64xbf16, #tpu.memory_space<vmem>>, %arg6: memref<1x512x32xbf16, #tpu.memory_space<vmem>>, %arg7: memref<1x512x32xbf16, #tpu.memory_space<vmem>>, %arg8: memref<1x32x512xbf16, #tpu.memory_space<vmem>>, %arg9: memref<1x1x32xbf16, #tpu.memory_space<vmem>>, %arg10: memref<1x1x32xbf16, #tpu.memory_space<vmem>>, %arg11: memref<1x1x128xf32, #tpu.memory_space<vmem>>, %arg12: memref<32x64xf32, #tpu.memory_space<vmem>>) attributes {dimension_semantics = [#tpu.dimension_semantics<parallel>, #tpu.dimension_semantics<arbitrary>], iteration_bounds = array<i64: 4, 4>, scalar_prefetch = 0 : i64, scratch_operands = 1 : i64, tpu.core_type = #tpu.core_type<tc>, window_params = [{transform_indices = @transform_0, window_bounds = array<i64: 32, 64>}, {transform_indices = @transform_1, window_bounds = array<i64: 1, 64, 192>}, {transform_indices = @transform_2, window_bounds = array<i64: 1, 512, 64>}, {transform_indices = @transform_3, window_bounds = array<i64: 1, 512, 64>}, {transform_indices = @transform_4, window_bounds = array<i64: 1, 512, 32>}, {transform_indices = @transform_5, window_bounds = array<i64: 1, 512, 32>}, {transform_indices = @transform_6, window_bounds = array<i64: 1, 32, 512>}, {transform_indices = @transform_7, window_bounds = array<i64: 1, 1, 32>}, {transform_indices = @transform_8, window_bounds = array<i64: 1, 1, 32>}, {transform_indices = @transform_9, window_bounds = array<i64: 1, 1, 128>}]} {
    %c0_i32 = arith.constant 0 : i32
    %0 = arith.cmpi eq, %arg1, %c0_i32 : i32
    %1 = arith.extui %0 : i1 to i32
    %c0_i32_0 = arith.constant 0 : i32
    %2 = arith.cmpi ne, %1, %c0_i32_0 : i32
    scf.if %2 {
      %c0_35 = arith.constant 0 : index
      %c0_36 = arith.constant 0 : index
      %61 = vector.load %arg2[%c0_35, %c0_36] : memref<32x64xf32, #tpu.memory_space<vmem>>, vector<32x64xf32>
      %c0_37 = arith.constant 0 : index
      %c0_38 = arith.constant 0 : index
      %62 = vector.load %arg12[%c0_37, %c0_38] : memref<32x64xf32, #tpu.memory_space<vmem>>, vector<32x64xf32>
      tpu.vector_store %arg12[%c0_37, %c0_38], %61 {strides = array<i32>} : memref<32x64xf32, #tpu.memory_space<vmem>>, vector<32x64xf32>,
    } else {
    }
    %c0 = arith.constant 0 : index
    %c0_1 = arith.constant 0 : index
    %3 = vector.load %arg12[%c0, %c0_1] : memref<32x64xf32, #tpu.memory_space<vmem>>, vector<32x64xf32>
    %c0_2 = arith.constant 0 : index
    %c0_3 = arith.constant 0 : index
    %c0_4 = arith.constant 0 : index
    %4 = vector.load %arg3[%c0_2, %c0_3, %c0_4] : memref<1x64x192xbf16, #tpu.memory_space<vmem>>, vector<1x64x192xbf16>
    %5 = vector.shape_cast %4 : vector<1x64x192xbf16> to vector<64x192xbf16>
    %6 = arith.truncf %3 : vector<32x64xf32> to vector<32x64xbf16>
    %cst = arith.constant dense<0.000000e+00> : vector<32x192xf32>
    %7 = tpu.matmul %6, %5, %cst {dimension_numbers = #tpu.dot_dimension_numbers<[1], [0], [0], [1], [0, 0, 1, 1], [], []>} : vector<32x64xbf16>, vector<64x192xbf16>, vector<32x192xf32> -> vector<32x192xf32>
    %8 = arith.truncf %7 : vector<32x192xf32> to vector<32x192xbf16>
    %c0_5 = arith.constant 0 : index
    %c0_6 = arith.constant 0 : index
    %c0_7 = arith.constant 0 : index
    %9 = vector.load %arg6[%c0_5, %c0_6, %c0_7] : memref<1x512x32xbf16, #tpu.memory_space<vmem>>, vector<1x512x32xbf16>
    %10 = vector.shape_cast %9 : vector<1x512x32xbf16> to vector<512x32xbf16>
    %c0_8 = arith.constant 0 : index
    %c0_9 = arith.constant 0 : index
    %c0_10 = arith.constant 0 : index
    %11 = vector.load %arg7[%c0_8, %c0_9, %c0_10] : memref<1x512x32xbf16, #tpu.memory_space<vmem>>, vector<1x512x32xbf16>
    %12 = vector.shape_cast %11 : vector<1x512x32xbf16> to vector<512x32xbf16>
    %c0_11 = arith.constant 0 : index
    %c0_12 = arith.constant 0 : index
    %c0_13 = arith.constant 0 : index
    %13 = vector.load %arg8[%c0_11, %c0_12, %c0_13] : memref<1x32x512xbf16, #tpu.memory_space<vmem>>, vector<1x32x512xbf16>
    %14 = vector.shape_cast %13 : vector<1x32x512xbf16> to vector<32x512xbf16>
    %15 = vector.extract_strided_slice %8 {offsets = [0, 0], sizes = [32, 64], strides = [1, 1]} : vector<32x192xbf16> to vector<32x64xbf16>
    %cst_14 = arith.constant dense<0.000000e+00> : vector<512x64xf32>
    %16 = tpu.matmul %10, %15, %cst_14 {dimension_numbers = #tpu.dot_dimension_numbers<[1], [0], [0], [1], [0, 0, 1, 1], [], []>} : vector<512x32xbf16>, vector<32x64xbf16>, vector<512x64xf32> -> vector<512x64xf32>
    %17 = vector.extract_strided_slice %8 {offsets = [0, 64], sizes = [32, 64], strides = [1, 1]} : vector<32x192xbf16> to vector<32x64xbf16>
    %cst_15 = arith.constant dense<0.000000e+00> : vector<512x64xf32>
    %18 = tpu.matmul %10, %17, %cst_15 {dimension_numbers = #tpu.dot_dimension_numbers<[1], [0], [0], [1], [0, 0, 1, 1], [], []>} : vector<512x32xbf16>, vector<32x64xbf16>, vector<512x64xf32> -> vector<512x64xf32>
    %19 = vector.extract_strided_slice %8 {offsets = [0, 128], sizes = [32, 64], strides = [1, 1]} : vector<32x192xbf16> to vector<32x64xbf16>
    %cst_16 = arith.constant dense<0.000000e+00> : vector<512x64xf32>
    %20 = tpu.matmul %12, %19, %cst_16 {dimension_numbers = #tpu.dot_dimension_numbers<[1], [0], [0], [1], [0, 0, 1, 1], [], []>} : vector<512x32xbf16>, vector<32x64xbf16>, vector<512x64xf32> -> vector<512x64xf32>
    %21 = arith.addf %18, %20 : vector<512x64xf32>
    %c0_17 = arith.constant 0 : index
    %c0_18 = arith.constant 0 : index
    %c0_19 = arith.constant 0 : index
    %22 = vector.load %arg5[%c0_17, %c0_18, %c0_19] : memref<1x512x64xbf16, #tpu.memory_space<vmem>>, vector<1x512x64xbf16>
    %23 = vector.shape_cast %22 : vector<1x512x64xbf16> to vector<512x64xbf16>
    %24 = arith.extf %23 : vector<512x64xbf16> to vector<512x64xf32>
    %25 = arith.addf %21, %24 : vector<512x64xf32>
    %cst_20 = arith.constant 0.000000e+00 : f32
    %26 = vector.broadcast %cst_20 : f32 to vector<512x64xf32>
    %27 = arith.cmpf ogt, %25, %26 : vector<512x64xf32>
    %cst_21 = arith.constant 2.000000e-01 : f32
    %28 = vector.broadcast %cst_21 : f32 to vector<512x64xf32>
    %29 = arith.mulf %28, %25 : vector<512x64xf32>
    %30 = arith.select %27, %25, %29 : vector<512x64xi1>, vector<512x64xf32>
    %cst_22 = arith.constant dense<0xFF800000> : vector<64xf32>
    %31 = vector.multi_reduction <maximumf>, %30, %cst_22 [0] : vector<512x64xf32> to vector<64xf32>
    %32 = vector.shape_cast %31 : vector<64xf32> to vector<1x64xf32>
    %33 = vector.broadcast %32 : vector<1x64xf32> to vector<512x64xf32>
    %34 = arith.subf %30, %33 : vector<512x64xf32>
    %35 = math.exp %34 : vector<512x64xf32>
    %36 = arith.truncf %35 : vector<512x64xf32> to vector<512x64xbf16>
    %cst_23 = arith.constant dense<0.000000e+00> : vector<32x64xf32>
    %37 = tpu.matmul %14, %36, %cst_23 {dimension_numbers = #tpu.dot_dimension_numbers<[1], [0], [0], [1], [0, 0, 1, 1], [], []>} : vector<32x512xbf16>, vector<512x64xbf16>, vector<32x64xf32> -> vector<32x64xf32>
    %cst_24 = arith.constant 9.99999996E-13 : f32
    %38 = vector.broadcast %cst_24 : f32 to vector<32x64xf32>
    %39 = arith.addf %37, %38 : vector<32x64xf32>
    %40 = tpu.reciprocal %39 {approx = true} : vector<32x64xf32> -> vector<32x64xf32>
    %41 = arith.truncf %40 : vector<32x64xf32> to vector<32x64xbf16>
    %cst_25 = arith.constant dense<0.000000e+00> : vector<512x64xf32>
    %42 = tpu.matmul %12, %41, %cst_25 {dimension_numbers = #tpu.dot_dimension_numbers<[1], [0], [0], [1], [0, 0, 1, 1], [], []>} : vector<512x32xbf16>, vector<32x64xbf16>, vector<512x64xf32> -> vector<512x64xf32>
    %43 = arith.mulf %35, %42 : vector<512x64xf32>
    %c0_26 = arith.constant 0 : index
    %c0_27 = arith.constant 0 : index
    %c0_28 = arith.constant 0 : index
    %44 = vector.load %arg4[%c0_26, %c0_27, %c0_28] : memref<1x512x64xbf16, #tpu.memory_space<vmem>>, vector<1x512x64xbf16>
    %45 = vector.shape_cast %44 : vector<1x512x64xbf16> to vector<512x64xbf16>
    %46 = arith.extf %45 : vector<512x64xbf16> to vector<512x64xf32>
    %47 = arith.addf %16, %46 : vector<512x64xf32>
    %48 = arith.mulf %43, %47 : vector<512x64xf32>
    %49 = arith.truncf %48 : vector<512x64xf32> to vector<512x64xbf16>
    %cst_29 = arith.constant dense<0.000000e+00> : vector<32x64xf32>
    %50 = tpu.matmul %14, %49, %cst_29 {dimension_numbers = #tpu.dot_dimension_numbers<[1], [0], [0], [1], [0, 0, 1, 1], [], []>} : vector<32x512xbf16>, vector<512x64xbf16>, vector<32x64xf32> -> vector<32x64xf32>
    %cst_30 = arith.constant 0.000000e+00 : f32
    %51 = vector.broadcast %cst_30 : f32 to vector<32x64xf32>
    %52 = arith.cmpf ogt, %50, %51 : vector<32x64xf32>
    %53 = math.exp %50 : vector<32x64xf32>
    %cst_31 = arith.constant 1.000000e+00 : f32
    %54 = vector.broadcast %cst_31 : f32 to vector<32x64xf32>
    %55 = arith.subf %53, %54 : vector<32x64xf32>
    %56 = arith.select %52, %50, %55 : vector<32x64xi1>, vector<32x64xf32>
    %c0_32 = arith.constant 0 : index
    %c0_33 = arith.constant 0 : index
    %57 = vector.load %arg12[%c0_32, %c0_33] : memref<32x64xf32, #tpu.memory_space<vmem>>, vector<32x64xf32>
    tpu.vector_store %arg12[%c0_32, %c0_33], %56 {strides = array<i32>} : memref<32x64xf32, #tpu.memory_space<vmem>>, vector<32x64xf32>,
    %c3_i32 = arith.constant 3 : i32
    %58 = arith.cmpi eq, %arg1, %c3_i32 : i32
    %59 = arith.extui %58 : i1 to i32
    %c0_i32_34 = arith.constant 0 : i32
    %60 = arith.cmpi ne, %59, %c0_i32_34 : i32
    scf.if %60 {
      %61 = arith.truncf %56 : vector<32x64xf32> to vector<32x64xbf16>
      %c0_35 = arith.constant 0 : index
      %c0_36 = arith.constant 0 : index
      %c0_37 = arith.constant 0 : index
      %62 = vector.load %arg9[%c0_35, %c0_36, %c0_37] : memref<1x1x32xbf16, #tpu.memory_space<vmem>>, vector<1x1x32xbf16>
      %63 = vector.shape_cast %62 : vector<1x1x32xbf16> to vector<1x32xbf16>
      %cst_38 = arith.constant dense<0.000000e+00> : vector<1x64xf32>
      %64 = tpu.matmul %63, %61, %cst_38 {dimension_numbers = #tpu.dot_dimension_numbers<[1], [0], [0], [1], [0, 0, 1, 1], [], []>} : vector<1x32xbf16>, vector<32x64xbf16>, vector<1x64xf32> -> vector<1x64xf32>
      %c0_39 = arith.constant 0 : index
      %c0_40 = arith.constant 0 : index
      %c0_41 = arith.constant 0 : index
      %65 = vector.load %arg10[%c0_39, %c0_40, %c0_41] : memref<1x1x32xbf16, #tpu.memory_space<vmem>>, vector<1x1x32xbf16>
      %66 = vector.shape_cast %65 : vector<1x1x32xbf16> to vector<1x32xbf16>
      %cst_42 = arith.constant dense<0.000000e+00> : vector<1x64xf32>
      %67 = tpu.matmul %66, %61, %cst_42 {dimension_numbers = #tpu.dot_dimension_numbers<[1], [0], [0], [1], [0, 0, 1, 1], [], []>} : vector<1x32xbf16>, vector<32x64xbf16>, vector<1x64xf32> -> vector<1x64xf32>
      %68 = arith.mulf %64, %67 : vector<1x64xf32>
      %cst_43 = arith.constant dense<0.000000e+00> : vector<1xf32>
      %69 = vector.multi_reduction <add>, %68, %cst_43 [1] : vector<1x64xf32> to vector<1xf32>
      %70 = vector.shape_cast %69 : vector<1xf32> to vector<1x1xf32>
      %cst_44 = arith.constant 1.000000e+00 : f32
      %71 = vector.broadcast %cst_44 : f32 to vector<1x1xf32>
      %72 = arith.mulf %70, %71 : vector<1x1xf32>
      %73 = vector.shape_cast %72 : vector<1x1xf32> to vector<1x1x1xf32>
      %74 = vector.shape_cast %73 : vector<1x1x1xf32> to vector<1x1x1xf32>
      %75 = vector.broadcast %74 : vector<1x1x1xf32> to vector<1x1x128xf32>
      %c0_45 = arith.constant 0 : index
      %c0_46 = arith.constant 0 : index
      %c0_47 = arith.constant 0 : index
      %76 = vector.load %arg11[%c0_45, %c0_46, %c0_47] : memref<1x1x128xf32, #tpu.memory_space<vmem>>, vector<1x1x128xf32>
      tpu.vector_store %arg11[%c0_45, %c0_46, %c0_47], %75 {strides = array<i32>} : memref<1x1x128xf32, #tpu.memory_space<vmem>>, vector<1x1x128xf32>,
    } else {
    }
    return
  }
  func.func @transform_0(%arg0: i32, %arg1: i32) -> (i32, i32) {
    %c0_i32 = arith.constant 0 : i32
    %c0_i32_0 = arith.constant 0 : i32
    return %arg0, %c0_i32 : i32, i32
  }
  func.func @transform_1(%arg0: i32, %arg1: i32) -> (i32, i32, i32) {
    %c0_i32 = arith.constant 0 : i32
    %c0_i32_0 = arith.constant 0 : i32
    %c0_i32_1 = arith.constant 0 : i32
    return %arg1, %c0_i32, %c0_i32_0 : i32, i32, i32
  }
  func.func @transform_2(%arg0: i32, %arg1: i32) -> (i32, i32, i32) {
    %c0_i32 = arith.constant 0 : i32
    %c0_i32_0 = arith.constant 0 : i32
    return %arg1, %arg0, %c0_i32 : i32, i32, i32
  }
  func.func @transform_3(%arg0: i32, %arg1: i32) -> (i32, i32, i32) {
    %c0_i32 = arith.constant 0 : i32
    %c0_i32_0 = arith.constant 0 : i32
    return %arg1, %arg0, %c0_i32 : i32, i32, i32
  }
  func.func @transform_4(%arg0: i32, %arg1: i32) -> (i32, i32, i32) {
    %c0_i32 = arith.constant 0 : i32
    %c0_i32_0 = arith.constant 0 : i32
    %c0_i32_1 = arith.constant 0 : i32
    return %arg0, %c0_i32, %c0_i32_0 : i32, i32, i32
  }
  func.func @transform_5(%arg0: i32, %arg1: i32) -> (i32, i32, i32) {
    %c0_i32 = arith.constant 0 : i32
    %c0_i32_0 = arith.constant 0 : i32
    %c0_i32_1 = arith.constant 0 : i32
    return %arg0, %c0_i32, %c0_i32_0 : i32, i32, i32
  }
  func.func @transform_6(%arg0: i32, %arg1: i32) -> (i32, i32, i32) {
    %c0_i32 = arith.constant 0 : i32
    %c0_i32_0 = arith.constant 0 : i32
    %c0_i32_1 = arith.constant 0 : i32
    return %arg0, %c0_i32, %c0_i32_0 : i32, i32, i32
  }
  func.func @transform_7(%arg0: i32, %arg1: i32) -> (i32, i32, i32) {
    %c0_i32 = arith.constant 0 : i32
    %c0_i32_0 = arith.constant 0 : i32
    %c0_i32_1 = arith.constant 0 : i32
    return %arg0, %c0_i32, %c0_i32_0 : i32, i32, i32
  }
  func.func @transform_8(%arg0: i32, %arg1: i32) -> (i32, i32, i32) {
    %c0_i32 = arith.constant 0 : i32
    %c0_i32_0 = arith.constant 0 : i32
    %c0_i32_1 = arith.constant 0 : i32
    return %arg0, %c0_i32, %c0_i32_0 : i32, i32, i32
  }
  func.func @transform_9(%arg0: i32, %arg1: i32) -> (i32, i32, i32) {
    %c0_i32 = arith.constant 0 : i32
    %c0_i32_0 = arith.constant 0 : i32
    %c0_i32_1 = arith.constant 0 : i32
    return %arg0, %c0_i32, %c0_i32_0 : i32, i32, i32
  }
}

</mosaic_0001>

<llo_original>
// kernel: tpu_custom_call.1
$region0: #{tpu_custom_call.1}
  #allocation0 [shape = 'u32[]', space=smem, size = 0x4, offset = 0x4, fixed_abs, tag = 'smem constant byte address 0x4 - core index']
  #allocation1 [shape = 'u32[144,128]{1,0:T(1,128)}', space=vmem, size = 0x12000, scoped, tag = 'internal scratch']
  #allocation2 [shape = 'f32[32,64]{1,0:T(8,128)}', space=vmem, size = 0x4000, scoped, tag = 'scratch operand']
  %s0 = inlined_call_operand.vmem [shape: f32[128,64], index: 0, kind: input, shape index: {}]
  %s1 = inlined_call_operand.vmem [shape: bf16[4,64,192], index: 1, kind: input, shape index: {}]
  %s2 = inlined_call_operand.vmem [shape: bf16[4,2048,64], index: 2, kind: input, shape index: {}]
  %s3 = inlined_call_operand.vmem [shape: bf16[4,2048,64], index: 3, kind: input, shape index: {}]
  %s4 = inlined_call_operand.vmem [shape: bf16[4,512,32], index: 4, kind: input, shape index: {}]
  %s5 = inlined_call_operand.vmem [shape: bf16[4,512,32], index: 5, kind: input, shape index: {}]
  %s6 = inlined_call_operand.vmem [shape: bf16[4,32,512], index: 6, kind: input, shape index: {}]
  %s7 = inlined_call_operand.vmem [shape: bf16[4,1,32], index: 7, kind: input, shape index: {}]
  %s8 = inlined_call_operand.vmem [shape: bf16[4,1,32], index: 8, kind: input, shape index: {}]
  %s9 = inlined_call_operand.hbm [shape: f32[4,1,128], index: 9, kind: output, shape index: {}]
  %s10 = sld [smem:[#allocation0]]
  $region77: #{tpu_custom_call.1} parent=0
    _
  %s12 = ssub.s32 1, %s10
  %s13 = scalar_select 0, %s12, %s10
  $region1: #{tpu_custom_call.1} parent=0
    #allocation3 [shape = 'u8[1024]{0}', space=vmem, size = 0x400, scoped, tag = 'output window, operand 0']
    #allocation4 [shape = 's32[2]{0}', space=sflag, size = 0x8, scoped, tag = 'scoped memory for tpu_custom_call.1']
    %14 = vsyncpa [#allocation4], 0
    %s15 = scalar_lea.sflag [#allocation4], 1
    %16 = vsyncpa %s15, 0
    loop: start=0, step=1, limit=18
    $region2: #{tpu_custom_call.1} parent=1 // loop_pre_header
      _
    $region3: #{tpu_custom_call.1} parent=1 // loop_header
      %s18 = sphi 0, %s22
      %p19 = scmp.ge.s32.totalorder %s18, 18
      %s25 = sphi 0, %s37
      %s26 = sphi 0, %s33
      %s27 = sphi 0, %s25
      %s28 = sphi 0, %s26
      %s29 = sphi 0, %s27
      %s30 = sphi 0, %s28
      %s40 = sphi 0, %s42
      %s43 = sphi 0, %s40
      %s44 = sphi 0, %s43
      %s60 = sphi 0, %s44
      %s66 = sphi 0, %s68
      %s69 = sphi 0, %s66
      %s70 = sphi 0, %s69
      %s86 = sphi 0, %s70
      %s94 = sphi 0, %s96
      %s97 = sphi 0, %s94
      %s98 = sphi 0, %s97
      %s114 = sphi 0, %s98
      %s122 = sphi 0, %s124
      %s125 = sphi 0, %s122
      %s126 = sphi 0, %s125
      %s142 = sphi 0, %s126
      %s148 = sphi 0, %s150
      %s151 = sphi 0, %s148
      %s152 = sphi 0, %s151
      %s168 = sphi 0, %s152
      %s174 = sphi 0, %s176
      %s177 = sphi 0, %s174
      %s178 = sphi 0, %s177
      %s194 = sphi 0, %s178
      %s200 = sphi 0, %s202
      %s203 = sphi 0, %s200
      %s204 = sphi 0, %s203
      %s220 = sphi 0, %s204
      %s226 = sphi 0, %s228
      %s229 = sphi 0, %s226
      %s230 = sphi 0, %s229
      %s246 = sphi 0, %s230
      %s252 = sphi 0, %s254
      %s255 = sphi 0, %s252
      %s256 = sphi 0, %s255
      %s272 = sphi 0, %s256
      %s278 = sphi 0, %s280
      %s281 = sphi 0, %s278
      %s282 = sphi 0, %s281
      %s298 = sphi 0, %s282
    $region4: #{tpu_custom_call.1} parent=1 // loop_header_branch
      %21 = sbr.rel (%p19) target = $region8
    $region5: #{tpu_custom_call.1} parent=1 // loop_body
      %s23 = ssub.s32 %s18, 1
      %s24 = ssub.s32 %s18, 2
      %s31 = sadd.s32 1, %s26
      %p32 = scmp.ge.s32.totalorder %s31, 4
      %s33 = scalar_select %p32, 0, %s31
      %s34 = sadd.s32 1, %s25
      %s35 = scalar_select %p32, %s34, %s25
      %p36 = scmp.ge.s32.totalorder %s35, 4
      %s37 = scalar_select %p36, 0, %s35
      %s38 = ssub.s32 %s25, %s37
      %p39 = scmp.eq.s32.totalorder %s38, 0
      %s41 = sadd.s32 %s40, 1
      %s42 = scalar_select %p39, %s40, %s41
      %p45 = pneg %p39
      %p46 = scmp.eq.s32.totalorder %s18, 15
      %p47 = por %p45, %p46
      %p48 = scmp.ne.s32.totalorder %s40, %s43
      %p49 = scmp.eq.s32.totalorder %s18, 0
      %p50 = por %p48, %p49
      %p51 = scmp.ne.s32.totalorder %s40, %s43
      %p52 = scmp.eq.s32.totalorder %s23, 15
      %p53 = por %p51, %p52
      %p54 = scmp.ne.s32.totalorder %s43, %s44
      %p55 = scmp.eq.s32.totalorder %s23, 0
      %p56 = por %p54, %p55
      %p57 = scmp.ne.s32.totalorder %s43, %s44
      %p58 = scmp.eq.s32.totalorder %s24, 15
      %p59 = por %p57, %p58
      %p61 = scmp.ne.s32.totalorder %s44, %s60
      %p62 = scmp.eq.s32.totalorder %s24, 0
      %p63 = por %p61, %p62
      %s64 = ssub.s32 %s26, %s33
      %p65 = scmp.eq.s32.totalorder %s64, 0
      %s67 = sadd.s32 %s66, 1
      %s68 = scalar_select %p65, %s66, %s67
      %p71 = pneg %p65
      %p72 = scmp.eq.s32.totalorder %s18, 15
      %p73 = por %p71, %p72
      %p74 = scmp.ne.s32.totalorder %s66, %s69
      %p75 = scmp.eq.s32.totalorder %s18, 0
      %p76 = por %p74, %p75
      %p77 = scmp.ne.s32.totalorder %s66, %s69
      %p78 = scmp.eq.s32.totalorder %s23, 15
      %p79 = por %p77, %p78
      %p80 = scmp.ne.s32.totalorder %s69, %s70
      %p81 = scmp.eq.s32.totalorder %s23, 0
      %p82 = por %p80, %p81
      %p83 = scmp.ne.s32.totalorder %s69, %s70
      %p84 = scmp.eq.s32.totalorder %s24, 15
      %p85 = por %p83, %p84
      %p87 = scmp.ne.s32.totalorder %s70, %s86
      %p88 = scmp.eq.s32.totalorder %s24, 0
      %p89 = por %p87, %p88
      %s90 = ssub.s32 %s26, %s33
      %s91 = ssub.s32 %s25, %s37
      %s92 = sor.u32 %s90, %s91
      %p93 = scmp.eq.s32.totalorder %s92, 0
      %s95 = sadd.s32 %s94, 1
      %s96 = scalar_select %p93, %s94, %s95
      %p99 = pneg %p93
      %p100 = scmp.eq.s32.totalorder %s18, 15
      %p101 = por %p99, %p100
      %p102 = scmp.ne.s32.totalorder %s94, %s97
      %p103 = scmp.eq.s32.totalorder %s18, 0
      %p104 = por %p102, %p103
      %p105 = scmp.ne.s32.totalorder %s94, %s97
      %p106 = scmp.eq.s32.totalorder %s23, 15
      %p107 = por %p105, %p106
      %p108 = scmp.ne.s32.totalorder %s97, %s98
      %p109 = scmp.eq.s32.totalorder %s23, 0
      %p110 = por %p108, %p109
      %p111 = scmp.ne.s32.totalorder %s97, %s98
      %p112 = scmp.eq.s32.totalorder %s24, 15
      %p113 = por %p111, %p112
      %p115 = scmp.ne.s32.totalorder %s98, %s114
      %p116 = scmp.eq.s32.totalorder %s24, 0
      %p117 = por %p115, %p116
      %s118 = ssub.s32 %s26, %s33
      %s119 = ssub.s32 %s25, %s37
      %s120 = sor.u32 %s118, %s119
      %p121 = scmp.eq.s32.totalorder %s120, 0
      %s123 = sadd.s32 %s122, 1
      %s124 = scalar_select %p121, %s122, %s123
      %p127 = pneg %p121
      %p128 = scmp.eq.s32.totalorder %s18, 15
      %p129 = por %p127, %p128
      %p130 = scmp.ne.s32.totalorder %s122, %s125
      %p131 = scmp.eq.s32.totalorder %s18, 0
      %p132 = por %p130, %p131
      %p133 = scmp.ne.s32.totalorder %s122, %s125
      %p134 = scmp.eq.s32.totalorder %s23, 15
      %p135 = por %p133, %p134
      %p136 = scmp.ne.s32.totalorder %s125, %s126
      %p137 = scmp.eq.s32.totalorder %s23, 0
      %p138 = por %p136, %p137
      %p139 = scmp.ne.s32.totalorder %s125, %s126
      %p140 = scmp.eq.s32.totalorder %s24, 15
      %p141 = por %p139, %p140
      %p143 = scmp.ne.s32.totalorder %s126, %s142
      %p144 = scmp.eq.s32.totalorder %s24, 0
      %p145 = por %p143, %p144
      %s146 = ssub.s32 %s25, %s37
      %p147 = scmp.eq.s32.totalorder %s146, 0
      %s149 = sadd.s32 %s148, 1
      %s150 = scalar_select %p147, %s148, %s149
      %p153 = pneg %p147
      %p154 = scmp.eq.s32.totalorder %s18, 15
      %p155 = por %p153, %p154
      %p156 = scmp.ne.s32.totalorder %s148, %s151
      %p157 = scmp.eq.s32.totalorder %s18, 0
      %p158 = por %p156, %p157
      %p159 = scmp.ne.s32.totalorder %s148, %s151
      %p160 = scmp.eq.s32.totalorder %s23, 15
      %p161 = por %p159, %p160
      %p162 = scmp.ne.s32.totalorder %s151, %s152
      %p163 = scmp.eq.s32.totalorder %s23, 0
      %p164 = por %p162, %p163
      %p165 = scmp.ne.s32.totalorder %s151, %s152
      %p166 = scmp.eq.s32.totalorder %s24, 15
      %p167 = por %p165, %p166
      %p169 = scmp.ne.s32.totalorder %s152, %s168
      %p170 = scmp.eq.s32.totalorder %s24, 0
      %p171 = por %p169, %p170
      %s172 = ssub.s32 %s25, %s37
      %p173 = scmp.eq.s32.totalorder %s172, 0
      %s175 = sadd.s32 %s174, 1
      %s176 = scalar_select %p173, %s174, %s175
      %p179 = pneg %p173
      %p180 = scmp.eq.s32.totalorder %s18, 15
      %p181 = por %p179, %p180
      %p182 = scmp.ne.s32.totalorder %s174, %s177
      %p183 = scmp.eq.s32.totalorder %s18, 0
      %p184 = por %p182, %p183
      %p185 = scmp.ne.s32.totalorder %s174, %s177
      %p186 = scmp.eq.s32.totalorder %s23, 15
      %p187 = por %p185, %p186
      %p188 = scmp.ne.s32.totalorder %s177, %s178
      %p189 = scmp.eq.s32.totalorder %s23, 0
      %p190 = por %p188, %p189
      %p191 = scmp.ne.s32.totalorder %s177, %s178
      %p192 = scmp.eq.s32.totalorder %s24, 15
      %p193 = por %p191, %p192
      %p195 = scmp.ne.s32.totalorder %s178, %s194
      %p196 = scmp.eq.s32.totalorder %s24, 0
      %p197 = por %p195, %p196
      %s198 = ssub.s32 %s25, %s37
      %p199 = scmp.eq.s32.totalorder %s198, 0
      %s201 = sadd.s32 %s200, 1
      %s202 = scalar_select %p199, %s200, %s201
      %p205 = pneg %p199
      %p206 = scmp.eq.s32.totalorder %s18, 15
      %p207 = por %p205, %p206
      %p208 = scmp.ne.s32.totalorder %s200, %s203
      %p209 = scmp.eq.s32.totalorder %s18, 0
      %p210 = por %p208, %p209
      %p211 = scmp.ne.s32.totalorder %s200, %s203
      %p212 = scmp.eq.s32.totalorder %s23, 15
      %p213 = por %p211, %p212
      %p214 = scmp.ne.s32.totalorder %s203, %s204
      %p215 = scmp.eq.s32.totalorder %s23, 0
      %p216 = por %p214, %p215
      %p217 = scmp.ne.s32.totalorder %s203, %s204
      %p218 = scmp.eq.s32.totalorder %s24, 15
      %p219 = por %p217, %p218
      %p221 = scmp.ne.s32.totalorder %s204, %s220
      %p222 = scmp.eq.s32.totalorder %s24, 0
      %p223 = por %p221, %p222
      %s224 = ssub.s32 %s25, %s37
      %p225 = scmp.eq.s32.totalorder %s224, 0
      %s227 = sadd.s32 %s226, 1
      %s228 = scalar_select %p225, %s226, %s227
      %p231 = pneg %p225
      %p232 = scmp.eq.s32.totalorder %s18, 15
      %p233 = por %p231, %p232
      %p234 = scmp.ne.s32.totalorder %s226, %s229
      %p235 = scmp.eq.s32.totalorder %s18, 0
      %p236 = por %p234, %p235
      %p237 = scmp.ne.s32.totalorder %s226, %s229
      %p238 = scmp.eq.s32.totalorder %s23, 15
      %p239 = por %p237, %p238
      %p240 = scmp.ne.s32.totalorder %s229, %s230
      %p241 = scmp.eq.s32.totalorder %s23, 0
      %p242 = por %p240, %p241
      %p243 = scmp.ne.s32.totalorder %s229, %s230
      %p244 = scmp.eq.s32.totalorder %s24, 15
      %p245 = por %p243, %p244
      %p247 = scmp.ne.s32.totalorder %s230, %s246
      %p248 = scmp.eq.s32.totalorder %s24, 0
      %p249 = por %p247, %p248
      %s250 = ssub.s32 %s25, %s37
      %p251 = scmp.eq.s32.totalorder %s250, 0
      %s253 = sadd.s32 %s252, 1
      %s254 = scalar_select %p251, %s252, %s253
      %p257 = pneg %p251
      %p258 = scmp.eq.s32.totalorder %s18, 15
      %p259 = por %p257, %p258
      %p260 = scmp.ne.s32.totalorder %s252, %s255
      %p261 = scmp.eq.s32.totalorder %s18, 0
      %p262 = por %p260, %p261
      %p263 = scmp.ne.s32.totalorder %s252, %s255
      %p264 = scmp.eq.s32.totalorder %s23, 15
      %p265 = por %p263, %p264
      %p266 = scmp.ne.s32.totalorder %s255, %s256
      %p267 = scmp.eq.s32.totalorder %s23, 0
      %p268 = por %p266, %p267
      %p269 = scmp.ne.s32.totalorder %s255, %s256
      %p270 = scmp.eq.s32.totalorder %s24, 15
      %p271 = por %p269, %p270
      %p273 = scmp.ne.s32.totalorder %s256, %s272
      %p274 = scmp.eq.s32.totalorder %s24, 0
      %p275 = por %p273, %p274
      %s276 = ssub.s32 %s25, %s37
      %p277 = scmp.eq.s32.totalorder %s276, 0
      %s279 = sadd.s32 %s278, 1
      %s280 = scalar_select %p277, %s278, %s279
      %p283 = pneg %p277
      %p284 = scmp.eq.s32.totalorder %s18, 15
      %p285 = por %p283, %p284
      %p286 = scmp.ne.s32.totalorder %s278, %s281
      %p287 = scmp.eq.s32.totalorder %s18, 0
      %p288 = por %p286, %p287
      %p289 = scmp.ne.s32.totalorder %s278, %s281
      %p290 = scmp.eq.s32.totalorder %s23, 15
      %p291 = por %p289, %p290
      %p292 = scmp.ne.s32.totalorder %s281, %s282
      %p293 = scmp.eq.s32.totalorder %s23, 0
      %p294 = por %p292, %p293
      %p295 = scmp.ne.s32.totalorder %s281, %s282
      %p296 = scmp.eq.s32.totalorder %s24, 15
      %p297 = por %p295, %p296
      %p299 = scmp.ne.s32.totalorder %s282, %s298
      %p300 = scmp.eq.s32.totalorder %s24, 0
      %p301 = por %p299, %p300
      %p302 = scmp.le.s32.totalorder 1, %s18
      %p303 = scmp.lt.s32.totalorder %s18, 17
      %p304 = pnand %p302, %p303
      %p305 = pneg %p304
      // Predicated region
      $region9: #{tpu_custom_call.1} parent=5 // pred_check
        _
      $region10: #{tpu_custom_call.1} parent=5 // pred_check_branch
        %307 = sbr.rel (%p304) target = $region12
      $region11: #{tpu_custom_call.1} parent=5 // pred_region
        %s308 = ssub.s32 %s18, 1
      $region12: #{tpu_custom_call.1} parent=5 // pred_fallthru
        _
      %p309 = scmp.lt.s32.totalorder %s18, 16
      // Predicated region
      $region13: #{tpu_custom_call.1} parent=5 // pred_check
        %p310 = pneg %p309
      $region14: #{tpu_custom_call.1} parent=5 // pred_check_branch
        %312 = sbr.rel (%p310) target = $region16
      $region15: #{tpu_custom_call.1} parent=5 // pred_region
        // Predicated region
        $region17: #{tpu_custom_call.1} parent=15 // pred_check
          %p313 = pneg %p50
        $region18: #{tpu_custom_call.1} parent=15 // pred_check_branch
          %315 = sbr.rel (%p313) target = $region20
        $region19: #{tpu_custom_call.1} parent=15 // pred_region
          %s316 = smul.u32 4, %s25
          %p317 = scmp.lt.s32.totalorder %s316, 15
          %s318 = scalar_select %p317, %s316, 15
          %s319 = smul.addr %s318, 8
          %s320 = scalar_lea.vmem %s0, %s319
          %s321 = smul.u32 4, %s25
        $region20: #{tpu_custom_call.1} parent=15 // pred_fallthru
          _
        // Predicated region
        $region21: #{tpu_custom_call.1} parent=15 // pred_check
          %p322 = pneg %p76
        $region22: #{tpu_custom_call.1} parent=15 // pred_check_branch
          %324 = sbr.rel (%p322) target = $region24
        $region23: #{tpu_custom_call.1} parent=15 // pred_region
          %p325 = scmp.lt.s32.totalorder %s26, 3
          %s326 = scalar_select %p325, %s26, 3
          %s327 = smul.addr %s326, 16
          %s328 = smul.addr %s327, 4
          %s329 = scalar_lea.vmem %s1, %s328
        $region24: #{tpu_custom_call.1} parent=15 // pred_fallthru
          _
        // Predicated region
        $region25: #{tpu_custom_call.1} parent=15 // pred_check
          %p330 = pneg %p104
        $region26: #{tpu_custom_call.1} parent=15 // pred_check_branch
          %332 = sbr.rel (%p330) target = $region28
        $region27: #{tpu_custom_call.1} parent=15 // pred_region
          %s333 = smul.u32 64, %s25
          %p334 = scmp.lt.s32.totalorder %s26, 3
          %s335 = scalar_select %p334, %s26, 3
          %p336 = scmp.lt.s32.totalorder %s333, 255
          %s337 = scalar_select %p336, %s333, 255
          %s338 = smul.addr %s335, 256
          %s339 = sadd.s32 %s337, %s338
          %s340 = smul.addr %s339, 4
          %s341 = scalar_lea.vmem %s2, %s340
          %s342 = smul.u32 64, %s25
        $region28: #{tpu_custom_call.1} parent=15 // pred_fallthru
          _
        // Predicated region
        $region29: #{tpu_custom_call.1} parent=15 // pred_check
          %p343 = pneg %p132
        $region30: #{tpu_custom_call.1} parent=15 // pred_check_branch
          %345 = sbr.rel (%p343) target = $region32
        $region31: #{tpu_custom_call.1} parent=15 // pred_region
          %s346 = smul.u32 64, %s25
          %p347 = scmp.lt.s32.totalorder %s26, 3
          %s348 = scalar_select %p347, %s26, 3
          %p349 = scmp.lt.s32.totalorder %s346, 255
          %s350 = scalar_select %p349, %s346, 255
          %s351 = smul.addr %s348, 256
          %s352 = sadd.s32 %s350, %s351
          %s353 = smul.addr %s352, 4
          %s354 = scalar_lea.vmem %s3, %s353
          %s355 = smul.u32 64, %s25
        $region32: #{tpu_custom_call.1} parent=15 // pred_fallthru
          _
        // Predicated region
        $region33: #{tpu_custom_call.1} parent=15 // pred_check
          %p356 = pneg %p158
        $region34: #{tpu_custom_call.1} parent=15 // pred_check_branch
          %358 = sbr.rel (%p356) target = $region36
        $region35: #{tpu_custom_call.1} parent=15 // pred_region
          %p359 = scmp.lt.s32.totalorder %s25, 3
          %s360 = scalar_select %p359, %s25, 3
          %s361 = smul.addr %s360, 64
          %s362 = smul.addr %s361, 4
          %s363 = scalar_lea.vmem %s4, %s362
        $region36: #{tpu_custom_call.1} parent=15 // pred_fallthru
          _
        // Predicated region
        $region37: #{tpu_custom_call.1} parent=15 // pred_check
          %p364 = pneg %p184
        $region38: #{tpu_custom_call.1} parent=15 // pred_check_branch
          %366 = sbr.rel (%p364) target = $region40
        $region39: #{tpu_custom_call.1} parent=15 // pred_region
          %p367 = scmp.lt.s32.totalorder %s25, 3
          %s368 = scalar_select %p367, %s25, 3
          %s369 = smul.addr %s368, 64
          %s370 = smul.addr %s369, 4
          %s371 = scalar_lea.vmem %s5, %s370
        $region40: #{tpu_custom_call.1} parent=15 // pred_fallthru
          _
        // Predicated region
        $region41: #{tpu_custom_call.1} parent=15 // pred_check
          %p372 = pneg %p210
        $region42: #{tpu_custom_call.1} parent=15 // pred_check_branch
          %374 = sbr.rel (%p372) target = $region44
        $region43: #{tpu_custom_call.1} parent=15 // pred_region
          %p375 = scmp.lt.s32.totalorder %s25, 3
          %s376 = scalar_select %p375, %s25, 3
          %s377 = smul.addr %s376, 16
          %s378 = smul.addr %s377, 4
          %s379 = scalar_lea.vmem %s6, %s378
        $region44: #{tpu_custom_call.1} parent=15 // pred_fallthru
          _
        // Predicated region
        $region45: #{tpu_custom_call.1} parent=15 // pred_check
          %p380 = pneg %p236
        $region46: #{tpu_custom_call.1} parent=15 // pred_check_branch
          %382 = sbr.rel (%p380) target = $region48
        $region47: #{tpu_custom_call.1} parent=15 // pred_region
          %p383 = scmp.lt.s32.totalorder %s25, 3
          %s384 = scalar_select %p383, %s25, 3
          %s385 = scalar_lea.vmem %s7, %s384
        $region48: #{tpu_custom_call.1} parent=15 // pred_fallthru
          _
        // Predicated region
        $region49: #{tpu_custom_call.1} parent=15 // pred_check
          %p386 = pneg %p262
        $region50: #{tpu_custom_call.1} parent=15 // pred_check_branch
          %388 = sbr.rel (%p386) target = $region52
        $region51: #{tpu_custom_call.1} parent=15 // pred_region
          %p389 = scmp.lt.s32.totalorder %s25, 3
          %s390 = scalar_select %p389, %s25, 3
          %s391 = scalar_lea.vmem %s8, %s390
        $region52: #{tpu_custom_call.1} parent=15 // pred_fallthru
          _
      $region16: #{tpu_custom_call.1} parent=5 // pred_fallthru
        _
      %p392 = scmp.le.s32.totalorder 1, %s18
      %p393 = scmp.lt.s32.totalorder %s18, 17
      %p394 = pnand %p392, %p393
      %p395 = pneg %p394
      // Predicated region
      $region53: #{tpu_custom_call.1} parent=5 // pred_check
        _
      $region54: #{tpu_custom_call.1} parent=5 // pred_check_branch
        %397 = sbr.rel (%p394) target = $region56
      $region55: #{tpu_custom_call.1} parent=5 // pred_region
        %s398 = ssub.s32 %s18, 1
        %s399 = smul.u32 4, %s27
        %p400 = scmp.lt.s32.totalorder %s399, 15
        %s401 = scalar_select %p400, %s399, 15
        %s402 = smul.addr %s401, 8
        %s403 = scalar_lea.vmem %s0, %s402
        %p404 = pneg %p56
        %p405 = pneg %p53
        %p406 = scmp.lt.s32.totalorder %s28, 3
        %s407 = scalar_select %p406, %s28, 3
        %s408 = smul.addr %s407, 16
        %s409 = smul.addr %s408, 4
        %s410 = scalar_lea.vmem %s1, %s409
        %p411 = pneg %p82
        %p412 = pneg %p79
        %s413 = smul.u32 64, %s27
        %p414 = scmp.lt.s32.totalorder %s28, 3
        %s415 = scalar_select %p414, %s28, 3
        %p416 = scmp.lt.s32.totalorder %s413, 255
        %s417 = scalar_select %p416, %s413, 255
        %s418 = smul.addr %s415, 256
        %s419 = sadd.s32 %s417, %s418
        %s420 = smul.addr %s419, 4
        %s421 = scalar_lea.vmem %s2, %s420
        %p422 = pneg %p110
        %p423 = pneg %p107
        %s424 = smul.u32 64, %s27
        %p425 = scmp.lt.s32.totalorder %s28, 3
        %s426 = scalar_select %p425, %s28, 3
        %p427 = scmp.lt.s32.totalorder %s424, 255
        %s428 = scalar_select %p427, %s424, 255
        %s429 = smul.addr %s426, 256
        %s430 = sadd.s32 %s428, %s429
        %s431 = smul.addr %s430, 4
        %s432 = scalar_lea.vmem %s3, %s431
        %p433 = pneg %p138
        %p434 = pneg %p135
        %p435 = scmp.lt.s32.totalorder %s27, 3
        %s436 = scalar_select %p435, %s27, 3
        %s437 = smul.addr %s436, 64
        %s438 = smul.addr %s437, 4
        %s439 = scalar_lea.vmem %s4, %s438
        %p440 = pneg %p164
        %p441 = pneg %p161
        %p442 = scmp.lt.s32.totalorder %s27, 3
        %s443 = scalar_select %p442, %s27, 3
        %s444 = smul.addr %s443, 64
        %s445 = smul.addr %s444, 4
        %s446 = scalar_lea.vmem %s5, %s445
        %p447 = pneg %p190
        %p448 = pneg %p187
        %p449 = scmp.lt.s32.totalorder %s27, 3
        %s450 = scalar_select %p449, %s27, 3
        %s451 = smul.addr %s450, 16
        %s452 = smul.addr %s451, 4
        %s453 = scalar_lea.vmem %s6, %s452
        %p454 = pneg %p216
        %p455 = pneg %p213
        %p456 = scmp.lt.s32.totalorder %s27, 3
        %s457 = scalar_select %p456, %s27, 3
        %s458 = scalar_lea.vmem %s7, %s457
        %p459 = pneg %p242
        %p460 = pneg %p239
        %p461 = scmp.lt.s32.totalorder %s27, 3
        %s462 = scalar_select %p461, %s27, 3
        %s463 = scalar_lea.vmem %s8, %s462
        %p464 = pneg %p268
        %p465 = pneg %p265
        %p466 = pneg %p294
        %p467 = pneg %p291
        %s468 = sand.u32 %s281, 1
        %s469 = scalar_lea.sflag [#allocation4], %s468
        %s470 = sand.u32 %s281, 1
        %s471 = scalar_lea.vmem [#allocation3], %s470
        %s472 = smul.u32 4, %s27
        %p473 = scmp.lt.s32.totalorder %s472, 15
        %s474 = scalar_select %p473, %s472, 15
        %s475 = smul.addr %s474, 8
        %s476 = scalar_lea.vmem %s0, %s475
        %s477 = smul.u32 4, %s27
        %p478 = scmp.lt.s32.totalorder %s28, 3
        %s479 = scalar_select %p478, %s28, 3
        %s480 = smul.addr %s479, 16
        %s481 = smul.addr %s480, 4
        %s482 = scalar_lea.vmem %s1, %s481
        %s483 = smul.u32 64, %s27
        %p484 = scmp.lt.s32.totalorder %s28, 3
        %s485 = scalar_select %p484, %s28, 3
        %p486 = scmp.lt.s32.totalorder %s483, 255
        %s487 = scalar_select %p486, %s483, 255
        %s488 = smul.addr %s485, 256
        %s489 = sadd.s32 %s487, %s488
        %s490 = smul.addr %s489, 4
        %s491 = scalar_lea.vmem %s2, %s490
        %s492 = smul.u32 64, %s27
        %s493 = smul.u32 64, %s27
        %p494 = scmp.lt.s32.totalorder %s28, 3
        %s495 = scalar_select %p494, %s28, 3
        %p496 = scmp.lt.s32.totalorder %s493, 255
        %s497 = scalar_select %p496, %s493, 255
        %s498 = smul.addr %s495, 256
        %s499 = sadd.s32 %s497, %s498
        %s500 = smul.addr %s499, 4
        %s501 = scalar_lea.vmem %s3, %s500
        %s502 = smul.u32 64, %s27
        %p503 = scmp.lt.s32.totalorder %s27, 3
        %s504 = scalar_select %p503, %s27, 3
        %s505 = smul.addr %s504, 64
        %s506 = smul.addr %s505, 4
        %s507 = scalar_lea.vmem %s4, %s506
        %p508 = scmp.lt.s32.totalorder %s27, 3
        %s509 = scalar_select %p508, %s27, 3
        %s510 = smul.addr %s509, 64
        %s511 = smul.addr %s510, 4
        %s512 = scalar_lea.vmem %s5, %s511
        %p513 = scmp.lt.s32.totalorder %s27, 3
        %s514 = scalar_select %p513, %s27, 3
        %s515 = smul.addr %s514, 16
        %s516 = smul.addr %s515, 4
        %s517 = scalar_lea.vmem %s6, %s516
        %p518 = scmp.lt.s32.totalorder %s27, 3
        %s519 = scalar_select %p518, %s27, 3
        %s520 = scalar_lea.vmem %s7, %s519
        %p521 = scmp.lt.s32.totalorder %s27, 3
        %s522 = scalar_select %p521, %s27, 3
        %s523 = scalar_lea.vmem %s8, %s522
        %p525 = scmp.eq.s32.totalorder %s28, 0
        // Predicated region
        $region57: #{tpu_custom_call.1} parent=55 // pred_check
          %p526 = pneg %p525
        $region58: #{tpu_custom_call.1} parent=55 // pred_check_branch
          %528 = sbr.rel (%p526) target = $region60
        $region59: #{tpu_custom_call.1} parent=55 // pred_region
          %v529 = vld [vmem:[%s476] sm:$0xff]
          %v530 = vld [vmem:[%s476 + $0x8] sm:$0xff]
          %v531 = vld [vmem:[%s476 + $0x10] sm:$0xff]
          %v532 = vld [vmem:[%s476 + $0x18] sm:$0xff]
          %vm533 = vcmask 523264
          %534 = vst.msk [vmem:[#allocation2] sm:$0xff] %vm533, %v529
          %535 = vst.msk [vmem:[#allocation2 + $0x8] sm:$0xff] %vm533, %v530
          %536 = vst.msk [vmem:[#allocation2 + $0x10] sm:$0xff] %vm533, %v531
          %537 = vst.msk [vmem:[#allocation2 + $0x18] sm:$0xff] %vm533, %v532
        $region60: #{tpu_custom_call.1} parent=55 // pred_fallthru
          _
        %v538 = vld [vmem:[#allocation2] sm:$0xff]
        %v539 = vld [vmem:[#allocation2 + $0x8] sm:$0xff]
        %v540 = vld [vmem:[#allocation2 + $0x10] sm:$0xff]
        %v541 = vld [vmem:[#allocation2 + $0x18] sm:$0xff]
        %v542 = vld [vmem:[%s482] sm:$0xff]
        %v543 = vld [vmem:[%s482 + $0x8] sm:$0xff]
        %v544 = vld [vmem:[%s482 + $0x10] sm:$0xff]
        %v545 = vld [vmem:[%s482 + $0x18] sm:$0xff]
        %v546 = vld [vmem:[%s482 + $0x20] sm:$0xff]
        %v547 = vld [vmem:[%s482 + $0x28] sm:$0xff]
        %v548 = vld [vmem:[%s482 + $0x30] sm:$0xff]
        %v549 = vld [vmem:[%s482 + $0x38] sm:$0xff]
        %v550 = vpack.c.bf16 %v539, %v538
        %v551 = vpack.c.bf16 %v541, %v540
        %v560 = vunpack.c.l.b16 %v542
        %v561 = vunpack.c.h.b16 %v542
        %v562 = vunpack.c.l.b16 %v543
        %v563 = vunpack.c.h.b16 %v543
        %v564 = vunpack.c.l.b16 %v544
        %v565 = vunpack.c.h.b16 %v544
        %v566 = vunpack.c.l.b16 %v545
        %v567 = vunpack.c.h.b16 %v545
        %v568 = vunpack.c.l.b16 %v546
        %v569 = vunpack.c.h.b16 %v546
        %v570 = vunpack.c.l.b16 %v547
        %v571 = vunpack.c.h.b16 %v547
        %v572 = vunpack.c.l.b16 %v548
        %v573 = vunpack.c.h.b16 %v548
        %v574 = vunpack.c.l.b16 %v549
        %v575 = vunpack.c.h.b16 %v549
        %v576 = vpack.c.b16 %v562, %v560
        %v577 = vpack.c.b16 %v563, %v561
        %v578 = vpack.c.b16 %v566, %v564
        %v579 = vpack.c.b16 %v567, %v565
        %v580 = vpack.c.b16 %v570, %v568
        %v581 = vpack.c.b16 %v571, %v569
        %v582 = vpack.c.b16 %v574, %v572
        %v583 = vpack.c.b16 %v575, %v573
        %vm592 = vcmask 523264
        %v594 = vsel %vm592, %v550, 0
        %v597 = vsel %vm592, %v551, 0
        %599 = vmatprep.subr.bf16.mxu0 %v577
        %600 = vmatpush1.bf16.msra.mxu0 %v576
        %601 = vmatprep.subr.bf16.mxu0 %v579
        %602 = vmatpush1.bf16.msra.mxu0 %v578
        %603 = vmatprep.subr.bf16.mxu0 %v581
        %604 = vmatpush1.bf16.msra.mxu0 %v580
        %605 = vmatprep.subr.bf16.mxu0 %v583
        %606 = vmatpush1.bf16.msra.mxu0 %v582
        %607 = vmatprep.subr.bf16.mxu0 0
        %608 = vmatpush1.bf16.msra.mxu0 0
        %609 = vmatprep.subr.bf16.mxu0 0
        %610 = vmatpush1.bf16.msra.mxu0 0
        %611 = vmatprep.subr.bf16.mxu0 0
        %612 = vmatpush1.bf16.msra.mxu0 0
        %613 = vmatprep.subr.bf16.mxu0 0
        %614 = vmatpush1.bf16.msra.mxu0 0
        %615 = vmatprep.subr.bf16.mxu0 0
        %616 = vmatpush1.bf16.msra.mxu0 0
        %617 = vmatprep.subr.bf16.mxu0 0
        %618 = vmatpush1.bf16.msra.mxu0 0
        %619 = vmatprep.subr.bf16.mxu0 0
        %620 = vmatpush1.bf16.msra.mxu0 0
        %621 = vmatprep.subr.bf16.mxu0 0
        %622 = vmatpush1.bf16.msra.mxu0 0
        %623 = vmatprep.subr.bf16.mxu0 0
        %624 = vmatpush1.bf16.msra.mxu0 0
        %625 = vmatprep.subr.bf16.mxu0 0
        %626 = vmatpush1.bf16.msra.mxu0 0
        %627 = vmatprep.subr.bf16.mxu0 0
        %628 = vmatpush1.bf16.msra.mxu0 0
        %629 = vmatprep.subr.bf16.mxu0 0
        %630 = vmatpush1.bf16.msra.mxu0 0
        %631 = vmatprep.mubr.bf16.mxu0 0
        %632 = vmatmul.mubr.bf16.gmra.mrb[0].mxu0 %v594
        %v633 = vpop.f32.mrb[0].mxu0
        %v634 = vadd.f32 0.0, %v633
        %v635 = vpop.f32.mrb[0].mxu0
        %v636 = vadd.f32 0.0, %v635
        %v637 = vpop.f32.mrb[0].mxu0
        %v638 = vadd.f32 0.0, %v637
        %v639 = vpop.f32.mrb[0].mxu0
        %v640 = vadd.f32 0.0, %v639
        %641 = vmatprep.mubr.bf16.mxu0 0
        %642 = vmatmul.mubr.bf16.gmra.mrb[0].mxu0 %v597
        %v643 = vpop.f32.mrb[0].mxu0
        %v644 = vadd.f32 0.0, %v643
        %v645 = vpop.f32.mrb[0].mxu0
        %v646 = vadd.f32 0.0, %v645
        %v647 = vpop.f32.mrb[0].mxu0
        %v648 = vadd.f32 0.0, %v647
        %v649 = vpop.f32.mrb[0].mxu0
        %v650 = vadd.f32 0.0, %v649
        %651 = vdwg.mxu0
        %v652 = vpack.c.bf16 %v638, %v634
        %v653 = vpack.c.bf16 %v640, %v636
        %v654 = vpack.c.bf16 %v648, %v644
        %v655 = vpack.c.bf16 %v650, %v646
        %v656 = vld [vmem:[%s507] sm:$0xf]
        %v657 = vld [vmem:[%s507 + $0x4] sm:$0xf]
        %v658 = vld [vmem:[%s507 + $0x8] sm:$0xf]
        %v659 = vld [vmem:[%s507 + $0xc] sm:$0xf]
        %v660 = vld [vmem:[%s507 + $0x10] sm:$0xf]
        %v661 = vld [vmem:[%s507 + $0x14] sm:$0xf]
        %v662 = vld [vmem:[%s507 + $0x18] sm:$0xf]
        %v663 = vld [vmem:[%s507 + $0x1c] sm:$0xf]
        %v664 = vld [vmem:[%s507 + $0x20] sm:$0xf]
        %v665 = vld [vmem:[%s507 + $0x24] sm:$0xf]
        %v666 = vld [vmem:[%s507 + $0x28] sm:$0xf]
        %v667 = vld [vmem:[%s507 + $0x2c] sm:$0xf]
        %v668 = vld [vmem:[%s507 + $0x30] sm:$0xf]
        %v669 = vld [vmem:[%s507 + $0x34] sm:$0xf]
        %v670 = vld [vmem:[%s507 + $0x38] sm:$0xf]
        %v671 = vld [vmem:[%s507 + $0x3c] sm:$0xf]
        %v672 = vld [vmem:[%s507 + $0x40] sm:$0xf]
        %v673 = vld [vmem:[%s507 + $0x44] sm:$0xf]
        %v674 = vld [vmem:[%s507 + $0x48] sm:$0xf]
        %v675 = vld [vmem:[%s507 + $0x4c] sm:$0xf]
        %v676 = vld [vmem:[%s507 + $0x50] sm:$0xf]
        %v677 = vld [vmem:[%s507 + $0x54] sm:$0xf]
        %v678 = vld [vmem:[%s507 + $0x58] sm:$0xf]
        %v679 = vld [vmem:[%s507 + $0x5c] sm:$0xf]
        %v680 = vld [vmem:[%s507 + $0x60] sm:$0xf]
        %v681 = vld [vmem:[%s507 + $0x64] sm:$0xf]
        %v682 = vld [vmem:[%s507 + $0x68] sm:$0xf]
        %v683 = vld [vmem:[%s507 + $0x6c] sm:$0xf]
        %v684 = vld [vmem:[%s507 + $0x70] sm:$0xf]
        %v685 = vld [vmem:[%s507 + $0x74] sm:$0xf]
        %v686 = vld [vmem:[%s507 + $0x78] sm:$0xf]
        %v687 = vld [vmem:[%s507 + $0x7c] sm:$0xf]
        %v688 = vld [vmem:[%s507 + $0x80] sm:$0xf]
        %v689 = vld [vmem:[%s507 + $0x84] sm:$0xf]
        %v690 = vld [vmem:[%s507 + $0x88] sm:$0xf]
        %v691 = vld [vmem:[%s507 + $0x8c] sm:$0xf]
        %v692 = vld [vmem:[%s507 + $0x90] sm:$0xf]
        %v693 = vld [vmem:[%s507 + $0x94] sm:$0xf]
        %v694 = vld [vmem:[%s507 + $0x98] sm:$0xf]
        %v695 = vld [vmem:[%s507 + $0x9c] sm:$0xf]
        %v696 = vld [vmem:[%s507 + $0xa0] sm:$0xf]
        %v697 = vld [vmem:[%s507 + $0xa4] sm:$0xf]
        %v698 = vld [vmem:[%s507 + $0xa8] sm:$0xf]
        %v699 = vld [vmem:[%s507 + $0xac] sm:$0xf]
        %v700 = vld [vmem:[%s507 + $0xb0] sm:$0xf]
        %v701 = vld [vmem:[%s507 + $0xb4] sm:$0xf]
        %v702 = vld [vmem:[%s507 + $0xb8] sm:$0xf]
        %v703 = vld [vmem:[%s507 + $0xbc] sm:$0xf]
        %v704 = vld [vmem:[%s507 + $0xc0] sm:$0xf]
        %v705 = vld [vmem:[%s507 + $0xc4] sm:$0xf]
        %v706 = vld [vmem:[%s507 + $0xc8] sm:$0xf]
        %v707 = vld [vmem:[%s507 + $0xcc] sm:$0xf]
        %v708 = vld [vmem:[%s507 + $0xd0] sm:$0xf]
        %v709 = vld [vmem:[%s507 + $0xd4] sm:$0xf]
        %v710 = vld [vmem:[%s507 + $0xd8] sm:$0xf]
        %v711 = vld [vmem:[%s507 + $0xdc] sm:$0xf]
        %v712 = vld [vmem:[%s507 + $0xe0] sm:$0xf]
        %v713 = vld [vmem:[%s507 + $0xe4] sm:$0xf]
        %v714 = vld [vmem:[%s507 + $0xe8] sm:$0xf]
        %v715 = vld [vmem:[%s507 + $0xec] sm:$0xf]
        %v716 = vld [vmem:[%s507 + $0xf0] sm:$0xf]
        %v717 = vld [vmem:[%s507 + $0xf4] sm:$0xf]
        %v718 = vld [vmem:[%s507 + $0xf8] sm:$0xf]
        %v719 = vld [vmem:[%s507 + $0xfc] sm:$0xf]
        %v720 = vld [vmem:[%s512] sm:$0xf]
        %v721 = vld [vmem:[%s512 + $0x4] sm:$0xf]
        %v722 = vld [vmem:[%s512 + $0x8] sm:$0xf]
        %v723 = vld [vmem:[%s512 + $0xc] sm:$0xf]
        %v724 = vld [vmem:[%s512 + $0x10] sm:$0xf]
        %v725 = vld [vmem:[%s512 + $0x14] sm:$0xf]
        %v726 = vld [vmem:[%s512 + $0x18] sm:$0xf]
        %v727 = vld [vmem:[%s512 + $0x1c] sm:$0xf]
        %v728 = vld [vmem:[%s512 + $0x20] sm:$0xf]
        %v729 = vld [vmem:[%s512 + $0x24] sm:$0xf]
        %v730 = vld [vmem:[%s512 + $0x28] sm:$0xf]
        %v731 = vld [vmem:[%s512 + $0x2c] sm:$0xf]
        %v732 = vld [vmem:[%s512 + $0x30] sm:$0xf]
        %v733 = vld [vmem:[%s512 + $0x34] sm:$0xf]
        %v734 = vld [vmem:[%s512 + $0x38] sm:$0xf]
        %v735 = vld [vmem:[%s512 + $0x3c] sm:$0xf]
        %v736 = vld [vmem:[%s512 + $0x40] sm:$0xf]
        %v737 = vld [vmem:[%s512 + $0x44] sm:$0xf]
        %v738 = vld [vmem:[%s512 + $0x48] sm:$0xf]
        %v739 = vld [vmem:[%s512 + $0x4c] sm:$0xf]
        %v740 = vld [vmem:[%s512 + $0x50] sm:$0xf]
        %v741 = vld [vmem:[%s512 + $0x54] sm:$0xf]
        %v742 = vld [vmem:[%s512 + $0x58] sm:$0xf]
        %v743 = vld [vmem:[%s512 + $0x5c] sm:$0xf]
        %v744 = vld [vmem:[%s512 + $0x60] sm:$0xf]
        %v745 = vld [vmem:[%s512 + $0x64] sm:$0xf]
        %v746 = vld [vmem:[%s512 + $0x68] sm:$0xf]
        %v747 = vld [vmem:[%s512 + $0x6c] sm:$0xf]
        %v748 = vld [vmem:[%s512 + $0x70] sm:$0xf]
        %v749 = vld [vmem:[%s512 + $0x74] sm:$0xf]
        %v750 = vld [vmem:[%s512 + $0x78] sm:$0xf]
        %v751 = vld [vmem:[%s512 + $0x7c] sm:$0xf]
        %v752 = vld [vmem:[%s512 + $0x80] sm:$0xf]
        %v753 = vld [vmem:[%s512 + $0x84] sm:$0xf]
        %v754 = vld [vmem:[%s512 + $0x88] sm:$0xf]
        %v755 = vld [vmem:[%s512 + $0x8c] sm:$0xf]
        %v756 = vld [vmem:[%s512 + $0x90] sm:$0xf]
        %v757 = vld [vmem:[%s512 + $0x94] sm:$0xf]
        %v758 = vld [vmem:[%s512 + $0x98] sm:$0xf]
        %v759 = vld [vmem:[%s512 + $0x9c] sm:$0xf]
        %v760 = vld [vmem:[%s512 + $0xa0] sm:$0xf]
        %v761 = vld [vmem:[%s512 + $0xa4] sm:$0xf]
        %v762 = vld [vmem:[%s512 + $0xa8] sm:$0xf]
        %v763 = vld [vmem:[%s512 + $0xac] sm:$0xf]
        %v764 = vld [vmem:[%s512 + $0xb0] sm:$0xf]
        %v765 = vld [vmem:[%s512 + $0xb4] sm:$0xf]
        %v766 = vld [vmem:[%s512 + $0xb8] sm:$0xf]
        %v767 = vld [vmem:[%s512 + $0xbc] sm:$0xf]
        %v768 = vld [vmem:[%s512 + $0xc0] sm:$0xf]
        %v769 = vld [vmem:[%s512 + $0xc4] sm:$0xf]
        %v770 = vld [vmem:[%s512 + $0xc8] sm:$0xf]
        %v771 = vld [vmem:[%s512 + $0xcc] sm:$0xf]
        %v772 = vld [vmem:[%s512 + $0xd0] sm:$0xf]
        %v773 = vld [vmem:[%s512 + $0xd4] sm:$0xf]
        %v774 = vld [vmem:[%s512 + $0xd8] sm:$0xf]
        %v775 = vld [vmem:[%s512 + $0xdc] sm:$0xf]
        %v776 = vld [vmem:[%s512 + $0xe0] sm:$0xf]
        %v777 = vld [vmem:[%s512 + $0xe4] sm:$0xf]
        %v778 = vld [vmem:[%s512 + $0xe8] sm:$0xf]
        %v779 = vld [vmem:[%s512 + $0xec] sm:$0xf]
        %v780 = vld [vmem:[%s512 + $0xf0] sm:$0xf]
        %v781 = vld [vmem:[%s512 + $0xf4] sm:$0xf]
        %v782 = vld [vmem:[%s512 + $0xf8] sm:$0xf]
        %v783 = vld [vmem:[%s512 + $0xfc] sm:$0xf]
        %v784 = vld [vmem:[%s517] sm:$0xff]
        %v785 = vld [vmem:[%s517 + $0x8] sm:$0xff]
        %v786 = vld [vmem:[%s517 + $0x10] sm:$0xff]
        %v787 = vld [vmem:[%s517 + $0x18] sm:$0xff]
        %v788 = vld [vmem:[%s517 + $0x20] sm:$0xff]
        %v789 = vld [vmem:[%s517 + $0x28] sm:$0xff]
        %v790 = vld [vmem:[%s517 + $0x30] sm:$0xff]
        %v791 = vld [vmem:[%s517 + $0x38] sm:$0xff]
        %v856 = vunpack.c.l.b16 %v720
        %v857 = vunpack.c.l.b16 %v721
        %v858 = vunpack.c.l.b16 %v722
        %v859 = vunpack.c.l.b16 %v723
        %v860 = vunpack.c.l.b16 %v724
        %v861 = vunpack.c.l.b16 %v725
        %v862 = vunpack.c.l.b16 %v726
        %v863 = vunpack.c.l.b16 %v727
        %v864 = vunpack.c.l.b16 %v728
        %v865 = vunpack.c.l.b16 %v729
        %v866 = vunpack.c.l.b16 %v730
        %v867 = vunpack.c.l.b16 %v731
        %v868 = vunpack.c.l.b16 %v732
        %v869 = vunpack.c.l.b16 %v733
        %v870 = vunpack.c.l.b16 %v734
        %v871 = vunpack.c.l.b16 %v735
        %v872 = vunpack.c.l.b16 %v736
        %v873 = vunpack.c.l.b16 %v737
        %v874 = vunpack.c.l.b16 %v738
        %v875 = vunpack.c.l.b16 %v739
        %v876 = vunpack.c.l.b16 %v740
        %v877 = vunpack.c.l.b16 %v741
        %v878 = vunpack.c.l.b16 %v742
        %v879 = vunpack.c.l.b16 %v743
        %v880 = vunpack.c.l.b16 %v744
        %v881 = vunpack.c.l.b16 %v745
        %v882 = vunpack.c.l.b16 %v746
        %v883 = vunpack.c.l.b16 %v747
        %v884 = vunpack.c.l.b16 %v748
        %v885 = vunpack.c.l.b16 %v749
        %v886 = vunpack.c.l.b16 %v750
        %v887 = vunpack.c.l.b16 %v751
        %v888 = vunpack.c.l.b16 %v752
        %v889 = vunpack.c.l.b16 %v753
        %v890 = vunpack.c.l.b16 %v754
        %v891 = vunpack.c.l.b16 %v755
        %v892 = vunpack.c.l.b16 %v756
        %v893 = vunpack.c.l.b16 %v757
        %v894 = vunpack.c.l.b16 %v758
        %v895 = vunpack.c.l.b16 %v759
        %v896 = vunpack.c.l.b16 %v760
        %v897 = vunpack.c.l.b16 %v761
        %v898 = vunpack.c.l.b16 %v762
        %v899 = vunpack.c.l.b16 %v763
        %v900 = vunpack.c.l.b16 %v764
        %v901 = vunpack.c.l.b16 %v765
        %v902 = vunpack.c.l.b16 %v766
        %v903 = vunpack.c.l.b16 %v767
        %v904 = vunpack.c.l.b16 %v768
        %v905 = vunpack.c.l.b16 %v769
        %v906 = vunpack.c.l.b16 %v770
        %v907 = vunpack.c.l.b16 %v771
        %v908 = vunpack.c.l.b16 %v772
        %v909 = vunpack.c.l.b16 %v773
        %v910 = vunpack.c.l.b16 %v774
        %v911 = vunpack.c.l.b16 %v775
        %v912 = vunpack.c.l.b16 %v776
        %v913 = vunpack.c.l.b16 %v777
        %v914 = vunpack.c.l.b16 %v778
        %v915 = vunpack.c.l.b16 %v779
        %v916 = vunpack.c.l.b16 %v780
        %v917 = vunpack.c.l.b16 %v781
        %v918 = vunpack.c.l.b16 %v782
        %v919 = vunpack.c.l.b16 %v783
        %v920 = vpack.c.b16 %v857, %v856
        %v921 = vpack.c.b16 %v859, %v858
        %v922 = vpack.c.b16 %v861, %v860
        %v923 = vpack.c.b16 %v863, %v862
        %v924 = vpack.c.b16 %v865, %v864
        %v925 = vpack.c.b16 %v867, %v866
        %v926 = vpack.c.b16 %v869, %v868
        %v927 = vpack.c.b16 %v871, %v870
        %v928 = vpack.c.b16 %v873, %v872
        %v929 = vpack.c.b16 %v875, %v874
        %v930 = vpack.c.b16 %v877, %v876
        %v931 = vpack.c.b16 %v879, %v878
        %v932 = vpack.c.b16 %v881, %v880
        %v933 = vpack.c.b16 %v883, %v882
        %v934 = vpack.c.b16 %v885, %v884
        %v935 = vpack.c.b16 %v887, %v886
        %v936 = vpack.c.b16 %v889, %v888
        %v937 = vpack.c.b16 %v891, %v890
        %v938 = vpack.c.b16 %v893, %v892
        %v939 = vpack.c.b16 %v895, %v894
        %v940 = vpack.c.b16 %v897, %v896
        %v941 = vpack.c.b16 %v899, %v898
        %v942 = vpack.c.b16 %v901, %v900
        %v943 = vpack.c.b16 %v903, %v902
        %v944 = vpack.c.b16 %v905, %v904
        %v945 = vpack.c.b16 %v907, %v906
        %v946 = vpack.c.b16 %v909, %v908
        %v947 = vpack.c.b16 %v911, %v910
        %v948 = vpack.c.b16 %v913, %v912
        %v949 = vpack.c.b16 %v915, %v914
        %v950 = vpack.c.b16 %v917, %v916
        %v951 = vpack.c.b16 %v919, %v918
        %vm952 = vcmask 261120
        %v954 = vsel %vm952, %v920, 0
        %v957 = vsel %vm952, %v921, 0
        %v960 = vsel %vm952, %v922, 0
        %v963 = vsel %vm952, %v923, 0
        %v966 = vsel %vm952, %v924, 0
        %v969 = vsel %vm952, %v925, 0
        %v972 = vsel %vm952, %v926, 0
        %v975 = vsel %vm952, %v927, 0
        %v978 = vsel %vm952, %v928, 0
        %v981 = vsel %vm952, %v929, 0
        %v984 = vsel %vm952, %v930, 0
        %v987 = vsel %vm952, %v931, 0
        %v990 = vsel %vm952, %v932, 0
        %v993 = vsel %vm952, %v933, 0
        %v996 = vsel %vm952, %v934, 0
        %v999 = vsel %vm952, %v935, 0
        %v1002 = vsel %vm952, %v936, 0
        %v1005 = vsel %vm952, %v937, 0
        %v1008 = vsel %vm952, %v938, 0
        %v1011 = vsel %vm952, %v939, 0
        %v1014 = vsel %vm952, %v940, 0
        %v1017 = vsel %vm952, %v941, 0
        %v1020 = vsel %vm952, %v942, 0
        %v1023 = vsel %vm952, %v943, 0
        %v1026 = vsel %vm952, %v944, 0
        %v1029 = vsel %vm952, %v945, 0
        %v1032 = vsel %vm952, %v946, 0
        %v1035 = vsel %vm952, %v947, 0
        %v1038 = vsel %vm952, %v948, 0
        %v1041 = vsel %vm952, %v949, 0
        %v1044 = vsel %vm952, %v950, 0
        %v1047 = vsel %vm952, %v951, 0
        %1049 = vmatprep.subr.bf16.mxu0 0
        %1050 = vmatpush1.bf16.msra.mxu0 %v653
        %1051 = vmatprep.subr.bf16.mxu0 0
        %1052 = vmatpush1.bf16.msra.mxu0 %v655
        %1053 = vmatprep.subr.bf16.mxu0 0
        %1054 = vmatpush1.bf16.msra.mxu0 0
        %1055 = vmatprep.subr.bf16.mxu0 0
        %1056 = vmatpush1.bf16.msra.mxu0 0
        %1057 = vmatprep.subr.bf16.mxu0 0
        %1058 = vmatpush1.bf16.msra.mxu0 0
        %1059 = vmatprep.subr.bf16.mxu0 0
        %1060 = vmatpush1.bf16.msra.mxu0 0
        %1061 = vmatprep.subr.bf16.mxu0 0
        %1062 = vmatpush1.bf16.msra.mxu0 0
        %1063 = vmatprep.subr.bf16.mxu0 0
        %1064 = vmatpush1.bf16.msra.mxu0 0
        %1065 = vmatprep.subr.bf16.mxu0 0
        %1066 = vmatpush1.bf16.msra.mxu0 0
        %1067 = vmatprep.subr.bf16.mxu0 0
        %1068 = vmatpush1.bf16.msra.mxu0 0
        %1069 = vmatprep.subr.bf16.mxu0 0
        %1070 = vmatpush1.bf16.msra.mxu0 0
        %1071 = vmatprep.subr.bf16.mxu0 0
        %1072 = vmatpush1.bf16.msra.mxu0 0
        %1073 = vmatprep.subr.bf16.mxu0 0
        %1074 = vmatpush1.bf16.msra.mxu0 0
        %1075 = vmatprep.subr.bf16.mxu0 0
        %1076 = vmatpush1.bf16.msra.mxu0 0
        %1077 = vmatprep.subr.bf16.mxu0 0
        %1078 = vmatpush1.bf16.msra.mxu0 0
        %1079 = vmatprep.subr.bf16.mxu0 0
        %1080 = vmatpush1.bf16.msra.mxu0 0
        %1081 = vmatprep.mubr.bf16.mxu0 0
        %1082 = vmatmul.mubr.bf16.gmra.mrb[0].mxu0 %v954
        %v1083 = vpop.f32.mrb[0].mxu0
        %v1084 = vadd.f32 0.0, %v1083
        %v1085 = vpop.f32.mrb[0].mxu0
        %v1086 = vpop.f32.mrb[0].mxu0
        %v1087 = vadd.f32 0.0, %v1086
        %v1088 = vpop.f32.mrb[0].mxu0
        %1089 = vmatprep.mubr.bf16.mxu0 0
        %1090 = vmatmul.mubr.bf16.gmra.mrb[0].mxu0 %v957
        %v1091 = vpop.f32.mrb[0].mxu0
        %v1092 = vadd.f32 0.0, %v1091
        %v1093 = vpop.f32.mrb[0].mxu0
        %v1094 = vpop.f32.mrb[0].mxu0
        %v1095 = vadd.f32 0.0, %v1094
        %v1096 = vpop.f32.mrb[0].mxu0
        %1097 = vmatprep.mubr.bf16.mxu0 0
        %1098 = vmatmul.mubr.bf16.gmra.mrb[0].mxu0 %v960
        %v1099 = vpop.f32.mrb[0].mxu0
        %v1100 = vadd.f32 0.0, %v1099
        %v1101 = vpop.f32.mrb[0].mxu0
        %v1102 = vpop.f32.mrb[0].mxu0
        %v1103 = vadd.f32 0.0, %v1102
        %v1104 = vpop.f32.mrb[0].mxu0
        %1105 = vmatprep.mubr.bf16.mxu0 0
        %1106 = vmatmul.mubr.bf16.gmra.mrb[0].mxu0 %v963
        %v1107 = vpop.f32.mrb[0].mxu0
        %v1108 = vadd.f32 0.0, %v1107
        %v1109 = vpop.f32.mrb[0].mxu0
        %v1110 = vpop.f32.mrb[0].mxu0
        %v1111 = vadd.f32 0.0, %v1110
        %v1112 = vpop.f32.mrb[0].mxu0
        %1113 = vmatprep.mubr.bf16.mxu0 0
        %1114 = vmatmul.mubr.bf16.gmra.mrb[0].mxu0 %v966
        %v1115 = vpop.f32.mrb[0].mxu0
        %v1116 = vadd.f32 0.0, %v1115
        %v1117 = vpop.f32.mrb[0].mxu0
        %v1118 = vpop.f32.mrb[0].mxu0
        %v1119 = vadd.f32 0.0, %v1118
        %v1120 = vpop.f32.mrb[0].mxu0
        %1121 = vmatprep.mubr.bf16.mxu0 0
        %1122 = vmatmul.mubr.bf16.gmra.mrb[0].mxu0 %v969
        %v1123 = vpop.f32.mrb[0].mxu0
        %v1124 = vadd.f32 0.0, %v1123
        %v1125 = vpop.f32.mrb[0].mxu0
        %v1126 = vpop.f32.mrb[0].mxu0
        %v1127 = vadd.f32 0.0, %v1126
        %v1128 = vpop.f32.mrb[0].mxu0
        %1129 = vmatprep.mubr.bf16.mxu0 0
        %1130 = vmatmul.mubr.bf16.gmra.mrb[0].mxu0 %v972
        %v1131 = vpop.f32.mrb[0].mxu0
        %v1132 = vadd.f32 0.0, %v1131
        %v1133 = vpop.f32.mrb[0].mxu0
        %v1134 = vpop.f32.mrb[0].mxu0
        %v1135 = vadd.f32 0.0, %v1134
        %v1136 = vpop.f32.mrb[0].mxu0
        %1137 = vmatprep.mubr.bf16.mxu0 0
        %1138 = vmatmul.mubr.bf16.gmra.mrb[0].mxu0 %v975
        %v1139 = vpop.f32.mrb[0].mxu0
        %v1140 = vadd.f32 0.0, %v1139
        %v1141 = vpop.f32.mrb[0].mxu0
        %v1142 = vpop.f32.mrb[0].mxu0
        %v1143 = vadd.f32 0.0, %v1142
        %v1144 = vpop.f32.mrb[0].mxu0
        %1145 = vmatprep.mubr.bf16.mxu0 0
        %1146 = vmatmul.mubr.bf16.gmra.mrb[0].mxu0 %v978
        %v1147 = vpop.f32.mrb[0].mxu0
        %v1148 = vadd.f32 0.0, %v1147
        %v1149 = vpop.f32.mrb[0].mxu0
        %v1150 = vpop.f32.mrb[0].mxu0
        %v1151 = vadd.f32 0.0, %v1150
        %v1152 = vpop.f32.mrb[0].mxu0
        %1153 = vmatprep.mubr.bf16.mxu0 0
        %1154 = vmatmul.mubr.bf16.gmra.mrb[0].mxu0 %v981
        %v1155 = vpop.f32.mrb[0].mxu0
        %v1156 = vadd.f32 0.0, %v1155
        %v1157 = vpop.f32.mrb[0].mxu0
        %v1158 = vpop.f32.mrb[0].mxu0
        %v1159 = vadd.f32 0.0, %v1158
        %v1160 = vpop.f32.mrb[0].mxu0
        %1161 = vmatprep.mubr.bf16.mxu0 0
        %1162 = vmatmul.mubr.bf16.gmra.mrb[0].mxu0 %v984
        %v1163 = vpop.f32.mrb[0].mxu0
        %v1164 = vadd.f32 0.0, %v1163
        %v1165 = vpop.f32.mrb[0].mxu0
        %v1166 = vpop.f32.mrb[0].mxu0
        %v1167 = vadd.f32 0.0, %v1166
        %v1168 = vpop.f32.mrb[0].mxu0
        %1169 = vmatprep.mubr.bf16.mxu0 0
        %1170 = vmatmul.mubr.bf16.gmra.mrb[0].mxu0 %v987
        %v1171 = vpop.f32.mrb[0].mxu0
        %v1172 = vadd.f32 0.0, %v1171
        %v1173 = vpop.f32.mrb[0].mxu0
        %v1174 = vpop.f32.mrb[0].mxu0
        %v1175 = vadd.f32 0.0, %v1174
        %v1176 = vpop.f32.mrb[0].mxu0
        %1177 = vmatprep.mubr.bf16.mxu0 0
        %1178 = vmatmul.mubr.bf16.gmra.mrb[0].mxu0 %v990
        %v1179 = vpop.f32.mrb[0].mxu0
        %v1180 = vadd.f32 0.0, %v1179
        %v1181 = vpop.f32.mrb[0].mxu0
        %v1182 = vpop.f32.mrb[0].mxu0
        %v1183 = vadd.f32 0.0, %v1182
        %v1184 = vpop.f32.mrb[0].mxu0
        %1185 = vmatprep.mubr.bf16.mxu0 0
        %1186 = vmatmul.mubr.bf16.gmra.mrb[0].mxu0 %v993
        %v1187 = vpop.f32.mrb[0].mxu0
        %v1188 = vadd.f32 0.0, %v1187
        %v1189 = vpop.f32.mrb[0].mxu0
        %v1190 = vpop.f32.mrb[0].mxu0
        %v1191 = vadd.f32 0.0, %v1190
        %v1192 = vpop.f32.mrb[0].mxu0
        %1193 = vmatprep.mubr.bf16.mxu0 0
        %1194 = vmatmul.mubr.bf16.gmra.mrb[0].mxu0 %v996
        %v1195 = vpop.f32.mrb[0].mxu0
        %v1196 = vadd.f32 0.0, %v1195
        %v1197 = vpop.f32.mrb[0].mxu0
        %v1198 = vpop.f32.mrb[0].mxu0
        %v1199 = vadd.f32 0.0, %v1198
        %v1200 = vpop.f32.mrb[0].mxu0
        %1201 = vmatprep.mubr.bf16.mxu0 0
        %1202 = vmatmul.mubr.bf16.gmra.mrb[0].mxu0 %v999
        %v1203 = vpop.f32.mrb[0].mxu0
        %v1204 = vadd.f32 0.0, %v1203
        %v1205 = vpop.f32.mrb[0].mxu0
        %v1206 = vpop.f32.mrb[0].mxu0
        %v1207 = vadd.f32 0.0, %v1206
        %v1208 = vpop.f32.mrb[0].mxu0
        %1209 = vmatprep.mubr.bf16.mxu0 0
        %1210 = vmatmul.mubr.bf16.gmra.mrb[0].mxu0 %v1002
        %v1211 = vpop.f32.mrb[0].mxu0
        %v1212 = vadd.f32 0.0, %v1211
        %v1213 = vpop.f32.mrb[0].mxu0
        %v1214 = vpop.f32.mrb[0].mxu0
        %v1215 = vadd.f32 0.0, %v1214
        %v1216 = vpop.f32.mrb[0].mxu0
        %1217 = vmatprep.mubr.bf16.mxu0 0
        %1218 = vmatmul.mubr.bf16.gmra.mrb[0].mxu0 %v1005
        %v1219 = vpop.f32.mrb[0].mxu0
        %v1220 = vadd.f32 0.0, %v1219
        %v1221 = vpop.f32.mrb[0].mxu0
        %v1222 = vpop.f32.mrb[0].mxu0
        %v1223 = vadd.f32 0.0, %v1222
        %v1224 = vpop.f32.mrb[0].mxu0
        %1225 = vmatprep.mubr.bf16.mxu0 0
        %1226 = vmatmul.mubr.bf16.gmra.mrb[0].mxu0 %v1008
        %v1227 = vpop.f32.mrb[0].mxu0
        %v1228 = vadd.f32 0.0, %v1227
        %v1229 = vpop.f32.mrb[0].mxu0
        %v1230 = vpop.f32.mrb[0].mxu0
        %v1231 = vadd.f32 0.0, %v1230
        %v1232 = vpop.f32.mrb[0].mxu0
        %1233 = vmatprep.mubr.bf16.mxu0 0
        %1234 = vmatmul.mubr.bf16.gmra.mrb[0].mxu0 %v1011
        %v1235 = vpop.f32.mrb[0].mxu0
        %v1236 = vadd.f32 0.0, %v1235
        %v1237 = vpop.f32.mrb[0].mxu0
        %v1238 = vpop.f32.mrb[0].mxu0
        %v1239 = vadd.f32 0.0, %v1238
        %v1240 = vpop.f32.mrb[0].mxu0
        %1241 = vmatprep.mubr.bf16.mxu0 0
        %1242 = vmatmul.mubr.bf16.gmra.mrb[0].mxu0 %v1014
        %v1243 = vpop.f32.mrb[0].mxu0
        %v1244 = vadd.f32 0.0, %v1243
        %v1245 = vpop.f32.mrb[0].mxu0
        %v1246 = vpop.f32.mrb[0].mxu0
        %v1247 = vadd.f32 0.0, %v1246
        %v1248 = vpop.f32.mrb[0].mxu0
        %1249 = vmatprep.mubr.bf16.mxu0 0
        %1250 = vmatmul.mubr.bf16.gmra.mrb[0].mxu0 %v1017
        %v1251 = vpop.f32.mrb[0].mxu0
        %v1252 = vadd.f32 0.0, %v1251
        %v1253 = vpop.f32.mrb[0].mxu0
        %v1254 = vpop.f32.mrb[0].mxu0
        %v1255 = vadd.f32 0.0, %v1254
        %v1256 = vpop.f32.mrb[0].mxu0
        %1257 = vmatprep.mubr.bf16.mxu0 0
        %1258 = vmatmul.mubr.bf16.gmra.mrb[0].mxu0 %v1020
        %v1259 = vpop.f32.mrb[0].mxu0
        %v1260 = vadd.f32 0.0, %v1259
        %v1261 = vpop.f32.mrb[0].mxu0
        %v1262 = vpop.f32.mrb[0].mxu0
        %v1263 = vadd.f32 0.0, %v1262
        %v1264 = vpop.f32.mrb[0].mxu0
        %1265 = vmatprep.mubr.bf16.mxu0 0
        %1266 = vmatmul.mubr.bf16.gmra.mrb[0].mxu0 %v1023
        %v1267 = vpop.f32.mrb[0].mxu0
        %v1268 = vadd.f32 0.0, %v1267
        %v1269 = vpop.f32.mrb[0].mxu0
        %v1270 = vpop.f32.mrb[0].mxu0
        %v1271 = vadd.f32 0.0, %v1270
        %v1272 = vpop.f32.mrb[0].mxu0
        %1273 = vmatprep.mubr.bf16.mxu0 0
        %1274 = vmatmul.mubr.bf16.gmra.mrb[0].mxu0 %v1026
        %v1275 = vpop.f32.mrb[0].mxu0
        %v1276 = vadd.f32 0.0, %v1275
        %v1277 = vpop.f32.mrb[0].mxu0
        %v1278 = vpop.f32.mrb[0].mxu0
        %v1279 = vadd.f32 0.0, %v1278
        %v1280 = vpop.f32.mrb[0].mxu0
        %1281 = vmatprep.mubr.bf16.mxu0 0
        %1282 = vmatmul.mubr.bf16.gmra.mrb[0].mxu0 %v1029
        %v1283 = vpop.f32.mrb[0].mxu0
        %v1284 = vadd.f32 0.0, %v1283
        %v1285 = vpop.f32.mrb[0].mxu0
        %v1286 = vpop.f32.mrb[0].mxu0
        %v1287 = vadd.f32 0.0, %v1286
        %v1288 = vpop.f32.mrb[0].mxu0
        %1289 = vmatprep.mubr.bf16.mxu0 0
        %1290 = vmatmul.mubr.bf16.gmra.mrb[0].mxu0 %v1032
        %v1291 = vpop.f32.mrb[0].mxu0
        %v1292 = vadd.f32 0.0, %v1291
        %v1293 = vpop.f32.mrb[0].mxu0
        %v1294 = vpop.f32.mrb[0].mxu0
        %v1295 = vadd.f32 0.0, %v1294
        %v1296 = vpop.f32.mrb[0].mxu0
        %1297 = vmatprep.mubr.bf16.mxu0 0
        %1298 = vmatmul.mubr.bf16.gmra.mrb[0].mxu0 %v1035
        %v1299 = vpop.f32.mrb[0].mxu0
        %v1300 = vadd.f32 0.0, %v1299
        %v1301 = vpop.f32.mrb[0].mxu0
        %v1302 = vpop.f32.mrb[0].mxu0
        %v1303 = vadd.f32 0.0, %v1302
        %v1304 = vpop.f32.mrb[0].mxu0
        %1305 = vmatprep.mubr.bf16.mxu0 0
        %1306 = vmatmul.mubr.bf16.gmra.mrb[0].mxu0 %v1038
        %v1307 = vpop.f32.mrb[0].mxu0
        %v1308 = vadd.f32 0.0, %v1307
        %v1309 = vpop.f32.mrb[0].mxu0
        %v1310 = vpop.f32.mrb[0].mxu0
        %v1311 = vadd.f32 0.0, %v1310
        %v1312 = vpop.f32.mrb[0].mxu0
        %1313 = vmatprep.mubr.bf16.mxu0 0
        %1314 = vmatmul.mubr.bf16.gmra.mrb[0].mxu0 %v1041
        %v1315 = vpop.f32.mrb[0].mxu0
        %v1316 = vadd.f32 0.0, %v1315
        %v1317 = vpop.f32.mrb[0].mxu0
        %v1318 = vpop.f32.mrb[0].mxu0
        %v1319 = vadd.f32 0.0, %v1318
        %v1320 = vpop.f32.mrb[0].mxu0
        %1321 = vmatprep.mubr.bf16.mxu0 0
        %1322 = vmatmul.mubr.bf16.gmra.mrb[0].mxu0 %v1044
        %v1323 = vpop.f32.mrb[0].mxu0
        %v1324 = vadd.f32 0.0, %v1323
        %v1325 = vpop.f32.mrb[0].mxu0
        %v1326 = vpop.f32.mrb[0].mxu0
        %v1327 = vadd.f32 0.0, %v1326
        %v1328 = vpop.f32.mrb[0].mxu0
        %1329 = vmatprep.mubr.bf16.mxu0 0
        %1330 = vmatmul.mubr.bf16.gmra.mrb[0].mxu0 %v1047
        %v1331 = vpop.f32.mrb[0].mxu0
        %v1332 = vadd.f32 0.0, %v1331
        %v1333 = vpop.f32.mrb[0].mxu0
        %v1334 = vpop.f32.mrb[0].mxu0
        %v1335 = vadd.f32 0.0, %v1334
        %v1336 = vpop.f32.mrb[0].mxu0
        %1337 = vdwg.mxu0
        %v1402 = vunpack.c.l.b16 %v656
        %v1403 = vunpack.c.l.b16 %v657
        %v1404 = vunpack.c.l.b16 %v658
        %v1405 = vunpack.c.l.b16 %v659
        %v1406 = vunpack.c.l.b16 %v660
        %v1407 = vunpack.c.l.b16 %v661
        %v1408 = vunpack.c.l.b16 %v662
        %v1409 = vunpack.c.l.b16 %v663
        %v1410 = vunpack.c.l.b16 %v664
        %v1411 = vunpack.c.l.b16 %v665
        %v1412 = vunpack.c.l.b16 %v666
        %v1413 = vunpack.c.l.b16 %v667
        %v1414 = vunpack.c.l.b16 %v668
        %v1415 = vunpack.c.l.b16 %v669
        %v1416 = vunpack.c.l.b16 %v670
        %v1417 = vunpack.c.l.b16 %v671
        %v1418 = vunpack.c.l.b16 %v672
        %v1419 = vunpack.c.l.b16 %v673
        %v1420 = vunpack.c.l.b16 %v674
        %v1421 = vunpack.c.l.b16 %v675
        %v1422 = vunpack.c.l.b16 %v676
        %v1423 = vunpack.c.l.b16 %v677
        %v1424 = vunpack.c.l.b16 %v678
        %v1425 = vunpack.c.l.b16 %v679
        %v1426 = vunpack.c.l.b16 %v680
        %v1427 = vunpack.c.l.b16 %v681
        %v1428 = vunpack.c.l.b16 %v682
        %v1429 = vunpack.c.l.b16 %v683
        %v1430 = vunpack.c.l.b16 %v684
        %v1431 = vunpack.c.l.b16 %v685
        %v1432 = vunpack.c.l.b16 %v686
        %v1433 = vunpack.c.l.b16 %v687
        %v1434 = vunpack.c.l.b16 %v688
        %v1435 = vunpack.c.l.b16 %v689
        %v1436 = vunpack.c.l.b16 %v690
        %v1437 = vunpack.c.l.b16 %v691
        %v1438 = vunpack.c.l.b16 %v692
        %v1439 = vunpack.c.l.b16 %v693
        %v1440 = vunpack.c.l.b16 %v694
        %v1441 = vunpack.c.l.b16 %v695
        %v1442 = vunpack.c.l.b16 %v696
        %v1443 = vunpack.c.l.b16 %v697
        %v1444 = vunpack.c.l.b16 %v698
        %v1445 = vunpack.c.l.b16 %v699
        %v1446 = vunpack.c.l.b16 %v700
        %v1447 = vunpack.c.l.b16 %v701
        %v1448 = vunpack.c.l.b16 %v702
        %v1449 = vunpack.c.l.b16 %v703
        %v1450 = vunpack.c.l.b16 %v704
        %v1451 = vunpack.c.l.b16 %v705
        %v1452 = vunpack.c.l.b16 %v706
        %v1453 = vunpack.c.l.b16 %v707
        %v1454 = vunpack.c.l.b16 %v708
        %v1455 = vunpack.c.l.b16 %v709
        %v1456 = vunpack.c.l.b16 %v710
        %v1457 = vunpack.c.l.b16 %v711
        %v1458 = vunpack.c.l.b16 %v712
        %v1459 = vunpack.c.l.b16 %v713
        %v1460 = vunpack.c.l.b16 %v714
        %v1461 = vunpack.c.l.b16 %v715
        %v1462 = vunpack.c.l.b16 %v716
        %v1463 = vunpack.c.l.b16 %v717
        %v1464 = vunpack.c.l.b16 %v718
        %v1465 = vunpack.c.l.b16 %v719
        %v1466 = vpack.c.b16 %v1403, %v1402
        %v1467 = vpack.c.b16 %v1405, %v1404
        %v1468 = vpack.c.b16 %v1407, %v1406
        %v1469 = vpack.c.b16 %v1409, %v1408
        %v1470 = vpack.c.b16 %v1411, %v1410
        %v1471 = vpack.c.b16 %v1413, %v1412
        %v1472 = vpack.c.b16 %v1415, %v1414
        %v1473 = vpack.c.b16 %v1417, %v1416
        %v1474 = vpack.c.b16 %v1419, %v1418
        %v1475 = vpack.c.b16 %v1421, %v1420
        %v1476 = vpack.c.b16 %v1423, %v1422
        %v1477 = vpack.c.b16 %v1425, %v1424
        %v1478 = vpack.c.b16 %v1427, %v1426
        %v1479 = vpack.c.b16 %v1429, %v1428
        %v1480 = vpack.c.b16 %v1431, %v1430
        %v1481 = vpack.c.b16 %v1433, %v1432
        %v1482 = vpack.c.b16 %v1435, %v1434
        %v1483 = vpack.c.b16 %v1437, %v1436
        %v1484 = vpack.c.b16 %v1439, %v1438
        %v1485 = vpack.c.b16 %v1441, %v1440
        %v1486 = vpack.c.b16 %v1443, %v1442
        %v1487 = vpack.c.b16 %v1445, %v1444
        %v1488 = vpack.c.b16 %v1447, %v1446
        %v1489 = vpack.c.b16 %v1449, %v1448
        %v1490 = vpack.c.b16 %v1451, %v1450
        %v1491 = vpack.c.b16 %v1453, %v1452
        %v1492 = vpack.c.b16 %v1455, %v1454
        %v1493 = vpack.c.b16 %v1457, %v1456
        %v1494 = vpack.c.b16 %v1459, %v1458
        %v1495 = vpack.c.b16 %v1461, %v1460
        %v1496 = vpack.c.b16 %v1463, %v1462
        %v1497 = vpack.c.b16 %v1465, %v1464
        %1500 = vrot.lane.b32.xlu0 %v652, 64
        %v1501 = vpop.permute.xlu0 %1500
        %1502 = vrot.lane.b32.xlu0 %v654, 64
        %v1503 = vpop.permute.xlu0 %1502
        %v1507 = vsel %vm952, %v1466, 0
        %v1510 = vsel %vm952, %v1467, 0
        %v1513 = vsel %vm952, %v1468, 0
        %v1516 = vsel %vm952, %v1469, 0
        %v1519 = vsel %vm952, %v1470, 0
        %v1522 = vsel %vm952, %v1471, 0
        %v1525 = vsel %vm952, %v1472, 0
        %v1528 = vsel %vm952, %v1473, 0
        %v1531 = vsel %vm952, %v1474, 0
        %v1534 = vsel %vm952, %v1475, 0
        %v1537 = vsel %vm952, %v1476, 0
        %v1540 = vsel %vm952, %v1477, 0
        %v1543 = vsel %vm952, %v1478, 0
        %v1546 = vsel %vm952, %v1479, 0
        %v1549 = vsel %vm952, %v1480, 0
        %v1552 = vsel %vm952, %v1481, 0
        %v1555 = vsel %vm952, %v1482, 0
        %v1558 = vsel %vm952, %v1483, 0
        %v1561 = vsel %vm952, %v1484, 0
        %v1564 = vsel %vm952, %v1485, 0
        %v1567 = vsel %vm952, %v1486, 0
        %v1570 = vsel %vm952, %v1487, 0
        %v1573 = vsel %vm952, %v1488, 0
        %v1576 = vsel %vm952, %v1489, 0
        %v1579 = vsel %vm952, %v1490, 0
        %v1582 = vsel %vm952, %v1491, 0
        %v1585 = vsel %vm952, %v1492, 0
        %v1588 = vsel %vm952, %v1493, 0
        %v1591 = vsel %vm952, %v1494, 0
        %v1594 = vsel %vm952, %v1495, 0
        %v1597 = vsel %vm952, %v1496, 0
        %v1600 = vsel %vm952, %v1497, 0
        %1602 = vmatprep.subr.bf16.mxu0 0
        %1603 = vmatpush1.bf16.msra.mxu0 %v1501
        %1604 = vmatprep.subr.bf16.mxu0 0
        %1605 = vmatpush1.bf16.msra.mxu0 %v1503
        %1606 = vmatprep.subr.bf16.mxu0 0
        %1607 = vmatpush1.bf16.msra.mxu0 0
        %1608 = vmatprep.subr.bf16.mxu0 0
        %1609 = vmatpush1.bf16.msra.mxu0 0
        %1610 = vmatprep.subr.bf16.mxu0 0
        %1611 = vmatpush1.bf16.msra.mxu0 0
        %1612 = vmatprep.subr.bf16.mxu0 0
        %1613 = vmatpush1.bf16.msra.mxu0 0
        %1614 = vmatprep.subr.bf16.mxu0 0
        %1615 = vmatpush1.bf16.msra.mxu0 0
        %1616 = vmatprep.subr.bf16.mxu0 0
        %1617 = vmatpush1.bf16.msra.mxu0 0
        %1618 = vmatprep.subr.bf16.mxu0 0
        %1619 = vmatpush1.bf16.msra.mxu0 0
        %1620 = vmatprep.subr.bf16.mxu0 0
        %1621 = vmatpush1.bf16.msra.mxu0 0
        %1622 = vmatprep.subr.bf16.mxu0 0
        %1623 = vmatpush1.bf16.msra.mxu0 0
        %1624 = vmatprep.subr.bf16.mxu0 0
        %1625 = vmatpush1.bf16.msra.mxu0 0
        %1626 = vmatprep.subr.bf16.mxu0 0
        %1627 = vmatpush1.bf16.msra.mxu0 0
        %1628 = vmatprep.subr.bf16.mxu0 0
        %1629 = vmatpush1.bf16.msra.mxu0 0
        %1630 = vmatprep.subr.bf16.mxu0 0
        %1631 = vmatpush1.bf16.msra.mxu0 0
        %1632 = vmatprep.subr.bf16.mxu0 0
        %1633 = vmatpush1.bf16.msra.mxu0 0
        %1634 = vmatprep.mubr.bf16.mxu0 0
        %1635 = vmatmul.mubr.bf16.gmra.mrb[0].mxu0 %v1507
        %v1636 = vpop.f32.mrb[0].mxu0
        %v1637 = vadd.f32 %v1084, %v1636
        %v1638 = vpop.f32.mrb[0].mxu0
        %v1639 = vpop.f32.mrb[0].mxu0
        %v1640 = vadd.f32 %v1087, %v1639
        %v1641 = vpop.f32.mrb[0].mxu0
        %1642 = vmatprep.mubr.bf16.mxu0 0
        %1643 = vmatmul.mubr.bf16.gmra.mrb[0].mxu0 %v1510
        %v1644 = vpop.f32.mrb[0].mxu0
        %v1645 = vadd.f32 %v1092, %v1644
        %v1646 = vpop.f32.mrb[0].mxu0
        %v1647 = vpop.f32.mrb[0].mxu0
        %v1648 = vadd.f32 %v1095, %v1647
        %v1649 = vpop.f32.mrb[0].mxu0
        %1650 = vmatprep.mubr.bf16.mxu0 0
        %1651 = vmatmul.mubr.bf16.gmra.mrb[0].mxu0 %v1513
        %v1652 = vpop.f32.mrb[0].mxu0
        %v1653 = vadd.f32 %v1100, %v1652
        %v1654 = vpop.f32.mrb[0].mxu0
        %v1655 = vpop.f32.mrb[0].mxu0
        %v1656 = vadd.f32 %v1103, %v1655
        %v1657 = vpop.f32.mrb[0].mxu0
        %1658 = vmatprep.mubr.bf16.mxu0 0
        %1659 = vmatmul.mubr.bf16.gmra.mrb[0].mxu0 %v1516
        %v1660 = vpop.f32.mrb[0].mxu0
        %v1661 = vadd.f32 %v1108, %v1660
        %v1662 = vpop.f32.mrb[0].mxu0
        %v1663 = vpop.f32.mrb[0].mxu0
        %v1664 = vadd.f32 %v1111, %v1663
        %v1665 = vpop.f32.mrb[0].mxu0
        %1666 = vmatprep.mubr.bf16.mxu0 0
        %1667 = vmatmul.mubr.bf16.gmra.mrb[0].mxu0 %v1519
        %v1668 = vpop.f32.mrb[0].mxu0
        %v1669 = vadd.f32 %v1116, %v1668
        %v1670 = vpop.f32.mrb[0].mxu0
        %v1671 = vpop.f32.mrb[0].mxu0
        %v1672 = vadd.f32 %v1119, %v1671
        %v1673 = vpop.f32.mrb[0].mxu0
        %1674 = vmatprep.mubr.bf16.mxu0 0
        %1675 = vmatmul.mubr.bf16.gmra.mrb[0].mxu0 %v1522
        %v1676 = vpop.f32.mrb[0].mxu0
        %v1677 = vadd.f32 %v1124, %v1676
        %v1678 = vpop.f32.mrb[0].mxu0
        %v1679 = vpop.f32.mrb[0].mxu0
        %v1680 = vadd.f32 %v1127, %v1679
        %v1681 = vpop.f32.mrb[0].mxu0
        %1682 = vmatprep.mubr.bf16.mxu0 0
        %1683 = vmatmul.mubr.bf16.gmra.mrb[0].mxu0 %v1525
        %v1684 = vpop.f32.mrb[0].mxu0
        %v1685 = vadd.f32 %v1132, %v1684
        %v1686 = vpop.f32.mrb[0].mxu0
        %v1687 = vpop.f32.mrb[0].mxu0
        %v1688 = vadd.f32 %v1135, %v1687
        %v1689 = vpop.f32.mrb[0].mxu0
        %1690 = vmatprep.mubr.bf16.mxu0 0
        %1691 = vmatmul.mubr.bf16.gmra.mrb[0].mxu0 %v1528
        %v1692 = vpop.f32.mrb[0].mxu0
        %v1693 = vadd.f32 %v1140, %v1692
        %v1694 = vpop.f32.mrb[0].mxu0
        %v1695 = vpop.f32.mrb[0].mxu0
        %v1696 = vadd.f32 %v1143, %v1695
        %v1697 = vpop.f32.mrb[0].mxu0
        %1698 = vmatprep.mubr.bf16.mxu0 0
        %1699 = vmatmul.mubr.bf16.gmra.mrb[0].mxu0 %v1531
        %v1700 = vpop.f32.mrb[0].mxu0
        %v1701 = vadd.f32 %v1148, %v1700
        %v1702 = vpop.f32.mrb[0].mxu0
        %v1703 = vpop.f32.mrb[0].mxu0
        %v1704 = vadd.f32 %v1151, %v1703
        %v1705 = vpop.f32.mrb[0].mxu0
        %1706 = vmatprep.mubr.bf16.mxu0 0
        %1707 = vmatmul.mubr.bf16.gmra.mrb[0].mxu0 %v1534
        %v1708 = vpop.f32.mrb[0].mxu0
        %v1709 = vadd.f32 %v1156, %v1708
        %v1710 = vpop.f32.mrb[0].mxu0
        %v1711 = vpop.f32.mrb[0].mxu0
        %v1712 = vadd.f32 %v1159, %v1711
        %v1713 = vpop.f32.mrb[0].mxu0
        %1714 = vmatprep.mubr.bf16.mxu0 0
        %1715 = vmatmul.mubr.bf16.gmra.mrb[0].mxu0 %v1537
        %v1716 = vpop.f32.mrb[0].mxu0
        %v1717 = vadd.f32 %v1164, %v1716
        %v1718 = vpop.f32.mrb[0].mxu0
        %v1719 = vpop.f32.mrb[0].mxu0
        %v1720 = vadd.f32 %v1167, %v1719
        %v1721 = vpop.f32.mrb[0].mxu0
        %1722 = vmatprep.mubr.bf16.mxu0 0
        %1723 = vmatmul.mubr.bf16.gmra.mrb[0].mxu0 %v1540
        %v1724 = vpop.f32.mrb[0].mxu0
        %v1725 = vadd.f32 %v1172, %v1724
        %v1726 = vpop.f32.mrb[0].mxu0
        %v1727 = vpop.f32.mrb[0].mxu0
        %v1728 = vadd.f32 %v1175, %v1727
        %v1729 = vpop.f32.mrb[0].mxu0
        %1730 = vmatprep.mubr.bf16.mxu0 0
        %1731 = vmatmul.mubr.bf16.gmra.mrb[0].mxu0 %v1543
        %v1732 = vpop.f32.mrb[0].mxu0
        %v1733 = vadd.f32 %v1180, %v1732
        %v1734 = vpop.f32.mrb[0].mxu0
        %v1735 = vpop.f32.mrb[0].mxu0
        %v1736 = vadd.f32 %v1183, %v1735
        %v1737 = vpop.f32.mrb[0].mxu0
        %1738 = vmatprep.mubr.bf16.mxu0 0
        %1739 = vmatmul.mubr.bf16.gmra.mrb[0].mxu0 %v1546
        %v1740 = vpop.f32.mrb[0].mxu0
        %v1741 = vadd.f32 %v1188, %v1740
        %v1742 = vpop.f32.mrb[0].mxu0
        %v1743 = vpop.f32.mrb[0].mxu0
        %v1744 = vadd.f32 %v1191, %v1743
        %v1745 = vpop.f32.mrb[0].mxu0
        %1746 = vmatprep.mubr.bf16.mxu0 0
        %1747 = vmatmul.mubr.bf16.gmra.mrb[0].mxu0 %v1549
        %v1748 = vpop.f32.mrb[0].mxu0
        %v1749 = vadd.f32 %v1196, %v1748
        %v1750 = vpop.f32.mrb[0].mxu0
        %v1751 = vpop.f32.mrb[0].mxu0
        %v1752 = vadd.f32 %v1199, %v1751
        %v1753 = vpop.f32.mrb[0].mxu0
        %1754 = vmatprep.mubr.bf16.mxu0 0
        %1755 = vmatmul.mubr.bf16.gmra.mrb[0].mxu0 %v1552
        %v1756 = vpop.f32.mrb[0].mxu0
        %v1757 = vadd.f32 %v1204, %v1756
        %v1758 = vpop.f32.mrb[0].mxu0
        %v1759 = vpop.f32.mrb[0].mxu0
        %v1760 = vadd.f32 %v1207, %v1759
        %v1761 = vpop.f32.mrb[0].mxu0
        %1762 = vmatprep.mubr.bf16.mxu0 0
        %1763 = vmatmul.mubr.bf16.gmra.mrb[0].mxu0 %v1555
        %v1764 = vpop.f32.mrb[0].mxu0
        %v1765 = vadd.f32 %v1212, %v1764
        %v1766 = vpop.f32.mrb[0].mxu0
        %v1767 = vpop.f32.mrb[0].mxu0
        %v1768 = vadd.f32 %v1215, %v1767
        %v1769 = vpop.f32.mrb[0].mxu0
        %1770 = vmatprep.mubr.bf16.mxu0 0
        %1771 = vmatmul.mubr.bf16.gmra.mrb[0].mxu0 %v1558
        %v1772 = vpop.f32.mrb[0].mxu0
        %v1773 = vadd.f32 %v1220, %v1772
        %v1774 = vpop.f32.mrb[0].mxu0
        %v1775 = vpop.f32.mrb[0].mxu0
        %v1776 = vadd.f32 %v1223, %v1775
        %v1777 = vpop.f32.mrb[0].mxu0
        %1778 = vmatprep.mubr.bf16.mxu0 0
        %1779 = vmatmul.mubr.bf16.gmra.mrb[0].mxu0 %v1561
        %v1780 = vpop.f32.mrb[0].mxu0
        %v1781 = vadd.f32 %v1228, %v1780
        %v1782 = vpop.f32.mrb[0].mxu0
        %v1783 = vpop.f32.mrb[0].mxu0
        %v1784 = vadd.f32 %v1231, %v1783
        %v1785 = vpop.f32.mrb[0].mxu0
        %1786 = vmatprep.mubr.bf16.mxu0 0
        %1787 = vmatmul.mubr.bf16.gmra.mrb[0].mxu0 %v1564
        %v1788 = vpop.f32.mrb[0].mxu0
        %v1789 = vadd.f32 %v1236, %v1788
        %v1790 = vpop.f32.mrb[0].mxu0
        %v1791 = vpop.f32.mrb[0].mxu0
        %v1792 = vadd.f32 %v1239, %v1791
        %v1793 = vpop.f32.mrb[0].mxu0
        %1794 = vmatprep.mubr.bf16.mxu0 0
        %1795 = vmatmul.mubr.bf16.gmra.mrb[0].mxu0 %v1567
        %v1796 = vpop.f32.mrb[0].mxu0
        %v1797 = vadd.f32 %v1244, %v1796
        %v1798 = vpop.f32.mrb[0].mxu0
        %v1799 = vpop.f32.mrb[0].mxu0
        %v1800 = vadd.f32 %v1247, %v1799
        %v1801 = vpop.f32.mrb[0].mxu0
        %1802 = vmatprep.mubr.bf16.mxu0 0
        %1803 = vmatmul.mubr.bf16.gmra.mrb[0].mxu0 %v1570
        %v1804 = vpop.f32.mrb[0].mxu0
        %v1805 = vadd.f32 %v1252, %v1804
        %v1806 = vpop.f32.mrb[0].mxu0
        %v1807 = vpop.f32.mrb[0].mxu0
        %v1808 = vadd.f32 %v1255, %v1807
        %v1809 = vpop.f32.mrb[0].mxu0
        %1810 = vmatprep.mubr.bf16.mxu0 0
        %1811 = vmatmul.mubr.bf16.gmra.mrb[0].mxu0 %v1573
        %v1812 = vpop.f32.mrb[0].mxu0
        %v1813 = vadd.f32 %v1260, %v1812
        %v1814 = vpop.f32.mrb[0].mxu0
        %v1815 = vpop.f32.mrb[0].mxu0
        %v1816 = vadd.f32 %v1263, %v1815
        %v1817 = vpop.f32.mrb[0].mxu0
        %1818 = vmatprep.mubr.bf16.mxu0 0
        %1819 = vmatmul.mubr.bf16.gmra.mrb[0].mxu0 %v1576
        %v1820 = vpop.f32.mrb[0].mxu0
        %v1821 = vadd.f32 %v1268, %v1820
        %v1822 = vpop.f32.mrb[0].mxu0
        %v1823 = vpop.f32.mrb[0].mxu0
        %v1824 = vadd.f32 %v1271, %v1823
        %v1825 = vpop.f32.mrb[0].mxu0
        %1826 = vmatprep.mubr.bf16.mxu0 0
        %1827 = vmatmul.mubr.bf16.gmra.mrb[0].mxu0 %v1579
        %v1828 = vpop.f32.mrb[0].mxu0
        %v1829 = vadd.f32 %v1276, %v1828
        %v1830 = vpop.f32.mrb[0].mxu0
        %v1831 = vpop.f32.mrb[0].mxu0
        %v1832 = vadd.f32 %v1279, %v1831
        %v1833 = vpop.f32.mrb[0].mxu0
        %1834 = vmatprep.mubr.bf16.mxu0 0
        %1835 = vmatmul.mubr.bf16.gmra.mrb[0].mxu0 %v1582
        %v1836 = vpop.f32.mrb[0].mxu0
        %v1837 = vadd.f32 %v1284, %v1836
        %v1838 = vpop.f32.mrb[0].mxu0
        %v1839 = vpop.f32.mrb[0].mxu0
        %v1840 = vadd.f32 %v1287, %v1839
        %v1841 = vpop.f32.mrb[0].mxu0
        %1842 = vmatprep.mubr.bf16.mxu0 0
        %1843 = vmatmul.mubr.bf16.gmra.mrb[0].mxu0 %v1585
        %v1844 = vpop.f32.mrb[0].mxu0
        %v1845 = vadd.f32 %v1292, %v1844
        %v1846 = vpop.f32.mrb[0].mxu0
        %v1847 = vpop.f32.mrb[0].mxu0
        %v1848 = vadd.f32 %v1295, %v1847
        %v1849 = vpop.f32.mrb[0].mxu0
        %1850 = vmatprep.mubr.bf16.mxu0 0
        %1851 = vmatmul.mubr.bf16.gmra.mrb[0].mxu0 %v1588
        %v1852 = vpop.f32.mrb[0].mxu0
        %v1853 = vadd.f32 %v1300, %v1852
        %v1854 = vpop.f32.mrb[0].mxu0
        %v1855 = vpop.f32.mrb[0].mxu0
        %v1856 = vadd.f32 %v1303, %v1855
        %v1857 = vpop.f32.mrb[0].mxu0
        %1858 = vmatprep.mubr.bf16.mxu0 0
        %1859 = vmatmul.mubr.bf16.gmra.mrb[0].mxu0 %v1591
        %v1860 = vpop.f32.mrb[0].mxu0
        %v1861 = vadd.f32 %v1308, %v1860
        %v1862 = vpop.f32.mrb[0].mxu0
        %v1863 = vpop.f32.mrb[0].mxu0
        %v1864 = vadd.f32 %v1311, %v1863
        %v1865 = vpop.f32.mrb[0].mxu0
        %1866 = vmatprep.mubr.bf16.mxu0 0
        %1867 = vmatmul.mubr.bf16.gmra.mrb[0].mxu0 %v1594
        %v1868 = vpop.f32.mrb[0].mxu0
        %v1869 = vadd.f32 %v1316, %v1868
        %v1870 = vpop.f32.mrb[0].mxu0
        %v1871 = vpop.f32.mrb[0].mxu0
        %v1872 = vadd.f32 %v1319, %v1871
        %v1873 = vpop.f32.mrb[0].mxu0
        %1874 = vmatprep.mubr.bf16.mxu0 0
        %1875 = vmatmul.mubr.bf16.gmra.mrb[0].mxu0 %v1597
        %v1876 = vpop.f32.mrb[0].mxu0
        %v1877 = vadd.f32 %v1324, %v1876
        %v1878 = vpop.f32.mrb[0].mxu0
        %v1879 = vpop.f32.mrb[0].mxu0
        %v1880 = vadd.f32 %v1327, %v1879
        %v1881 = vpop.f32.mrb[0].mxu0
        %1882 = vmatprep.mubr.bf16.mxu0 0
        %1883 = vmatmul.mubr.bf16.gmra.mrb[0].mxu0 %v1600
        %v1884 = vpop.f32.mrb[0].mxu0
        %v1885 = vadd.f32 %v1332, %v1884
        %v1886 = vpop.f32.mrb[0].mxu0
        %v1887 = vpop.f32.mrb[0].mxu0
        %v1888 = vadd.f32 %v1335, %v1887
        %v1889 = vpop.f32.mrb[0].mxu0
        %1890 = vdwg.mxu0
        %v1891 = vld [vmem:[%s501] sm:$0xf]
        %v1892 = vld [vmem:[%s501 + $0x4] sm:$0xf]
        %v1893 = vld [vmem:[%s501 + $0x8] sm:$0xf]
        %v1894 = vld [vmem:[%s501 + $0xc] sm:$0xf]
        %v1895 = vld [vmem:[%s501 + $0x10] sm:$0xf]
        %v1896 = vld [vmem:[%s501 + $0x14] sm:$0xf]
        %v1897 = vld [vmem:[%s501 + $0x18] sm:$0xf]
        %v1898 = vld [vmem:[%s501 + $0x1c] sm:$0xf]
        %v1899 = vld [vmem:[%s501 + $0x20] sm:$0xf]
        %v1900 = vld [vmem:[%s501 + $0x24] sm:$0xf]
        %v1901 = vld [vmem:[%s501 + $0x28] sm:$0xf]
        %v1902 = vld [vmem:[%s501 + $0x2c] sm:$0xf]
        %v1903 = vld [vmem:[%s501 + $0x30] sm:$0xf]
        %v1904 = vld [vmem:[%s501 + $0x34] sm:$0xf]
        %v1905 = vld [vmem:[%s501 + $0x38] sm:$0xf]
        %v1906 = vld [vmem:[%s501 + $0x3c] sm:$0xf]
        %v1907 = vld [vmem:[%s501 + $0x40] sm:$0xf]
        %v1908 = vld [vmem:[%s501 + $0x44] sm:$0xf]
        %v1909 = vld [vmem:[%s501 + $0x48] sm:$0xf]
        %v1910 = vld [vmem:[%s501 + $0x4c] sm:$0xf]
        %v1911 = vld [vmem:[%s501 + $0x50] sm:$0xf]
        %v1912 = vld [vmem:[%s501 + $0x54] sm:$0xf]
        %v1913 = vld [vmem:[%s501 + $0x58] sm:$0xf]
        %v1914 = vld [vmem:[%s501 + $0x5c] sm:$0xf]
        %v1915 = vld [vmem:[%s501 + $0x60] sm:$0xf]
        %v1916 = vld [vmem:[%s501 + $0x64] sm:$0xf]
        %v1917 = vld [vmem:[%s501 + $0x68] sm:$0xf]
        %v1918 = vld [vmem:[%s501 + $0x6c] sm:$0xf]
        %v1919 = vld [vmem:[%s501 + $0x70] sm:$0xf]
        %v1920 = vld [vmem:[%s501 + $0x74] sm:$0xf]
        %v1921 = vld [vmem:[%s501 + $0x78] sm:$0xf]
        %v1922 = vld [vmem:[%s501 + $0x7c] sm:$0xf]
        %v1923 = vld [vmem:[%s501 + $0x80] sm:$0xf]
        %v1924 = vld [vmem:[%s501 + $0x84] sm:$0xf]
        %v1925 = vld [vmem:[%s501 + $0x88] sm:$0xf]
        %v1926 = vld [vmem:[%s501 + $0x8c] sm:$0xf]
        %v1927 = vld [vmem:[%s501 + $0x90] sm:$0xf]
        %v1928 = vld [vmem:[%s501 + $0x94] sm:$0xf]
        %v1929 = vld [vmem:[%s501 + $0x98] sm:$0xf]
        %v1930 = vld [vmem:[%s501 + $0x9c] sm:$0xf]
        %v1931 = vld [vmem:[%s501 + $0xa0] sm:$0xf]
        %v1932 = vld [vmem:[%s501 + $0xa4] sm:$0xf]
        %v1933 = vld [vmem:[%s501 + $0xa8] sm:$0xf]
        %v1934 = vld [vmem:[%s501 + $0xac] sm:$0xf]
        %v1935 = vld [vmem:[%s501 + $0xb0] sm:$0xf]
        %v1936 = vld [vmem:[%s501 + $0xb4] sm:$0xf]
        %v1937 = vld [vmem:[%s501 + $0xb8] sm:$0xf]
        %v1938 = vld [vmem:[%s501 + $0xbc] sm:$0xf]
        %v1939 = vld [vmem:[%s501 + $0xc0] sm:$0xf]
        %v1940 = vld [vmem:[%s501 + $0xc4] sm:$0xf]
        %v1941 = vld [vmem:[%s501 + $0xc8] sm:$0xf]
        %v1942 = vld [vmem:[%s501 + $0xcc] sm:$0xf]
        %v1943 = vld [vmem:[%s501 + $0xd0] sm:$0xf]
        %v1944 = vld [vmem:[%s501 + $0xd4] sm:$0xf]
        %v1945 = vld [vmem:[%s501 + $0xd8] sm:$0xf]
        %v1946 = vld [vmem:[%s501 + $0xdc] sm:$0xf]
        %v1947 = vld [vmem:[%s501 + $0xe0] sm:$0xf]
        %v1948 = vld [vmem:[%s501 + $0xe4] sm:$0xf]
        %v1949 = vld [vmem:[%s501 + $0xe8] sm:$0xf]
        %v1950 = vld [vmem:[%s501 + $0xec] sm:$0xf]
        %v1951 = vld [vmem:[%s501 + $0xf0] sm:$0xf]
        %v1952 = vld [vmem:[%s501 + $0xf4] sm:$0xf]
        %v1953 = vld [vmem:[%s501 + $0xf8] sm:$0xf]
        %v1954 = vld [vmem:[%s501 + $0xfc] sm:$0xf]
        %v1955 = vunpack.c.l.bf16 %v1891
        %v1956 = vunpack.c.l.bf16 %v1892
        %v1957 = vunpack.c.l.bf16 %v1893
        %v1958 = vunpack.c.l.bf16 %v1894
        %v1959 = vunpack.c.l.bf16 %v1895
        %v1960 = vunpack.c.l.bf16 %v1896
        %v1961 = vunpack.c.l.bf16 %v1897
        %v1962 = vunpack.c.l.bf16 %v1898
        %v1963 = vunpack.c.l.bf16 %v1899
        %v1964 = vunpack.c.l.bf16 %v1900
        %v1965 = vunpack.c.l.bf16 %v1901
        %v1966 = vunpack.c.l.bf16 %v1902
        %v1967 = vunpack.c.l.bf16 %v1903
        %v1968 = vunpack.c.l.bf16 %v1904
        %v1969 = vunpack.c.l.bf16 %v1905
        %v1970 = vunpack.c.l.bf16 %v1906
        %v1971 = vunpack.c.l.bf16 %v1907
        %v1972 = vunpack.c.l.bf16 %v1908
        %v1973 = vunpack.c.l.bf16 %v1909
        %v1974 = vunpack.c.l.bf16 %v1910
        %v1975 = vunpack.c.l.bf16 %v1911
        %v1976 = vunpack.c.l.bf16 %v1912
        %v1977 = vunpack.c.l.bf16 %v1913
        %v1978 = vunpack.c.l.bf16 %v1914
        %v1979 = vunpack.c.l.bf16 %v1915
        %v1980 = vunpack.c.l.bf16 %v1916
        %v1981 = vunpack.c.l.bf16 %v1917
        %v1982 = vunpack.c.l.bf16 %v1918
        %v1983 = vunpack.c.l.bf16 %v1919
        %v1984 = vunpack.c.l.bf16 %v1920
        %v1985 = vunpack.c.l.bf16 %v1921
        %v1986 = vunpack.c.l.bf16 %v1922
        %v1987 = vunpack.c.l.bf16 %v1923
        %v1988 = vunpack.c.l.bf16 %v1924
        %v1989 = vunpack.c.l.bf16 %v1925
        %v1990 = vunpack.c.l.bf16 %v1926
        %v1991 = vunpack.c.l.bf16 %v1927
        %v1992 = vunpack.c.l.bf16 %v1928
        %v1993 = vunpack.c.l.bf16 %v1929
        %v1994 = vunpack.c.l.bf16 %v1930
        %v1995 = vunpack.c.l.bf16 %v1931
        %v1996 = vunpack.c.l.bf16 %v1932
        %v1997 = vunpack.c.l.bf16 %v1933
        %v1998 = vunpack.c.l.bf16 %v1934
        %v1999 = vunpack.c.l.bf16 %v1935
        %v2000 = vunpack.c.l.bf16 %v1936
        %v2001 = vunpack.c.l.bf16 %v1937
        %v2002 = vunpack.c.l.bf16 %v1938
        %v2003 = vunpack.c.l.bf16 %v1939
        %v2004 = vunpack.c.l.bf16 %v1940
        %v2005 = vunpack.c.l.bf16 %v1941
        %v2006 = vunpack.c.l.bf16 %v1942
        %v2007 = vunpack.c.l.bf16 %v1943
        %v2008 = vunpack.c.l.bf16 %v1944
        %v2009 = vunpack.c.l.bf16 %v1945
        %v2010 = vunpack.c.l.bf16 %v1946
        %v2011 = vunpack.c.l.bf16 %v1947
        %v2012 = vunpack.c.l.bf16 %v1948
        %v2013 = vunpack.c.l.bf16 %v1949
        %v2014 = vunpack.c.l.bf16 %v1950
        %v2015 = vunpack.c.l.bf16 %v1951
        %v2016 = vunpack.c.l.bf16 %v1952
        %v2017 = vunpack.c.l.bf16 %v1953
        %v2018 = vunpack.c.l.bf16 %v1954
        %v2019 = vadd.f32 %v1637, %v1955
        %v2020 = vadd.f32 %v1640, %v1956
        %v2021 = vadd.f32 %v1645, %v1957
        %v2022 = vadd.f32 %v1648, %v1958
        %v2023 = vadd.f32 %v1653, %v1959
        %v2024 = vadd.f32 %v1656, %v1960
        %v2025 = vadd.f32 %v1661, %v1961
        %v2026 = vadd.f32 %v1664, %v1962
        %v2027 = vadd.f32 %v1669, %v1963
        %v2028 = vadd.f32 %v1672, %v1964
        %v2029 = vadd.f32 %v1677, %v1965
        %v2030 = vadd.f32 %v1680, %v1966
        %v2031 = vadd.f32 %v1685, %v1967
        %v2032 = vadd.f32 %v1688, %v1968
        %v2033 = vadd.f32 %v1693, %v1969
        %v2034 = vadd.f32 %v1696, %v1970
        %v2035 = vadd.f32 %v1701, %v1971
        %v2036 = vadd.f32 %v1704, %v1972
        %v2037 = vadd.f32 %v1709, %v1973
        %v2038 = vadd.f32 %v1712, %v1974
        %v2039 = vadd.f32 %v1717, %v1975
        %v2040 = vadd.f32 %v1720, %v1976
        %v2041 = vadd.f32 %v1725, %v1977
        %v2042 = vadd.f32 %v1728, %v1978
        %v2043 = vadd.f32 %v1733, %v1979
        %v2044 = vadd.f32 %v1736, %v1980
        %v2045 = vadd.f32 %v1741, %v1981
        %v2046 = vadd.f32 %v1744, %v1982
        %v2047 = vadd.f32 %v1749, %v1983
        %v2048 = vadd.f32 %v1752, %v1984
        %v2049 = vadd.f32 %v1757, %v1985
        %v2050 = vadd.f32 %v1760, %v1986
        %v2051 = vadd.f32 %v1765, %v1987
        %v2052 = vadd.f32 %v1768, %v1988
        %v2053 = vadd.f32 %v1773, %v1989
        %v2054 = vadd.f32 %v1776, %v1990
        %v2055 = vadd.f32 %v1781, %v1991
        %v2056 = vadd.f32 %v1784, %v1992
        %v2057 = vadd.f32 %v1789, %v1993
        %v2058 = vadd.f32 %v1792, %v1994
        %v2059 = vadd.f32 %v1797, %v1995
        %v2060 = vadd.f32 %v1800, %v1996
        %v2061 = vadd.f32 %v1805, %v1997
        %v2062 = vadd.f32 %v1808, %v1998
        %v2063 = vadd.f32 %v1813, %v1999
        %v2064 = vadd.f32 %v1816, %v2000
        %v2065 = vadd.f32 %v1821, %v2001
        %v2066 = vadd.f32 %v1824, %v2002
        %v2067 = vadd.f32 %v1829, %v2003
        %v2068 = vadd.f32 %v1832, %v2004
        %v2069 = vadd.f32 %v1837, %v2005
        %v2070 = vadd.f32 %v1840, %v2006
        %v2071 = vadd.f32 %v1845, %v2007
        %v2072 = vadd.f32 %v1848, %v2008
        %v2073 = vadd.f32 %v1853, %v2009
        %v2074 = vadd.f32 %v1856, %v2010
        %v2075 = vadd.f32 %v1861, %v2011
        %v2076 = vadd.f32 %v1864, %v2012
        %v2077 = vadd.f32 %v1869, %v2013
        %v2078 = vadd.f32 %v1872, %v2014
        %v2079 = vadd.f32 %v1877, %v2015
        %v2080 = vadd.f32 %v1880, %v2016
        %v2081 = vadd.f32 %v1885, %v2017
        %v2082 = vadd.f32 %v1888, %v2018
        %vm2083 = vcmp.gt.f32.partialorder %v2019, 0.0
        %vm2084 = vcmp.gt.f32.partialorder %v2020, 0.0
        %vm2085 = vcmp.gt.f32.partialorder %v2021, 0.0
        %vm2086 = vcmp.gt.f32.partialorder %v2022, 0.0
        %vm2087 = vcmp.gt.f32.partialorder %v2023, 0.0
        %vm2088 = vcmp.gt.f32.partialorder %v2024, 0.0
        %vm2089 = vcmp.gt.f32.partialorder %v2025, 0.0
        %vm2090 = vcmp.gt.f32.partialorder %v2026, 0.0
        %vm2091 = vcmp.gt.f32.partialorder %v2027, 0.0
        %vm2092 = vcmp.gt.f32.partialorder %v2028, 0.0
        %vm2093 = vcmp.gt.f32.partialorder %v2029, 0.0
        %vm2094 = vcmp.gt.f32.partialorder %v2030, 0.0
        %vm2095 = vcmp.gt.f32.partialorder %v2031, 0.0
        %vm2096 = vcmp.gt.f32.partialorder %v2032, 0.0
        %vm2097 = vcmp.gt.f32.partialorder %v2033, 0.0
        %vm2098 = vcmp.gt.f32.partialorder %v2034, 0.0
        %vm2099 = vcmp.gt.f32.partialorder %v2035, 0.0
        %vm2100 = vcmp.gt.f32.partialorder %v2036, 0.0
        %vm2101 = vcmp.gt.f32.partialorder %v2037, 0.0
        %vm2102 = vcmp.gt.f32.partialorder %v2038, 0.0
        %vm2103 = vcmp.gt.f32.partialorder %v2039, 0.0
        %vm2104 = vcmp.gt.f32.partialorder %v2040, 0.0
        %vm2105 = vcmp.gt.f32.partialorder %v2041, 0.0
        %vm2106 = vcmp.gt.f32.partialorder %v2042, 0.0
        %vm2107 = vcmp.gt.f32.partialorder %v2043, 0.0
        %vm2108 = vcmp.gt.f32.partialorder %v2044, 0.0
        %vm2109 = vcmp.gt.f32.partialorder %v2045, 0.0
        %vm2110 = vcmp.gt.f32.partialorder %v2046, 0.0
        %vm2111 = vcmp.gt.f32.partialorder %v2047, 0.0
        %vm2112 = vcmp.gt.f32.partialorder %v2048, 0.0
        %vm2113 = vcmp.gt.f32.partialorder %v2049, 0.0
        %vm2114 = vcmp.gt.f32.partialorder %v2050, 0.0
        %vm2115 = vcmp.gt.f32.partialorder %v2051, 0.0
        %vm2116 = vcmp.gt.f32.partialorder %v2052, 0.0
        %vm2117 = vcmp.gt.f32.partialorder %v2053, 0.0
        %vm2118 = vcmp.gt.f32.partialorder %v2054, 0.0
        %vm2119 = vcmp.gt.f32.partialorder %v2055, 0.0
        %vm2120 = vcmp.gt.f32.partialorder %v2056, 0.0
        %vm2121 = vcmp.gt.f32.partialorder %v2057, 0.0
        %vm2122 = vcmp.gt.f32.partialorder %v2058, 0.0
        %vm2123 = vcmp.gt.f32.partialorder %v2059, 0.0
        %vm2124 = vcmp.gt.f32.partialorder %v2060, 0.0
        %vm2125 = vcmp.gt.f32.partialorder %v2061, 0.0
        %vm2126 = vcmp.gt.f32.partialorder %v2062, 0.0
        %vm2127 = vcmp.gt.f32.partialorder %v2063, 0.0
        %vm2128 = vcmp.gt.f32.partialorder %v2064, 0.0
        %vm2129 = vcmp.gt.f32.partialorder %v2065, 0.0
        %vm2130 = vcmp.gt.f32.partialorder %v2066, 0.0
        %vm2131 = vcmp.gt.f32.partialorder %v2067, 0.0
        %vm2132 = vcmp.gt.f32.partialorder %v2068, 0.0
        %vm2133 = vcmp.gt.f32.partialorder %v2069, 0.0
        %vm2134 = vcmp.gt.f32.partialorder %v2070, 0.0
        %vm2135 = vcmp.gt.f32.partialorder %v2071, 0.0
        %vm2136 = vcmp.gt.f32.partialorder %v2072, 0.0
        %vm2137 = vcmp.gt.f32.partialorder %v2073, 0.0
        %vm2138 = vcmp.gt.f32.partialorder %v2074, 0.0
        %vm2139 = vcmp.gt.f32.partialorder %v2075, 0.0
        %vm2140 = vcmp.gt.f32.partialorder %v2076, 0.0
        %vm2141 = vcmp.gt.f32.partialorder %v2077, 0.0
        %vm2142 = vcmp.gt.f32.partialorder %v2078, 0.0
        %vm2143 = vcmp.gt.f32.partialorder %v2079, 0.0
        %vm2144 = vcmp.gt.f32.partialorder %v2080, 0.0
        %vm2145 = vcmp.gt.f32.partialorder %v2081, 0.0
        %vm2146 = vcmp.gt.f32.partialorder %v2082, 0.0
        %v2147 = vmul.f32 %v2019, 0.2
        %v2148 = vmul.f32 %v2020, 0.2
        %v2149 = vmul.f32 %v2021, 0.2
        %v2150 = vmul.f32 %v2022, 0.2
        %v2151 = vmul.f32 %v2023, 0.2
        %v2152 = vmul.f32 %v2024, 0.2
        %v2153 = vmul.f32 %v2025, 0.2
        %v2154 = vmul.f32 %v2026, 0.2
        %v2155 = vmul.f32 %v2027, 0.2
        %v2156 = vmul.f32 %v2028, 0.2
        %v2157 = vmul.f32 %v2029, 0.2
        %v2158 = vmul.f32 %v2030, 0.2
        %v2159 = vmul.f32 %v2031, 0.2
        %v2160 = vmul.f32 %v2032, 0.2
        %v2161 = vmul.f32 %v2033, 0.2
        %v2162 = vmul.f32 %v2034, 0.2
        %v2163 = vmul.f32 %v2035, 0.2
        %v2164 = vmul.f32 %v2036, 0.2
        %v2165 = vmul.f32 %v2037, 0.2
        %v2166 = vmul.f32 %v2038, 0.2
        %v2167 = vmul.f32 %v2039, 0.2
        %v2168 = vmul.f32 %v2040, 0.2
        %v2169 = vmul.f32 %v2041, 0.2
        %v2170 = vmul.f32 %v2042, 0.2
        %v2171 = vmul.f32 %v2043, 0.2
        %v2172 = vmul.f32 %v2044, 0.2
        %v2173 = vmul.f32 %v2045, 0.2
        %v2174 = vmul.f32 %v2046, 0.2
        %v2175 = vmul.f32 %v2047, 0.2
        %v2176 = vmul.f32 %v2048, 0.2
        %v2177 = vmul.f32 %v2049, 0.2
        %v2178 = vmul.f32 %v2050, 0.2
        %v2179 = vmul.f32 %v2051, 0.2
        %v2180 = vmul.f32 %v2052, 0.2
        %v2181 = vmul.f32 %v2053, 0.2
        %v2182 = vmul.f32 %v2054, 0.2
        %v2183 = vmul.f32 %v2055, 0.2
        %v2184 = vmul.f32 %v2056, 0.2
        %v2185 = vmul.f32 %v2057, 0.2
        %v2186 = vmul.f32 %v2058, 0.2
        %v2187 = vmul.f32 %v2059, 0.2
        %v2188 = vmul.f32 %v2060, 0.2
        %v2189 = vmul.f32 %v2061, 0.2
        %v2190 = vmul.f32 %v2062, 0.2
        %v2191 = vmul.f32 %v2063, 0.2
        %v2192 = vmul.f32 %v2064, 0.2
        %v2193 = vmul.f32 %v2065, 0.2
        %v2194 = vmul.f32 %v2066, 0.2
        %v2195 = vmul.f32 %v2067, 0.2
        %v2196 = vmul.f32 %v2068, 0.2
        %v2197 = vmul.f32 %v2069, 0.2
        %v2198 = vmul.f32 %v2070, 0.2
        %v2199 = vmul.f32 %v2071, 0.2
        %v2200 = vmul.f32 %v2072, 0.2
        %v2201 = vmul.f32 %v2073, 0.2
        %v2202 = vmul.f32 %v2074, 0.2
        %v2203 = vmul.f32 %v2075, 0.2
        %v2204 = vmul.f32 %v2076, 0.2
        %v2205 = vmul.f32 %v2077, 0.2
        %v2206 = vmul.f32 %v2078, 0.2
        %v2207 = vmul.f32 %v2079, 0.2
        %v2208 = vmul.f32 %v2080, 0.2
        %v2209 = vmul.f32 %v2081, 0.2
        %v2210 = vmul.f32 %v2082, 0.2
        %v2211 = vsel %vm2083, %v2019, %v2147
        %v2212 = vsel %vm2084, %v2020, %v2148
        %v2213 = vsel %vm2085, %v2021, %v2149
        %v2214 = vsel %vm2086, %v2022, %v2150
        %v2215 = vsel %vm2087, %v2023, %v2151
        %v2216 = vsel %vm2088, %v2024, %v2152
        %v2217 = vsel %vm2089, %v2025, %v2153
        %v2218 = vsel %vm2090, %v2026, %v2154
        %v2219 = vsel %vm2091, %v2027, %v2155
        %v2220 = vsel %vm2092, %v2028, %v2156
        %v2221 = vsel %vm2093, %v2029, %v2157
        %v2222 = vsel %vm2094, %v2030, %v2158
        %v2223 = vsel %vm2095, %v2031, %v2159
        %v2224 = vsel %vm2096, %v2032, %v2160
        %v2225 = vsel %vm2097, %v2033, %v2161
        %v2226 = vsel %vm2098, %v2034, %v2162
        %v2227 = vsel %vm2099, %v2035, %v2163
        %v2228 = vsel %vm2100, %v2036, %v2164
        %v2229 = vsel %vm2101, %v2037, %v2165
        %v2230 = vsel %vm2102, %v2038, %v2166
        %v2231 = vsel %vm2103, %v2039, %v2167
        %v2232 = vsel %vm2104, %v2040, %v2168
        %v2233 = vsel %vm2105, %v2041, %v2169
        %v2234 = vsel %vm2106, %v2042, %v2170
        %v2235 = vsel %vm2107, %v2043, %v2171
        %v2236 = vsel %vm2108, %v2044, %v2172
        %v2237 = vsel %vm2109, %v2045, %v2173
        %v2238 = vsel %vm2110, %v2046, %v2174
        %v2239 = vsel %vm2111, %v2047, %v2175
        %v2240 = vsel %vm2112, %v2048, %v2176
        %v2241 = vsel %vm2113, %v2049, %v2177
        %v2242 = vsel %vm2114, %v2050, %v2178
        %v2243 = vsel %vm2115, %v2051, %v2179
        %v2244 = vsel %vm2116, %v2052, %v2180
        %v2245 = vsel %vm2117, %v2053, %v2181
        %v2246 = vsel %vm2118, %v2054, %v2182
        %v2247 = vsel %vm2119, %v2055, %v2183
        %v2248 = vsel %vm2120, %v2056, %v2184
        %v2249 = vsel %vm2121, %v2057, %v2185
        %v2250 = vsel %vm2122, %v2058, %v2186
        %v2251 = vsel %vm2123, %v2059, %v2187
        %v2252 = vsel %vm2124, %v2060, %v2188
        %v2253 = vsel %vm2125, %v2061, %v2189
        %v2254 = vsel %vm2126, %v2062, %v2190
        %v2255 = vsel %vm2127, %v2063, %v2191
        %v2256 = vsel %vm2128, %v2064, %v2192
        %v2257 = vsel %vm2129, %v2065, %v2193
        %v2258 = vsel %vm2130, %v2066, %v2194
        %v2259 = vsel %vm2131, %v2067, %v2195
        %v2260 = vsel %vm2132, %v2068, %v2196
        %v2261 = vsel %vm2133, %v2069, %v2197
        %v2262 = vsel %vm2134, %v2070, %v2198
        %v2263 = vsel %vm2135, %v2071, %v2199
        %v2264 = vsel %vm2136, %v2072, %v2200
        %v2265 = vsel %vm2137, %v2073, %v2201
        %v2266 = vsel %vm2138, %v2074, %v2202
        %v2267 = vsel %vm2139, %v2075, %v2203
        %v2268 = vsel %vm2140, %v2076, %v2204
        %v2269 = vsel %vm2141, %v2077, %v2205
        %v2270 = vsel %vm2142, %v2078, %v2206
        %v2271 = vsel %vm2143, %v2079, %v2207
        %v2272 = vsel %vm2144, %v2080, %v2208
        %v2273 = vsel %vm2145, %v2081, %v2209
        %v2274 = vsel %vm2146, %v2082, %v2210
        %v2275 = vsel %vm592, %v2211, -inf
        %v2276 = vsel %vm592, %v2212, -inf
        %v2277 = vsel %vm592, %v2213, -inf
        %v2278 = vsel %vm592, %v2214, -inf
        %v2279 = vsel %vm592, %v2215, -inf
        %v2280 = vmax.f32 %v2275, %v2279
        %v2281 = vsel %vm592, %v2216, -inf
        %v2282 = vmax.f32 %v2276, %v2281
        %v2283 = vsel %vm592, %v2217, -inf
        %v2284 = vmax.f32 %v2277, %v2283
        %v2285 = vsel %vm592, %v2218, -inf
        %v2286 = vmax.f32 %v2278, %v2285
        %v2287 = vsel %vm592, %v2219, -inf
        %v2288 = vmax.f32 %v2280, %v2287
        %v2289 = vsel %vm592, %v2220, -inf
        %v2290 = vmax.f32 %v2282, %v2289
        %v2291 = vsel %vm592, %v2221, -inf
        %v2292 = vmax.f32 %v2284, %v2291
        %v2293 = vsel %vm592, %v2222, -inf
        %v2294 = vmax.f32 %v2286, %v2293
        %v2295 = vsel %vm592, %v2223, -inf
        %v2296 = vmax.f32 %v2288, %v2295
        %v2297 = vsel %vm592, %v2224, -inf
        %v2298 = vmax.f32 %v2290, %v2297
        %v2299 = vsel %vm592, %v2225, -inf
        %v2300 = vmax.f32 %v2292, %v2299
        %v2301 = vsel %vm592, %v2226, -inf
        %v2302 = vmax.f32 %v2294, %v2301
        %v2303 = vsel %vm592, %v2227, -inf
        %v2304 = vmax.f32 %v2296, %v2303
        %v2305 = vsel %vm592, %v2228, -inf
        %v2306 = vmax.f32 %v2298, %v2305
        %v2307 = vsel %vm592, %v2229, -inf
        %v2308 = vmax.f32 %v2300, %v2307
        %v2309 = vsel %vm592, %v2230, -inf
        %v2310 = vmax.f32 %v2302, %v2309
        %v2311 = vsel %vm592, %v2231, -inf
        %v2312 = vmax.f32 %v2304, %v2311
        %v2313 = vsel %vm592, %v2232, -inf
        %v2314 = vmax.f32 %v2306, %v2313
        %v2315 = vsel %vm592, %v2233, -inf
        %v2316 = vmax.f32 %v2308, %v2315
        %v2317 = vsel %vm592, %v2234, -inf
        %v2318 = vmax.f32 %v2310, %v2317
        %v2319 = vsel %vm592, %v2235, -inf
        %v2320 = vmax.f32 %v2312, %v2319
        %v2321 = vsel %vm592, %v2236, -inf
        %v2322 = vmax.f32 %v2314, %v2321
        %v2323 = vsel %vm592, %v2237, -inf
        %v2324 = vmax.f32 %v2316, %v2323
        %v2325 = vsel %vm592, %v2238, -inf
        %v2326 = vmax.f32 %v2318, %v2325
        %v2327 = vsel %vm592, %v2239, -inf
        %v2328 = vmax.f32 %v2320, %v2327
        %v2329 = vsel %vm592, %v2240, -inf
        %v2330 = vmax.f32 %v2322, %v2329
        %v2331 = vsel %vm592, %v2241, -inf
        %v2332 = vmax.f32 %v2324, %v2331
        %v2333 = vsel %vm592, %v2242, -inf
        %v2334 = vmax.f32 %v2326, %v2333
        %v2335 = vsel %vm592, %v2243, -inf
        %v2336 = vmax.f32 %v2328, %v2335
        %v2337 = vsel %vm592, %v2244, -inf
        %v2338 = vmax.f32 %v2330, %v2337
        %v2339 = vsel %vm592, %v2245, -inf
        %v2340 = vmax.f32 %v2332, %v2339
        %v2341 = vsel %vm592, %v2246, -inf
        %v2342 = vmax.f32 %v2334, %v2341
        %v2343 = vsel %vm592, %v2247, -inf
        %v2344 = vmax.f32 %v2336, %v2343
        %v2345 = vsel %vm592, %v2248, -inf
        %v2346 = vmax.f32 %v2338, %v2345
        %v2347 = vsel %vm592, %v2249, -inf
        %v2348 = vmax.f32 %v2340, %v2347
        %v2349 = vsel %vm592, %v2250, -inf
        %v2350 = vmax.f32 %v2342, %v2349
        %v2351 = vsel %vm592, %v2251, -inf
        %v2352 = vmax.f32 %v2344, %v2351
        %v2353 = vsel %vm592, %v2252, -inf
        %v2354 = vmax.f32 %v2346, %v2353
        %v2355 = vsel %vm592, %v2253, -inf
        %v2356 = vmax.f32 %v2348, %v2355
        %v2357 = vsel %vm592, %v2254, -inf
        %v2358 = vmax.f32 %v2350, %v2357
        %v2359 = vsel %vm592, %v2255, -inf
        %v2360 = vmax.f32 %v2352, %v2359
        %v2361 = vsel %vm592, %v2256, -inf
        %v2362 = vmax.f32 %v2354, %v2361
        %v2363 = vsel %vm592, %v2257, -inf
        %v2364 = vmax.f32 %v2356, %v2363
        %v2365 = vsel %vm592, %v2258, -inf
        %v2366 = vmax.f32 %v2358, %v2365
        %v2367 = vsel %vm592, %v2259, -inf
        %v2368 = vmax.f32 %v2360, %v2367
        %v2369 = vsel %vm592, %v2260, -inf
        %v2370 = vmax.f32 %v2362, %v2369
        %v2371 = vsel %vm592, %v2261, -inf
        %v2372 = vmax.f32 %v2364, %v2371
        %v2373 = vsel %vm592, %v2262, -inf
        %v2374 = vmax.f32 %v2366, %v2373
        %v2375 = vsel %vm592, %v2263, -inf
        %v2376 = vmax.f32 %v2368, %v2375
        %v2377 = vsel %vm592, %v2264, -inf
        %v2378 = vmax.f32 %v2370, %v2377
        %v2379 = vsel %vm592, %v2265, -inf
        %v2380 = vmax.f32 %v2372, %v2379
        %v2381 = vsel %vm592, %v2266, -inf
        %v2382 = vmax.f32 %v2374, %v2381
        %v2383 = vsel %vm592, %v2267, -inf
        %v2384 = vmax.f32 %v2376, %v2383
        %v2385 = vsel %vm592, %v2268, -inf
        %v2386 = vmax.f32 %v2378, %v2385
        %v2387 = vsel %vm592, %v2269, -inf
        %v2388 = vmax.f32 %v2380, %v2387
        %v2389 = vsel %vm592, %v2270, -inf
        %v2390 = vmax.f32 %v2382, %v2389
        %v2391 = vsel %vm592, %v2271, -inf
        %v2392 = vmax.f32 %v2384, %v2391
        %v2393 = vsel %vm592, %v2272, -inf
        %v2394 = vmax.f32 %v2386, %v2393
        %v2395 = vsel %vm592, %v2273, -inf
        %v2396 = vmax.f32 %v2388, %v2395
        %v2397 = vsel %vm592, %v2274, -inf
        %v2398 = vmax.f32 %v2390, %v2397
        %v2399 = vmax.f32 %v2392, %v2394
        %v2400 = vmax.f32 %v2396, %v2398
        %v2401 = vmax.f32 %v2399, %v2400
        %v2402 = vrot.slane %v2401, 4
        %v2403 = vmax.f32 %v2401, %v2402
        %v2404 = vrot.slane %v2403, 2
        %v2405 = vmax.f32 %v2403, %v2404
        %v2406 = vrot.slane %v2405, 1
        %v2407 = vmax.f32 %v2405, %v2406
        %v2408 = vsub.f32 %v2211, %v2407
        %v2409 = vsub.f32 %v2212, %v2407
        %v2410 = vsub.f32 %v2213, %v2407
        %v2411 = vsub.f32 %v2214, %v2407
        %v2412 = vsub.f32 %v2215, %v2407
        %v2413 = vsub.f32 %v2216, %v2407
        %v2414 = vsub.f32 %v2217, %v2407
        %v2415 = vsub.f32 %v2218, %v2407
        %v2416 = vsub.f32 %v2219, %v2407
        %v2417 = vsub.f32 %v2220, %v2407
        %v2418 = vsub.f32 %v2221, %v2407
        %v2419 = vsub.f32 %v2222, %v2407
        %v2420 = vsub.f32 %v2223, %v2407
        %v2421 = vsub.f32 %v2224, %v2407
        %v2422 = vsub.f32 %v2225, %v2407
        %v2423 = vsub.f32 %v2226, %v2407
        %v2424 = vsub.f32 %v2227, %v2407
        %v2425 = vsub.f32 %v2228, %v2407
        %v2426 = vsub.f32 %v2229, %v2407
        %v2427 = vsub.f32 %v2230, %v2407
        %v2428 = vsub.f32 %v2231, %v2407
        %v2429 = vsub.f32 %v2232, %v2407
        %v2430 = vsub.f32 %v2233, %v2407
        %v2431 = vsub.f32 %v2234, %v2407
        %v2432 = vsub.f32 %v2235, %v2407
        %v2433 = vsub.f32 %v2236, %v2407
        %v2434 = vsub.f32 %v2237, %v2407
        %v2435 = vsub.f32 %v2238, %v2407
        %v2436 = vsub.f32 %v2239, %v2407
        %v2437 = vsub.f32 %v2240, %v2407
        %v2438 = vsub.f32 %v2241, %v2407
        %v2439 = vsub.f32 %v2242, %v2407
        %v2440 = vsub.f32 %v2243, %v2407
        %v2441 = vsub.f32 %v2244, %v2407
        %v2442 = vsub.f32 %v2245, %v2407
        %v2443 = vsub.f32 %v2246, %v2407
        %v2444 = vsub.f32 %v2247, %v2407
        %v2445 = vsub.f32 %v2248, %v2407
        %v2446 = vsub.f32 %v2249, %v2407
        %v2447 = vsub.f32 %v2250, %v2407
        %v2448 = vsub.f32 %v2251, %v2407
        %v2449 = vsub.f32 %v2252, %v2407
        %v2450 = vsub.f32 %v2253, %v2407
        %v2451 = vsub.f32 %v2254, %v2407
        %v2452 = vsub.f32 %v2255, %v2407
        %v2453 = vsub.f32 %v2256, %v2407
        %v2454 = vsub.f32 %v2257, %v2407
        %v2455 = vsub.f32 %v2258, %v2407
        %v2456 = vsub.f32 %v2259, %v2407
        %v2457 = vsub.f32 %v2260, %v2407
        %v2458 = vsub.f32 %v2261, %v2407
        %v2459 = vsub.f32 %v2262, %v2407
        %v2460 = vsub.f32 %v2263, %v2407
        %v2461 = vsub.f32 %v2264, %v2407
        %v2462 = vsub.f32 %v2265, %v2407
        %v2463 = vsub.f32 %v2266, %v2407
        %v2464 = vsub.f32 %v2267, %v2407
        %v2465 = vsub.f32 %v2268, %v2407
        %v2466 = vsub.f32 %v2269, %v2407
        %v2467 = vsub.f32 %v2270, %v2407
        %v2468 = vsub.f32 %v2271, %v2407
        %v2469 = vsub.f32 %v2272, %v2407
        %v2470 = vsub.f32 %v2273, %v2407
        %v2471 = vsub.f32 %v2274, %v2407
        %v2472 = vmul.f32 %v2408, 1.442695
        %v2473 = vpow.pop %v2472
        %v2474 = vmul.f32 %v2409, 1.442695
        %v2475 = vpow.pop %v2474
        %v2476 = vmul.f32 %v2410, 1.442695
        %v2477 = vpow.pop %v2476
        %v2478 = vmul.f32 %v2411, 1.442695
        %v2479 = vpow.pop %v2478
        %v2480 = vmul.f32 %v2412, 1.442695
        %v2481 = vpow.pop %v2480
        %v2482 = vmul.f32 %v2413, 1.442695
        %v2483 = vpow.pop %v2482
        %v2484 = vmul.f32 %v2414, 1.442695
        %v2485 = vpow.pop %v2484
        %v2486 = vmul.f32 %v2415, 1.442695
        %v2487 = vpow.pop %v2486
        %v2488 = vmul.f32 %v2416, 1.442695
        %v2489 = vpow.pop %v2488
        %v2490 = vmul.f32 %v2417, 1.442695
        %v2491 = vpow.pop %v2490
        %v2492 = vmul.f32 %v2418, 1.442695
        %v2493 = vpow.pop %v2492
        %v2494 = vmul.f32 %v2419, 1.442695
        %v2495 = vpow.pop %v2494
        %v2496 = vmul.f32 %v2420, 1.442695
        %v2497 = vpow.pop %v2496
        %v2498 = vmul.f32 %v2421, 1.442695
        %v2499 = vpow.pop %v2498
        %v2500 = vmul.f32 %v2422, 1.442695
        %v2501 = vpow.pop %v2500
        %v2502 = vmul.f32 %v2423, 1.442695
        %v2503 = vpow.pop %v2502
        %v2504 = vmul.f32 %v2424, 1.442695
        %v2505 = vpow.pop %v2504
        %v2506 = vmul.f32 %v2425, 1.442695
        %v2507 = vpow.pop %v2506
        %v2508 = vmul.f32 %v2426, 1.442695
        %v2509 = vpow.pop %v2508
        %v2510 = vmul.f32 %v2427, 1.442695
        %v2511 = vpow.pop %v2510
        %v2512 = vmul.f32 %v2428, 1.442695
        %v2513 = vpow.pop %v2512
        %v2514 = vmul.f32 %v2429, 1.442695
        %v2515 = vpow.pop %v2514
        %v2516 = vmul.f32 %v2430, 1.442695
        %v2517 = vpow.pop %v2516
        %v2518 = vmul.f32 %v2431, 1.442695
        %v2519 = vpow.pop %v2518
        %v2520 = vmul.f32 %v2432, 1.442695
        %v2521 = vpow.pop %v2520
        %v2522 = vmul.f32 %v2433, 1.442695
        %v2523 = vpow.pop %v2522
        %v2524 = vmul.f32 %v2434, 1.442695
        %v2525 = vpow.pop %v2524
        %v2526 = vmul.f32 %v2435, 1.442695
        %v2527 = vpow.pop %v2526
        %v2528 = vmul.f32 %v2436, 1.442695
        %v2529 = vpow.pop %v2528
        %v2530 = vmul.f32 %v2437, 1.442695
        %v2531 = vpow.pop %v2530
        %v2532 = vmul.f32 %v2438, 1.442695
        %v2533 = vpow.pop %v2532
        %v2534 = vmul.f32 %v2439, 1.442695
        %v2535 = vpow.pop %v2534
        %v2536 = vmul.f32 %v2440, 1.442695
        %v2537 = vpow.pop %v2536
        %v2538 = vmul.f32 %v2441, 1.442695
        %v2539 = vpow.pop %v2538
        %v2540 = vmul.f32 %v2442, 1.442695
        %v2541 = vpow.pop %v2540
        %v2542 = vmul.f32 %v2443, 1.442695
        %v2543 = vpow.pop %v2542
        %v2544 = vmul.f32 %v2444, 1.442695
        %v2545 = vpow.pop %v2544
        %v2546 = vmul.f32 %v2445, 1.442695
        %v2547 = vpow.pop %v2546
        %v2548 = vmul.f32 %v2446, 1.442695
        %v2549 = vpow.pop %v2548
        %v2550 = vmul.f32 %v2447, 1.442695
        %v2551 = vpow.pop %v2550
        %v2552 = vmul.f32 %v2448, 1.442695
        %v2553 = vpow.pop %v2552
        %v2554 = vmul.f32 %v2449, 1.442695
        %v2555 = vpow.pop %v2554
        %v2556 = vmul.f32 %v2450, 1.442695
        %v2557 = vpow.pop %v2556
        %v2558 = vmul.f32 %v2451, 1.442695
        %v2559 = vpow.pop %v2558
        %v2560 = vmul.f32 %v2452, 1.442695
        %v2561 = vpow.pop %v2560
        %v2562 = vmul.f32 %v2453, 1.442695
        %v2563 = vpow.pop %v2562
        %v2564 = vmul.f32 %v2454, 1.442695
        %v2565 = vpow.pop %v2564
        %v2566 = vmul.f32 %v2455, 1.442695
        %v2567 = vpow.pop %v2566
        %v2568 = vmul.f32 %v2456, 1.442695
        %v2569 = vpow.pop %v2568
        %v2570 = vmul.f32 %v2457, 1.442695
        %v2571 = vpow.pop %v2570
        %v2572 = vmul.f32 %v2458, 1.442695
        %v2573 = vpow.pop %v2572
        %v2574 = vmul.f32 %v2459, 1.442695
        %v2575 = vpow.pop %v2574
        %v2576 = vmul.f32 %v2460, 1.442695
        %v2577 = vpow.pop %v2576
        %v2578 = vmul.f32 %v2461, 1.442695
        %v2579 = vpow.pop %v2578
        %v2580 = vmul.f32 %v2462, 1.442695
        %v2581 = vpow.pop %v2580
        %v2582 = vmul.f32 %v2463, 1.442695
        %v2583 = vpow.pop %v2582
        %v2584 = vmul.f32 %v2464, 1.442695
        %v2585 = vpow.pop %v2584
        %v2586 = vmul.f32 %v2465, 1.442695
        %v2587 = vpow.pop %v2586
        %v2588 = vmul.f32 %v2466, 1.442695
        %v2589 = vpow.pop %v2588
        %v2590 = vmul.f32 %v2467, 1.442695
        %v2591 = vpow.pop %v2590
        %v2592 = vmul.f32 %v2468, 1.442695
        %v2593 = vpow.pop %v2592
        %v2594 = vmul.f32 %v2469, 1.442695
        %v2595 = vpow.pop %v2594
        %v2596 = vmul.f32 %v2470, 1.442695
        %v2597 = vpow.pop %v2596
        %v2598 = vmul.f32 %v2471, 1.442695
        %v2599 = vpow.pop %v2598
        %v2600 = vpack.c.bf16 %v2475, %v2473
        %v2601 = vpack.c.bf16 %v2479, %v2477
        %v2602 = vpack.c.bf16 %v2483, %v2481
        %v2603 = vpack.c.bf16 %v2487, %v2485
        %v2604 = vpack.c.bf16 %v2491, %v2489
        %v2605 = vpack.c.bf16 %v2495, %v2493
        %v2606 = vpack.c.bf16 %v2499, %v2497
        %v2607 = vpack.c.bf16 %v2503, %v2501
        %v2608 = vpack.c.bf16 %v2507, %v2505
        %v2609 = vpack.c.bf16 %v2511, %v2509
        %v2610 = vpack.c.bf16 %v2515, %v2513
        %v2611 = vpack.c.bf16 %v2519, %v2517
        %v2612 = vpack.c.bf16 %v2523, %v2521
        %v2613 = vpack.c.bf16 %v2527, %v2525
        %v2614 = vpack.c.bf16 %v2531, %v2529
        %v2615 = vpack.c.bf16 %v2535, %v2533
        %v2616 = vpack.c.bf16 %v2539, %v2537
        %v2617 = vpack.c.bf16 %v2543, %v2541
        %v2618 = vpack.c.bf16 %v2547, %v2545
        %v2619 = vpack.c.bf16 %v2551, %v2549
        %v2620 = vpack.c.bf16 %v2555, %v2553
        %v2621 = vpack.c.bf16 %v2559, %v2557
        %v2622 = vpack.c.bf16 %v2563, %v2561
        %v2623 = vpack.c.bf16 %v2567, %v2565
        %v2624 = vpack.c.bf16 %v2571, %v2569
        %v2625 = vpack.c.bf16 %v2575, %v2573
        %v2626 = vpack.c.bf16 %v2579, %v2577
        %v2627 = vpack.c.bf16 %v2583, %v2581
        %v2628 = vpack.c.bf16 %v2587, %v2585
        %v2629 = vpack.c.bf16 %v2591, %v2589
        %v2630 = vpack.c.bf16 %v2595, %v2593
        %v2631 = vpack.c.bf16 %v2599, %v2597
        %v2640 = vunpack.c.l.b16 %v784
        %v2641 = vunpack.c.h.b16 %v784
        %v2642 = vunpack.c.l.b16 %v785
        %v2643 = vunpack.c.h.b16 %v785
        %v2644 = vunpack.c.l.b16 %v786
        %v2645 = vunpack.c.h.b16 %v786
        %v2646 = vunpack.c.l.b16 %v787
        %v2647 = vunpack.c.h.b16 %v787
        %v2648 = vunpack.c.l.b16 %v788
        %v2649 = vunpack.c.h.b16 %v788
        %v2650 = vunpack.c.l.b16 %v789
        %v2651 = vunpack.c.h.b16 %v789
        %v2652 = vunpack.c.l.b16 %v790
        %v2653 = vunpack.c.h.b16 %v790
        %v2654 = vunpack.c.l.b16 %v791
        %v2655 = vunpack.c.h.b16 %v791
        %v2656 = vpack.c.b16 %v2644, %v2640
        %v2657 = vpack.c.b16 %v2645, %v2641
        %v2658 = vpack.c.b16 %v2646, %v2642
        %v2659 = vpack.c.b16 %v2647, %v2643
        %v2660 = vpack.c.b16 %v2652, %v2648
        %v2661 = vpack.c.b16 %v2653, %v2649
        %v2662 = vpack.c.b16 %v2654, %v2650
        %v2663 = vpack.c.b16 %v2655, %v2651
        %2672 = vmatprep.subr.bf16.mxu0 0
        %2673 = vmatpush1.bf16.msra.mxu0 %v2600
        %2674 = vmatprep.subr.bf16.mxu0 0
        %2675 = vmatpush1.bf16.msra.mxu0 %v2601
        %2676 = vmatprep.subr.bf16.mxu0 0
        %2677 = vmatpush1.bf16.msra.mxu0 %v2602
        %2678 = vmatprep.subr.bf16.mxu0 0
        %2679 = vmatpush1.bf16.msra.mxu0 %v2603
        %2680 = vmatprep.subr.bf16.mxu0 0
        %2681 = vmatpush1.bf16.msra.mxu0 %v2604
        %2682 = vmatprep.subr.bf16.mxu0 0
        %2683 = vmatpush1.bf16.msra.mxu0 %v2605
        %2684 = vmatprep.subr.bf16.mxu0 0
        %2685 = vmatpush1.bf16.msra.mxu0 %v2606
        %2686 = vmatprep.subr.bf16.mxu0 0
        %2687 = vmatpush1.bf16.msra.mxu0 %v2607
        %2688 = vmatprep.subr.bf16.mxu0 0
        %2689 = vmatpush1.bf16.msra.mxu0 %v2608
        %2690 = vmatprep.subr.bf16.mxu0 0
        %2691 = vmatpush1.bf16.msra.mxu0 %v2609
        %2692 = vmatprep.subr.bf16.mxu0 0
        %2693 = vmatpush1.bf16.msra.mxu0 %v2610
        %2694 = vmatprep.subr.bf16.mxu0 0
        %2695 = vmatpush1.bf16.msra.mxu0 %v2611
        %2696 = vmatprep.subr.bf16.mxu0 0
        %2697 = vmatpush1.bf16.msra.mxu0 %v2612
        %2698 = vmatprep.subr.bf16.mxu0 0
        %2699 = vmatpush1.bf16.msra.mxu0 %v2613
        %2700 = vmatprep.subr.bf16.mxu0 0
        %2701 = vmatpush1.bf16.msra.mxu0 %v2614
        %2702 = vmatprep.subr.bf16.mxu0 0
        %2703 = vmatpush1.bf16.msra.mxu0 %v2615
        %2704 = vmatprep.mubr.bf16.mxu0 %v2657
        %2705 = vmatmul.mubr.bf16.gmra.mrb[0].mxu0 %v2656
        %v2706 = vpop.f32.mrb[0].mxu0
        %v2707 = vadd.f32 1e-12, %v2706
        %v2708 = vpop.f32.mrb[0].mxu0
        %v2709 = vpop.f32.mrb[0].mxu0
        %v2710 = vadd.f32 1e-12, %v2709
        %v2711 = vpop.f32.mrb[0].mxu0
        %2712 = vmatprep.mubr.bf16.mxu0 %v2661
        %2713 = vmatmul.mubr.bf16.gmra.mrb[0].mxu0 %v2660
        %v2714 = vpop.f32.mrb[0].mxu0
        %v2715 = vadd.f32 1e-12, %v2714
        %v2716 = vpop.f32.mrb[0].mxu0
        %v2717 = vpop.f32.mrb[0].mxu0
        %v2718 = vadd.f32 1e-12, %v2717
        %v2719 = vpop.f32.mrb[0].mxu0
        %2720 = vdwg.mxu0
        %2721 = vmatprep.subr.bf16.mxu0 0
        %2722 = vmatpush1.bf16.msra.mxu0 %v2616
        %2723 = vmatprep.subr.bf16.mxu0 0
        %2724 = vmatpush1.bf16.msra.mxu0 %v2617
        %2725 = vmatprep.subr.bf16.mxu0 0
        %2726 = vmatpush1.bf16.msra.mxu0 %v2618
        %2727 = vmatprep.subr.bf16.mxu0 0
        %2728 = vmatpush1.bf16.msra.mxu0 %v2619
        %2729 = vmatprep.subr.bf16.mxu0 0
        %2730 = vmatpush1.bf16.msra.mxu0 %v2620
        %2731 = vmatprep.subr.bf16.mxu0 0
        %2732 = vmatpush1.bf16.msra.mxu0 %v2621
        %2733 = vmatprep.subr.bf16.mxu0 0
        %2734 = vmatpush1.bf16.msra.mxu0 %v2622
        %2735 = vmatprep.subr.bf16.mxu0 0
        %2736 = vmatpush1.bf16.msra.mxu0 %v2623
        %2737 = vmatprep.subr.bf16.mxu0 0
        %2738 = vmatpush1.bf16.msra.mxu0 %v2624
        %2739 = vmatprep.subr.bf16.mxu0 0
        %2740 = vmatpush1.bf16.msra.mxu0 %v2625
        %2741 = vmatprep.subr.bf16.mxu0 0
        %2742 = vmatpush1.bf16.msra.mxu0 %v2626
        %2743 = vmatprep.subr.bf16.mxu0 0
        %2744 = vmatpush1.bf16.msra.mxu0 %v2627
        %2745 = vmatprep.subr.bf16.mxu0 0
        %2746 = vmatpush1.bf16.msra.mxu0 %v2628
        %2747 = vmatprep.subr.bf16.mxu0 0
        %2748 = vmatpush1.bf16.msra.mxu0 %v2629
        %2749 = vmatprep.subr.bf16.mxu0 0
        %2750 = vmatpush1.bf16.msra.mxu0 %v2630
        %2751 = vmatprep.subr.bf16.mxu0 0
        %2752 = vmatpush1.bf16.msra.mxu0 %v2631
        %2753 = vmatprep.mubr.bf16.mxu0 %v2659
        %2754 = vmatmul.mubr.bf16.gmra.mrb[0].mxu0 %v2658
        %v2755 = vpop.f32.mrb[0].mxu0
        %v2756 = vadd.f32 %v2707, %v2755
        %v2757 = vpop.f32.mrb[0].mxu0
        %v2758 = vpop.f32.mrb[0].mxu0
        %v2759 = vadd.f32 %v2710, %v2758
        %v2760 = vpop.f32.mrb[0].mxu0
        %2761 = vmatprep.mubr.bf16.mxu0 %v2663
        %2762 = vmatmul.mubr.bf16.gmra.mrb[0].mxu0 %v2662
        %v2763 = vpop.f32.mrb[0].mxu0
        %v2764 = vadd.f32 %v2715, %v2763
        %v2765 = vpop.f32.mrb[0].mxu0
        %v2766 = vpop.f32.mrb[0].mxu0
        %v2767 = vadd.f32 %v2718, %v2766
        %v2768 = vpop.f32.mrb[0].mxu0
        %2769 = vdwg.mxu0
        %v2770 = vrcp.pop %v2756
        %v2771 = vrcp.pop %v2759
        %v2772 = vrcp.pop %v2764
        %v2773 = vrcp.pop %v2767
        %v2774 = vpack.c.bf16 %v2771, %v2770
        %v2775 = vpack.c.bf16 %v2773, %v2772
        %2776 = vmatprep.subr.bf16.mxu0 0
        %2777 = vmatpush1.bf16.msra.mxu0 %v2774
        %2778 = vmatprep.subr.bf16.mxu0 0
        %2779 = vmatpush1.bf16.msra.mxu0 %v2775
        %2780 = vmatprep.subr.bf16.mxu0 0
        %2781 = vmatpush1.bf16.msra.mxu0 0
        %2782 = vmatprep.subr.bf16.mxu0 0
        %2783 = vmatpush1.bf16.msra.mxu0 0
        %2784 = vmatprep.subr.bf16.mxu0 0
        %2785 = vmatpush1.bf16.msra.mxu0 0
        %2786 = vmatprep.subr.bf16.mxu0 0
        %2787 = vmatpush1.bf16.msra.mxu0 0
        %2788 = vmatprep.subr.bf16.mxu0 0
        %2789 = vmatpush1.bf16.msra.mxu0 0
        %2790 = vmatprep.subr.bf16.mxu0 0
        %2791 = vmatpush1.bf16.msra.mxu0 0
        %2792 = vmatprep.subr.bf16.mxu0 0
        %2793 = vmatpush1.bf16.msra.mxu0 0
        %2794 = vmatprep.subr.bf16.mxu0 0
        %2795 = vmatpush1.bf16.msra.mxu0 0
        %2796 = vmatprep.subr.bf16.mxu0 0
        %2797 = vmatpush1.bf16.msra.mxu0 0
        %2798 = vmatprep.subr.bf16.mxu0 0
        %2799 = vmatpush1.bf16.msra.mxu0 0
        %2800 = vmatprep.subr.bf16.mxu0 0
        %2801 = vmatpush1.bf16.msra.mxu0 0
        %2802 = vmatprep.subr.bf16.mxu0 0
        %2803 = vmatpush1.bf16.msra.mxu0 0
        %2804 = vmatprep.subr.bf16.mxu0 0
        %2805 = vmatpush1.bf16.msra.mxu0 0
        %2806 = vmatprep.subr.bf16.mxu0 0
        %2807 = vmatpush1.bf16.msra.mxu0 0
        %2808 = vmatprep.mubr.bf16.mxu0 0
        %2809 = vmatmul.mubr.bf16.gmra.mrb[0].mxu0 %v954
        %v2810 = vpop.f32.mrb[0].mxu0
        %v2811 = vadd.f32 0.0, %v2810
        %v2812 = vpop.f32.mrb[0].mxu0
        %v2813 = vpop.f32.mrb[0].mxu0
        %v2814 = vadd.f32 0.0, %v2813
        %v2815 = vpop.f32.mrb[0].mxu0
        %2816 = vmatprep.mubr.bf16.mxu0 0
        %2817 = vmatmul.mubr.bf16.gmra.mrb[0].mxu0 %v957
        %v2818 = vpop.f32.mrb[0].mxu0
        %v2819 = vadd.f32 0.0, %v2818
        %v2820 = vpop.f32.mrb[0].mxu0
        %v2821 = vpop.f32.mrb[0].mxu0
        %v2822 = vadd.f32 0.0, %v2821
        %v2823 = vpop.f32.mrb[0].mxu0
        %2824 = vmatprep.mubr.bf16.mxu0 0
        %2825 = vmatmul.mubr.bf16.gmra.mrb[0].mxu0 %v960
        %v2826 = vpop.f32.mrb[0].mxu0
        %v2827 = vadd.f32 0.0, %v2826
        %v2828 = vpop.f32.mrb[0].mxu0
        %v2829 = vpop.f32.mrb[0].mxu0
        %v2830 = vadd.f32 0.0, %v2829
        %v2831 = vpop.f32.mrb[0].mxu0
        %2832 = vmatprep.mubr.bf16.mxu0 0
        %2833 = vmatmul.mubr.bf16.gmra.mrb[0].mxu0 %v963
        %v2834 = vpop.f32.mrb[0].mxu0
        %v2835 = vadd.f32 0.0, %v2834
        %v2836 = vpop.f32.mrb[0].mxu0
        %v2837 = vpop.f32.mrb[0].mxu0
        %v2838 = vadd.f32 0.0, %v2837
        %v2839 = vpop.f32.mrb[0].mxu0
        %2840 = vmatprep.mubr.bf16.mxu0 0
        %2841 = vmatmul.mubr.bf16.gmra.mrb[0].mxu0 %v966
        %v2842 = vpop.f32.mrb[0].mxu0
        %v2843 = vadd.f32 0.0, %v2842
        %v2844 = vpop.f32.mrb[0].mxu0
        %v2845 = vpop.f32.mrb[0].mxu0
        %v2846 = vadd.f32 0.0, %v2845
        %v2847 = vpop.f32.mrb[0].mxu0
        %2848 = vmatprep.mubr.bf16.mxu0 0
        %2849 = vmatmul.mubr.bf16.gmra.mrb[0].mxu0 %v969
        %v2850 = vpop.f32.mrb[0].mxu0
        %v2851 = vadd.f32 0.0, %v2850
        %v2852 = vpop.f32.mrb[0].mxu0
        %v2853 = vpop.f32.mrb[0].mxu0
        %v2854 = vadd.f32 0.0, %v2853
        %v2855 = vpop.f32.mrb[0].mxu0
        %2856 = vmatprep.mubr.bf16.mxu0 0
        %2857 = vmatmul.mubr.bf16.gmra.mrb[0].mxu0 %v972
        %v2858 = vpop.f32.mrb[0].mxu0
        %v2859 = vadd.f32 0.0, %v2858
        %v2860 = vpop.f32.mrb[0].mxu0
        %v2861 = vpop.f32.mrb[0].mxu0
        %v2862 = vadd.f32 0.0, %v2861
        %v2863 = vpop.f32.mrb[0].mxu0
        %2864 = vmatprep.mubr.bf16.mxu0 0
        %2865 = vmatmul.mubr.bf16.gmra.mrb[0].mxu0 %v975
        %v2866 = vpop.f32.mrb[0].mxu0
        %v2867 = vadd.f32 0.0, %v2866
        %v2868 = vpop.f32.mrb[0].mxu0
        %v2869 = vpop.f32.mrb[0].mxu0
        %v2870 = vadd.f32 0.0, %v2869
        %v2871 = vpop.f32.mrb[0].mxu0
        %2872 = vmatprep.mubr.bf16.mxu0 0
        %2873 = vmatmul.mubr.bf16.gmra.mrb[0].mxu0 %v978
        %v2874 = vpop.f32.mrb[0].mxu0
        %v2875 = vadd.f32 0.0, %v2874
        %v2876 = vpop.f32.mrb[0].mxu0
        %v2877 = vpop.f32.mrb[0].mxu0
        %v2878 = vadd.f32 0.0, %v2877
        %v2879 = vpop.f32.mrb[0].mxu0
        %2880 = vmatprep.mubr.bf16.mxu0 0
        %2881 = vmatmul.mubr.bf16.gmra.mrb[0].mxu0 %v981
        %v2882 = vpop.f32.mrb[0].mxu0
        %v2883 = vadd.f32 0.0, %v2882
        %v2884 = vpop.f32.mrb[0].mxu0
        %v2885 = vpop.f32.mrb[0].mxu0
        %v2886 = vadd.f32 0.0, %v2885
        %v2887 = vpop.f32.mrb[0].mxu0
        %2888 = vmatprep.mubr.bf16.mxu0 0
        %2889 = vmatmul.mubr.bf16.gmra.mrb[0].mxu0 %v984
        %v2890 = vpop.f32.mrb[0].mxu0
        %v2891 = vadd.f32 0.0, %v2890
        %v2892 = vpop.f32.mrb[0].mxu0
        %v2893 = vpop.f32.mrb[0].mxu0
        %v2894 = vadd.f32 0.0, %v2893
        %v2895 = vpop.f32.mrb[0].mxu0
        %2896 = vmatprep.mubr.bf16.mxu0 0
        %2897 = vmatmul.mubr.bf16.gmra.mrb[0].mxu0 %v987
        %v2898 = vpop.f32.mrb[0].mxu0
        %v2899 = vadd.f32 0.0, %v2898
        %v2900 = vpop.f32.mrb[0].mxu0
        %v2901 = vpop.f32.mrb[0].mxu0
        %v2902 = vadd.f32 0.0, %v2901
        %v2903 = vpop.f32.mrb[0].mxu0
        %2904 = vmatprep.mubr.bf16.mxu0 0
        %2905 = vmatmul.mubr.bf16.gmra.mrb[0].mxu0 %v990
        %v2906 = vpop.f32.mrb[0].mxu0
        %v2907 = vadd.f32 0.0, %v2906
        %v2908 = vpop.f32.mrb[0].mxu0
        %v2909 = vpop.f32.mrb[0].mxu0
        %v2910 = vadd.f32 0.0, %v2909
        %v2911 = vpop.f32.mrb[0].mxu0
        %2912 = vmatprep.mubr.bf16.mxu0 0
        %2913 = vmatmul.mubr.bf16.gmra.mrb[0].mxu0 %v993
        %v2914 = vpop.f32.mrb[0].mxu0
        %v2915 = vadd.f32 0.0, %v2914
        %v2916 = vpop.f32.mrb[0].mxu0
        %v2917 = vpop.f32.mrb[0].mxu0
        %v2918 = vadd.f32 0.0, %v2917
        %v2919 = vpop.f32.mrb[0].mxu0
        %2920 = vmatprep.mubr.bf16.mxu0 0
        %2921 = vmatmul.mubr.bf16.gmra.mrb[0].mxu0 %v996
        %v2922 = vpop.f32.mrb[0].mxu0
        %v2923 = vadd.f32 0.0, %v2922
        %v2924 = vpop.f32.mrb[0].mxu0
        %v2925 = vpop.f32.mrb[0].mxu0
        %v2926 = vadd.f32 0.0, %v2925
        %v2927 = vpop.f32.mrb[0].mxu0
        %2928 = vmatprep.mubr.bf16.mxu0 0
        %2929 = vmatmul.mubr.bf16.gmra.mrb[0].mxu0 %v999
        %v2930 = vpop.f32.mrb[0].mxu0
        %v2931 = vadd.f32 0.0, %v2930
        %v2932 = vpop.f32.mrb[0].mxu0
        %v2933 = vpop.f32.mrb[0].mxu0
        %v2934 = vadd.f32 0.0, %v2933
        %v2935 = vpop.f32.mrb[0].mxu0
        %2936 = vmatprep.mubr.bf16.mxu0 0
        %2937 = vmatmul.mubr.bf16.gmra.mrb[0].mxu0 %v1002
        %v2938 = vpop.f32.mrb[0].mxu0
        %v2939 = vadd.f32 0.0, %v2938
        %v2940 = vpop.f32.mrb[0].mxu0
        %v2941 = vpop.f32.mrb[0].mxu0
        %v2942 = vadd.f32 0.0, %v2941
        %v2943 = vpop.f32.mrb[0].mxu0
        %2944 = vmatprep.mubr.bf16.mxu0 0
        %2945 = vmatmul.mubr.bf16.gmra.mrb[0].mxu0 %v1005
        %v2946 = vpop.f32.mrb[0].mxu0
        %v2947 = vadd.f32 0.0, %v2946
        %v2948 = vpop.f32.mrb[0].mxu0
        %v2949 = vpop.f32.mrb[0].mxu0
        %v2950 = vadd.f32 0.0, %v2949
        %v2951 = vpop.f32.mrb[0].mxu0
        %2952 = vmatprep.mubr.bf16.mxu0 0
        %2953 = vmatmul.mubr.bf16.gmra.mrb[0].mxu0 %v1008
        %v2954 = vpop.f32.mrb[0].mxu0
        %v2955 = vadd.f32 0.0, %v2954
        %v2956 = vpop.f32.mrb[0].mxu0
        %v2957 = vpop.f32.mrb[0].mxu0
        %v2958 = vadd.f32 0.0, %v2957
        %v2959 = vpop.f32.mrb[0].mxu0
        %2960 = vmatprep.mubr.bf16.mxu0 0
        %2961 = vmatmul.mubr.bf16.gmra.mrb[0].mxu0 %v1011
        %v2962 = vpop.f32.mrb[0].mxu0
        %v2963 = vadd.f32 0.0, %v2962
        %v2964 = vpop.f32.mrb[0].mxu0
        %v2965 = vpop.f32.mrb[0].mxu0
        %v2966 = vadd.f32 0.0, %v2965
        %v2967 = vpop.f32.mrb[0].mxu0
        %2968 = vmatprep.mubr.bf16.mxu0 0
        %2969 = vmatmul.mubr.bf16.gmra.mrb[0].mxu0 %v1014
        %v2970 = vpop.f32.mrb[0].mxu0
        %v2971 = vadd.f32 0.0, %v2970
        %v2972 = vpop.f32.mrb[0].mxu0
        %v2973 = vpop.f32.mrb[0].mxu0
        %v2974 = vadd.f32 0.0, %v2973
        %v2975 = vpop.f32.mrb[0].mxu0
        %2976 = vmatprep.mubr.bf16.mxu0 0
        %2977 = vmatmul.mubr.bf16.gmra.mrb[0].mxu0 %v1017
        %v2978 = vpop.f32.mrb[0].mxu0
        %v2979 = vadd.f32 0.0, %v2978
        %v2980 = vpop.f32.mrb[0].mxu0
        %v2981 = vpop.f32.mrb[0].mxu0
        %v2982 = vadd.f32 0.0, %v2981
        %v2983 = vpop.f32.mrb[0].mxu0
        %2984 = vmatprep.mubr.bf16.mxu0 0
        %2985 = vmatmul.mubr.bf16.gmra.mrb[0].mxu0 %v1020
        %v2986 = vpop.f32.mrb[0].mxu0
        %v2987 = vadd.f32 0.0, %v2986
        %v2988 = vpop.f32.mrb[0].mxu0
        %v2989 = vpop.f32.mrb[0].mxu0
        %v2990 = vadd.f32 0.0, %v2989
        %v2991 = vpop.f32.mrb[0].mxu0
        %2992 = vmatprep.mubr.bf16.mxu0 0
        %2993 = vmatmul.mubr.bf16.gmra.mrb[0].mxu0 %v1023
        %v2994 = vpop.f32.mrb[0].mxu0
        %v2995 = vadd.f32 0.0, %v2994
        %v2996 = vpop.f32.mrb[0].mxu0
        %v2997 = vpop.f32.mrb[0].mxu0
        %v2998 = vadd.f32 0.0, %v2997
        %v2999 = vpop.f32.mrb[0].mxu0
        %3000 = vmatprep.mubr.bf16.mxu0 0
        %3001 = vmatmul.mubr.bf16.gmra.mrb[0].mxu0 %v1026
        %v3002 = vpop.f32.mrb[0].mxu0
        %v3003 = vadd.f32 0.0, %v3002
        %v3004 = vpop.f32.mrb[0].mxu0
        %v3005 = vpop.f32.mrb[0].mxu0
        %v3006 = vadd.f32 0.0, %v3005
        %v3007 = vpop.f32.mrb[0].mxu0
        %3008 = vmatprep.mubr.bf16.mxu0 0
        %3009 = vmatmul.mubr.bf16.gmra.mrb[0].mxu0 %v1029
        %v3010 = vpop.f32.mrb[0].mxu0
        %v3011 = vadd.f32 0.0, %v3010
        %v3012 = vpop.f32.mrb[0].mxu0
        %v3013 = vpop.f32.mrb[0].mxu0
        %v3014 = vadd.f32 0.0, %v3013
        %v3015 = vpop.f32.mrb[0].mxu0
        %3016 = vmatprep.mubr.bf16.mxu0 0
        %3017 = vmatmul.mubr.bf16.gmra.mrb[0].mxu0 %v1032
        %v3018 = vpop.f32.mrb[0].mxu0
        %v3019 = vadd.f32 0.0, %v3018
        %v3020 = vpop.f32.mrb[0].mxu0
        %v3021 = vpop.f32.mrb[0].mxu0
        %v3022 = vadd.f32 0.0, %v3021
        %v3023 = vpop.f32.mrb[0].mxu0
        %3024 = vmatprep.mubr.bf16.mxu0 0
        %3025 = vmatmul.mubr.bf16.gmra.mrb[0].mxu0 %v1035
        %v3026 = vpop.f32.mrb[0].mxu0
        %v3027 = vadd.f32 0.0, %v3026
        %v3028 = vpop.f32.mrb[0].mxu0
        %v3029 = vpop.f32.mrb[0].mxu0
        %v3030 = vadd.f32 0.0, %v3029
        %v3031 = vpop.f32.mrb[0].mxu0
        %3032 = vmatprep.mubr.bf16.mxu0 0
        %3033 = vmatmul.mubr.bf16.gmra.mrb[0].mxu0 %v1038
        %v3034 = vpop.f32.mrb[0].mxu0
        %v3035 = vadd.f32 0.0, %v3034
        %v3036 = vpop.f32.mrb[0].mxu0
        %v3037 = vpop.f32.mrb[0].mxu0
        %v3038 = vadd.f32 0.0, %v3037
        %v3039 = vpop.f32.mrb[0].mxu0
        %3040 = vmatprep.mubr.bf16.mxu0 0
        %3041 = vmatmul.mubr.bf16.gmra.mrb[0].mxu0 %v1041
        %v3042 = vpop.f32.mrb[0].mxu0
        %v3043 = vadd.f32 0.0, %v3042
        %v3044 = vpop.f32.mrb[0].mxu0
        %v3045 = vpop.f32.mrb[0].mxu0
        %v3046 = vadd.f32 0.0, %v3045
        %v3047 = vpop.f32.mrb[0].mxu0
        %3048 = vmatprep.mubr.bf16.mxu0 0
        %3049 = vmatmul.mubr.bf16.gmra.mrb[0].mxu0 %v1044
        %v3050 = vpop.f32.mrb[0].mxu0
        %v3051 = vadd.f32 0.0, %v3050
        %v3052 = vpop.f32.mrb[0].mxu0
        %v3053 = vpop.f32.mrb[0].mxu0
        %v3054 = vadd.f32 0.0, %v3053
        %v3055 = vpop.f32.mrb[0].mxu0
        %3056 = vmatprep.mubr.bf16.mxu0 0
        %3057 = vmatmul.mubr.bf16.gmra.mrb[0].mxu0 %v1047
        %v3058 = vpop.f32.mrb[0].mxu0
        %v3059 = vadd.f32 0.0, %v3058
        %v3060 = vpop.f32.mrb[0].mxu0
        %v3061 = vpop.f32.mrb[0].mxu0
        %v3062 = vadd.f32 0.0, %v3061
        %v3063 = vpop.f32.mrb[0].mxu0
        %3064 = vdwg.mxu0
        %v3065 = vmul.f32 %v2473, %v2811
        %v3066 = vmul.f32 %v2475, %v2814
        %v3067 = vmul.f32 %v2477, %v2819
        %v3068 = vmul.f32 %v2479, %v2822
        %v3069 = vmul.f32 %v2481, %v2827
        %v3070 = vmul.f32 %v2483, %v2830
        %v3071 = vmul.f32 %v2485, %v2835
        %v3072 = vmul.f32 %v2487, %v2838
        %v3073 = vmul.f32 %v2489, %v2843
        %v3074 = vmul.f32 %v2491, %v2846
        %v3075 = vmul.f32 %v2493, %v2851
        %v3076 = vmul.f32 %v2495, %v2854
        %v3077 = vmul.f32 %v2497, %v2859
        %v3078 = vmul.f32 %v2499, %v2862
        %v3079 = vmul.f32 %v2501, %v2867
        %v3080 = vmul.f32 %v2503, %v2870
        %v3081 = vmul.f32 %v2505, %v2875
        %v3082 = vmul.f32 %v2507, %v2878
        %v3083 = vmul.f32 %v2509, %v2883
        %v3084 = vmul.f32 %v2511, %v2886
        %v3085 = vmul.f32 %v2513, %v2891
        %v3086 = vmul.f32 %v2515, %v2894
        %v3087 = vmul.f32 %v2517, %v2899
        %v3088 = vmul.f32 %v2519, %v2902
        %v3089 = vmul.f32 %v2521, %v2907
        %v3090 = vmul.f32 %v2523, %v2910
        %v3091 = vmul.f32 %v2525, %v2915
        %v3092 = vmul.f32 %v2527, %v2918
        %v3093 = vmul.f32 %v2529, %v2923
        %v3094 = vmul.f32 %v2531, %v2926
        %v3095 = vmul.f32 %v2533, %v2931
        %v3096 = vmul.f32 %v2535, %v2934
        %v3097 = vmul.f32 %v2537, %v2939
        %v3098 = vmul.f32 %v2539, %v2942
        %v3099 = vmul.f32 %v2541, %v2947
        %v3100 = vmul.f32 %v2543, %v2950
        %v3101 = vmul.f32 %v2545, %v2955
        %v3102 = vmul.f32 %v2547, %v2958
        %v3103 = vmul.f32 %v2549, %v2963
        %v3104 = vmul.f32 %v2551, %v2966
        %v3105 = vmul.f32 %v2553, %v2971
        %v3106 = vmul.f32 %v2555, %v2974
        %v3107 = vmul.f32 %v2557, %v2979
        %v3108 = vmul.f32 %v2559, %v2982
        %v3109 = vmul.f32 %v2561, %v2987
        %v3110 = vmul.f32 %v2563, %v2990
        %v3111 = vmul.f32 %v2565, %v2995
        %v3112 = vmul.f32 %v2567, %v2998
        %v3113 = vmul.f32 %v2569, %v3003
        %v3114 = vmul.f32 %v2571, %v3006
        %v3115 = vmul.f32 %v2573, %v3011
        %v3116 = vmul.f32 %v2575, %v3014
        %v3117 = vmul.f32 %v2577, %v3019
        %v3118 = vmul.f32 %v2579, %v3022
        %v3119 = vmul.f32 %v2581, %v3027
        %v3120 = vmul.f32 %v2583, %v3030
        %v3121 = vmul.f32 %v2585, %v3035
        %v3122 = vmul.f32 %v2587, %v3038
        %v3123 = vmul.f32 %v2589, %v3043
        %v3124 = vmul.f32 %v2591, %v3046
        %v3125 = vmul.f32 %v2593, %v3051
        %v3126 = vmul.f32 %v2595, %v3054
        %v3127 = vmul.f32 %v2597, %v3059
        %v3128 = vmul.f32 %v2599, %v3062
        %v3129 = vld [vmem:[%s491] sm:$0xf]
        %v3130 = vld [vmem:[%s491 + $0x4] sm:$0xf]
        %v3131 = vld [vmem:[%s491 + $0x8] sm:$0xf]
        %v3132 = vld [vmem:[%s491 + $0xc] sm:$0xf]
        %v3133 = vld [vmem:[%s491 + $0x10] sm:$0xf]
        %v3134 = vld [vmem:[%s491 + $0x14] sm:$0xf]
        %v3135 = vld [vmem:[%s491 + $0x18] sm:$0xf]
        %v3136 = vld [vmem:[%s491 + $0x1c] sm:$0xf]
        %v3137 = vld [vmem:[%s491 + $0x20] sm:$0xf]
        %v3138 = vld [vmem:[%s491 + $0x24] sm:$0xf]
        %v3139 = vld [vmem:[%s491 + $0x28] sm:$0xf]
        %v3140 = vld [vmem:[%s491 + $0x2c] sm:$0xf]
        %v3141 = vld [vmem:[%s491 + $0x30] sm:$0xf]
        %v3142 = vld [vmem:[%s491 + $0x34] sm:$0xf]
        %v3143 = vld [vmem:[%s491 + $0x38] sm:$0xf]
        %v3144 = vld [vmem:[%s491 + $0x3c] sm:$0xf]
        %v3145 = vld [vmem:[%s491 + $0x40] sm:$0xf]
        %v3146 = vld [vmem:[%s491 + $0x44] sm:$0xf]
        %v3147 = vld [vmem:[%s491 + $0x48] sm:$0xf]
        %v3148 = vld [vmem:[%s491 + $0x4c] sm:$0xf]
        %v3149 = vld [vmem:[%s491 + $0x50] sm:$0xf]
        %v3150 = vld [vmem:[%s491 + $0x54] sm:$0xf]
        %v3151 = vld [vmem:[%s491 + $0x58] sm:$0xf]
        %v3152 = vld [vmem:[%s491 + $0x5c] sm:$0xf]
        %v3153 = vld [vmem:[%s491 + $0x60] sm:$0xf]
        %v3154 = vld [vmem:[%s491 + $0x64] sm:$0xf]
        %v3155 = vld [vmem:[%s491 + $0x68] sm:$0xf]
        %v3156 = vld [vmem:[%s491 + $0x6c] sm:$0xf]
        %v3157 = vld [vmem:[%s491 + $0x70] sm:$0xf]
        %v3158 = vld [vmem:[%s491 + $0x74] sm:$0xf]
        %v3159 = vld [vmem:[%s491 + $0x78] sm:$0xf]
        %v3160 = vld [vmem:[%s491 + $0x7c] sm:$0xf]
        %v3161 = vld [vmem:[%s491 + $0x80] sm:$0xf]
        %v3162 = vld [vmem:[%s491 + $0x84] sm:$0xf]
        %v3163 = vld [vmem:[%s491 + $0x88] sm:$0xf]
        %v3164 = vld [vmem:[%s491 + $0x8c] sm:$0xf]
        %v3165 = vld [vmem:[%s491 + $0x90] sm:$0xf]
        %v3166 = vld [vmem:[%s491 + $0x94] sm:$0xf]
        %v3167 = vld [vmem:[%s491 + $0x98] sm:$0xf]
        %v3168 = vld [vmem:[%s491 + $0x9c] sm:$0xf]
        %v3169 = vld [vmem:[%s491 + $0xa0] sm:$0xf]
        %v3170 = vld [vmem:[%s491 + $0xa4] sm:$0xf]
        %v3171 = vld [vmem:[%s491 + $0xa8] sm:$0xf]
        %v3172 = vld [vmem:[%s491 + $0xac] sm:$0xf]
        %v3173 = vld [vmem:[%s491 + $0xb0] sm:$0xf]
        %v3174 = vld [vmem:[%s491 + $0xb4] sm:$0xf]
        %v3175 = vld [vmem:[%s491 + $0xb8] sm:$0xf]
        %v3176 = vld [vmem:[%s491 + $0xbc] sm:$0xf]
        %v3177 = vld [vmem:[%s491 + $0xc0] sm:$0xf]
        %v3178 = vld [vmem:[%s491 + $0xc4] sm:$0xf]
        %v3179 = vld [vmem:[%s491 + $0xc8] sm:$0xf]
        %v3180 = vld [vmem:[%s491 + $0xcc] sm:$0xf]
        %v3181 = vld [vmem:[%s491 + $0xd0] sm:$0xf]
        %v3182 = vld [vmem:[%s491 + $0xd4] sm:$0xf]
        %v3183 = vld [vmem:[%s491 + $0xd8] sm:$0xf]
        %v3184 = vld [vmem:[%s491 + $0xdc] sm:$0xf]
        %v3185 = vld [vmem:[%s491 + $0xe0] sm:$0xf]
        %v3186 = vld [vmem:[%s491 + $0xe4] sm:$0xf]
        %v3187 = vld [vmem:[%s491 + $0xe8] sm:$0xf]
        %v3188 = vld [vmem:[%s491 + $0xec] sm:$0xf]
        %v3189 = vld [vmem:[%s491 + $0xf0] sm:$0xf]
        %v3190 = vld [vmem:[%s491 + $0xf4] sm:$0xf]
        %v3191 = vld [vmem:[%s491 + $0xf8] sm:$0xf]
        %v3192 = vld [vmem:[%s491 + $0xfc] sm:$0xf]
        %v3193 = vunpack.c.l.bf16 %v3129
        %v3194 = vunpack.c.l.bf16 %v3130
        %v3195 = vunpack.c.l.bf16 %v3131
        %v3196 = vunpack.c.l.bf16 %v3132
        %v3197 = vunpack.c.l.bf16 %v3133
        %v3198 = vunpack.c.l.bf16 %v3134
        %v3199 = vunpack.c.l.bf16 %v3135
        %v3200 = vunpack.c.l.bf16 %v3136
        %v3201 = vunpack.c.l.bf16 %v3137
        %v3202 = vunpack.c.l.bf16 %v3138
        %v3203 = vunpack.c.l.bf16 %v3139
        %v3204 = vunpack.c.l.bf16 %v3140
        %v3205 = vunpack.c.l.bf16 %v3141
        %v3206 = vunpack.c.l.bf16 %v3142
        %v3207 = vunpack.c.l.bf16 %v3143
        %v3208 = vunpack.c.l.bf16 %v3144
        %v3209 = vunpack.c.l.bf16 %v3145
        %v3210 = vunpack.c.l.bf16 %v3146
        %v3211 = vunpack.c.l.bf16 %v3147
        %v3212 = vunpack.c.l.bf16 %v3148
        %v3213 = vunpack.c.l.bf16 %v3149
        %v3214 = vunpack.c.l.bf16 %v3150
        %v3215 = vunpack.c.l.bf16 %v3151
        %v3216 = vunpack.c.l.bf16 %v3152
        %v3217 = vunpack.c.l.bf16 %v3153
        %v3218 = vunpack.c.l.bf16 %v3154
        %v3219 = vunpack.c.l.bf16 %v3155
        %v3220 = vunpack.c.l.bf16 %v3156
        %v3221 = vunpack.c.l.bf16 %v3157
        %v3222 = vunpack.c.l.bf16 %v3158
        %v3223 = vunpack.c.l.bf16 %v3159
        %v3224 = vunpack.c.l.bf16 %v3160
        %v3225 = vunpack.c.l.bf16 %v3161
        %v3226 = vunpack.c.l.bf16 %v3162
        %v3227 = vunpack.c.l.bf16 %v3163
        %v3228 = vunpack.c.l.bf16 %v3164
        %v3229 = vunpack.c.l.bf16 %v3165
        %v3230 = vunpack.c.l.bf16 %v3166
        %v3231 = vunpack.c.l.bf16 %v3167
        %v3232 = vunpack.c.l.bf16 %v3168
        %v3233 = vunpack.c.l.bf16 %v3169
        %v3234 = vunpack.c.l.bf16 %v3170
        %v3235 = vunpack.c.l.bf16 %v3171
        %v3236 = vunpack.c.l.bf16 %v3172
        %v3237 = vunpack.c.l.bf16 %v3173
        %v3238 = vunpack.c.l.bf16 %v3174
        %v3239 = vunpack.c.l.bf16 %v3175
        %v3240 = vunpack.c.l.bf16 %v3176
        %v3241 = vunpack.c.l.bf16 %v3177
        %v3242 = vunpack.c.l.bf16 %v3178
        %v3243 = vunpack.c.l.bf16 %v3179
        %v3244 = vunpack.c.l.bf16 %v3180
        %v3245 = vunpack.c.l.bf16 %v3181
        %v3246 = vunpack.c.l.bf16 %v3182
        %v3247 = vunpack.c.l.bf16 %v3183
        %v3248 = vunpack.c.l.bf16 %v3184
        %v3249 = vunpack.c.l.bf16 %v3185
        %v3250 = vunpack.c.l.bf16 %v3186
        %v3251 = vunpack.c.l.bf16 %v3187
        %v3252 = vunpack.c.l.bf16 %v3188
        %v3253 = vunpack.c.l.bf16 %v3189
        %v3254 = vunpack.c.l.bf16 %v3190
        %v3255 = vunpack.c.l.bf16 %v3191
        %v3256 = vunpack.c.l.bf16 %v3192
        %3257 = vmatprep.subr.bf16.mxu0 0
        %3258 = vmatpush1.bf16.msra.mxu0 %v652
        %3259 = vmatprep.subr.bf16.mxu0 0
        %3260 = vmatpush1.bf16.msra.mxu0 %v654
        %3261 = vmatprep.subr.bf16.mxu0 0
        %3262 = vmatpush1.bf16.msra.mxu0 0
        %3263 = vmatprep.subr.bf16.mxu0 0
        %3264 = vmatpush1.bf16.msra.mxu0 0
        %3265 = vmatprep.subr.bf16.mxu0 0
        %3266 = vmatpush1.bf16.msra.mxu0 0
        %3267 = vmatprep.subr.bf16.mxu0 0
        %3268 = vmatpush1.bf16.msra.mxu0 0
        %3269 = vmatprep.subr.bf16.mxu0 0
        %3270 = vmatpush1.bf16.msra.mxu0 0
        %3271 = vmatprep.subr.bf16.mxu0 0
        %3272 = vmatpush1.bf16.msra.mxu0 0
        %3273 = vmatprep.subr.bf16.mxu0 0
        %3274 = vmatpush1.bf16.msra.mxu0 0
        %3275 = vmatprep.subr.bf16.mxu0 0
        %3276 = vmatpush1.bf16.msra.mxu0 0
        %3277 = vmatprep.subr.bf16.mxu0 0
        %3278 = vmatpush1.bf16.msra.mxu0 0
        %3279 = vmatprep.subr.bf16.mxu0 0
        %3280 = vmatpush1.bf16.msra.mxu0 0
        %3281 = vmatprep.subr.bf16.mxu0 0
        %3282 = vmatpush1.bf16.msra.mxu0 0
        %3283 = vmatprep.subr.bf16.mxu0 0
        %3284 = vmatpush1.bf16.msra.mxu0 0
        %3285 = vmatprep.subr.bf16.mxu0 0
        %3286 = vmatpush1.bf16.msra.mxu0 0
        %3287 = vmatprep.subr.bf16.mxu0 0
        %3288 = vmatpush1.bf16.msra.mxu0 0
        %3289 = vmatprep.mubr.bf16.mxu0 0
        %3290 = vmatmul.mubr.bf16.gmra.mrb[0].mxu0 %v1507
        %v3291 = vpop.f32.mrb[0].mxu0
        %v3292 = vadd.f32 %v3193, %v3291
        %v3293 = vpop.f32.mrb[0].mxu0
        %v3294 = vpop.f32.mrb[0].mxu0
        %v3295 = vadd.f32 %v3194, %v3294
        %v3296 = vpop.f32.mrb[0].mxu0
        %3297 = vmatprep.mubr.bf16.mxu0 0
        %3298 = vmatmul.mubr.bf16.gmra.mrb[0].mxu0 %v1510
        %v3299 = vpop.f32.mrb[0].mxu0
        %v3300 = vadd.f32 %v3195, %v3299
        %v3301 = vpop.f32.mrb[0].mxu0
        %v3302 = vpop.f32.mrb[0].mxu0
        %v3303 = vadd.f32 %v3196, %v3302
        %v3304 = vpop.f32.mrb[0].mxu0
        %3305 = vmatprep.mubr.bf16.mxu0 0
        %3306 = vmatmul.mubr.bf16.gmra.mrb[0].mxu0 %v1513
        %v3307 = vpop.f32.mrb[0].mxu0
        %v3308 = vadd.f32 %v3197, %v3307
        %v3309 = vpop.f32.mrb[0].mxu0
        %v3310 = vpop.f32.mrb[0].mxu0
        %v3311 = vadd.f32 %v3198, %v3310
        %v3312 = vpop.f32.mrb[0].mxu0
        %3313 = vmatprep.mubr.bf16.mxu0 0
        %3314 = vmatmul.mubr.bf16.gmra.mrb[0].mxu0 %v1516
        %v3315 = vpop.f32.mrb[0].mxu0
        %v3316 = vadd.f32 %v3199, %v3315
        %v3317 = vpop.f32.mrb[0].mxu0
        %v3318 = vpop.f32.mrb[0].mxu0
        %v3319 = vadd.f32 %v3200, %v3318
        %v3320 = vpop.f32.mrb[0].mxu0
        %3321 = vmatprep.mubr.bf16.mxu0 0
        %3322 = vmatmul.mubr.bf16.gmra.mrb[0].mxu0 %v1519
        %v3323 = vpop.f32.mrb[0].mxu0
        %v3324 = vadd.f32 %v3201, %v3323
        %v3325 = vpop.f32.mrb[0].mxu0
        %v3326 = vpop.f32.mrb[0].mxu0
        %v3327 = vadd.f32 %v3202, %v3326
        %v3328 = vpop.f32.mrb[0].mxu0
        %3329 = vmatprep.mubr.bf16.mxu0 0
        %3330 = vmatmul.mubr.bf16.gmra.mrb[0].mxu0 %v1522
        %v3331 = vpop.f32.mrb[0].mxu0
        %v3332 = vadd.f32 %v3203, %v3331
        %v3333 = vpop.f32.mrb[0].mxu0
        %v3334 = vpop.f32.mrb[0].mxu0
        %v3335 = vadd.f32 %v3204, %v3334
        %v3336 = vpop.f32.mrb[0].mxu0
        %3337 = vmatprep.mubr.bf16.mxu0 0
        %3338 = vmatmul.mubr.bf16.gmra.mrb[0].mxu0 %v1525
        %v3339 = vpop.f32.mrb[0].mxu0
        %v3340 = vadd.f32 %v3205, %v3339
        %v3341 = vpop.f32.mrb[0].mxu0
        %v3342 = vpop.f32.mrb[0].mxu0
        %v3343 = vadd.f32 %v3206, %v3342
        %v3344 = vpop.f32.mrb[0].mxu0
        %3345 = vmatprep.mubr.bf16.mxu0 0
        %3346 = vmatmul.mubr.bf16.gmra.mrb[0].mxu0 %v1528
        %v3347 = vpop.f32.mrb[0].mxu0
        %v3348 = vadd.f32 %v3207, %v3347
        %v3349 = vpop.f32.mrb[0].mxu0
        %v3350 = vpop.f32.mrb[0].mxu0
        %v3351 = vadd.f32 %v3208, %v3350
        %v3352 = vpop.f32.mrb[0].mxu0
        %3353 = vmatprep.mubr.bf16.mxu0 0
        %3354 = vmatmul.mubr.bf16.gmra.mrb[0].mxu0 %v1531
        %v3355 = vpop.f32.mrb[0].mxu0
        %v3356 = vadd.f32 %v3209, %v3355
        %v3357 = vpop.f32.mrb[0].mxu0
        %v3358 = vpop.f32.mrb[0].mxu0
        %v3359 = vadd.f32 %v3210, %v3358
        %v3360 = vpop.f32.mrb[0].mxu0
        %3361 = vmatprep.mubr.bf16.mxu0 0
        %3362 = vmatmul.mubr.bf16.gmra.mrb[0].mxu0 %v1534
        %v3363 = vpop.f32.mrb[0].mxu0
        %v3364 = vadd.f32 %v3211, %v3363
        %v3365 = vpop.f32.mrb[0].mxu0
        %v3366 = vpop.f32.mrb[0].mxu0
        %v3367 = vadd.f32 %v3212, %v3366
        %v3368 = vpop.f32.mrb[0].mxu0
        %3369 = vmatprep.mubr.bf16.mxu0 0
        %3370 = vmatmul.mubr.bf16.gmra.mrb[0].mxu0 %v1537
        %v3371 = vpop.f32.mrb[0].mxu0
        %v3372 = vadd.f32 %v3213, %v3371
        %v3373 = vpop.f32.mrb[0].mxu0
        %v3374 = vpop.f32.mrb[0].mxu0
        %v3375 = vadd.f32 %v3214, %v3374
        %v3376 = vpop.f32.mrb[0].mxu0
        %3377 = vmatprep.mubr.bf16.mxu0 0
        %3378 = vmatmul.mubr.bf16.gmra.mrb[0].mxu0 %v1540
        %v3379 = vpop.f32.mrb[0].mxu0
        %v3380 = vadd.f32 %v3215, %v3379
        %v3381 = vpop.f32.mrb[0].mxu0
        %v3382 = vpop.f32.mrb[0].mxu0
        %v3383 = vadd.f32 %v3216, %v3382
        %v3384 = vpop.f32.mrb[0].mxu0
        %3385 = vmatprep.mubr.bf16.mxu0 0
        %3386 = vmatmul.mubr.bf16.gmra.mrb[0].mxu0 %v1543
        %v3387 = vpop.f32.mrb[0].mxu0
        %v3388 = vadd.f32 %v3217, %v3387
        %v3389 = vpop.f32.mrb[0].mxu0
        %v3390 = vpop.f32.mrb[0].mxu0
        %v3391 = vadd.f32 %v3218, %v3390
        %v3392 = vpop.f32.mrb[0].mxu0
        %3393 = vmatprep.mubr.bf16.mxu0 0
        %3394 = vmatmul.mubr.bf16.gmra.mrb[0].mxu0 %v1546
        %v3395 = vpop.f32.mrb[0].mxu0
        %v3396 = vadd.f32 %v3219, %v3395
        %v3397 = vpop.f32.mrb[0].mxu0
        %v3398 = vpop.f32.mrb[0].mxu0
        %v3399 = vadd.f32 %v3220, %v3398
        %v3400 = vpop.f32.mrb[0].mxu0
        %3401 = vmatprep.mubr.bf16.mxu0 0
        %3402 = vmatmul.mubr.bf16.gmra.mrb[0].mxu0 %v1549
        %v3403 = vpop.f32.mrb[0].mxu0
        %v3404 = vadd.f32 %v3221, %v3403
        %v3405 = vpop.f32.mrb[0].mxu0
        %v3406 = vpop.f32.mrb[0].mxu0
        %v3407 = vadd.f32 %v3222, %v3406
        %v3408 = vpop.f32.mrb[0].mxu0
        %3409 = vmatprep.mubr.bf16.mxu0 0
        %3410 = vmatmul.mubr.bf16.gmra.mrb[0].mxu0 %v1552
        %v3411 = vpop.f32.mrb[0].mxu0
        %v3412 = vadd.f32 %v3223, %v3411
        %v3413 = vpop.f32.mrb[0].mxu0
        %v3414 = vpop.f32.mrb[0].mxu0
        %v3415 = vadd.f32 %v3224, %v3414
        %v3416 = vpop.f32.mrb[0].mxu0
        %3417 = vmatprep.mubr.bf16.mxu0 0
        %3418 = vmatmul.mubr.bf16.gmra.mrb[0].mxu0 %v1555
        %v3419 = vpop.f32.mrb[0].mxu0
        %v3420 = vadd.f32 %v3225, %v3419
        %v3421 = vpop.f32.mrb[0].mxu0
        %v3422 = vpop.f32.mrb[0].mxu0
        %v3423 = vadd.f32 %v3226, %v3422
        %v3424 = vpop.f32.mrb[0].mxu0
        %3425 = vmatprep.mubr.bf16.mxu0 0
        %3426 = vmatmul.mubr.bf16.gmra.mrb[0].mxu0 %v1558
        %v3427 = vpop.f32.mrb[0].mxu0
        %v3428 = vadd.f32 %v3227, %v3427
        %v3429 = vpop.f32.mrb[0].mxu0
        %v3430 = vpop.f32.mrb[0].mxu0
        %v3431 = vadd.f32 %v3228, %v3430
        %v3432 = vpop.f32.mrb[0].mxu0
        %3433 = vmatprep.mubr.bf16.mxu0 0
        %3434 = vmatmul.mubr.bf16.gmra.mrb[0].mxu0 %v1561
        %v3435 = vpop.f32.mrb[0].mxu0
        %v3436 = vadd.f32 %v3229, %v3435
        %v3437 = vpop.f32.mrb[0].mxu0
        %v3438 = vpop.f32.mrb[0].mxu0
        %v3439 = vadd.f32 %v3230, %v3438
        %v3440 = vpop.f32.mrb[0].mxu0
        %3441 = vmatprep.mubr.bf16.mxu0 0
        %3442 = vmatmul.mubr.bf16.gmra.mrb[0].mxu0 %v1564
        %v3443 = vpop.f32.mrb[0].mxu0
        %v3444 = vadd.f32 %v3231, %v3443
        %v3445 = vpop.f32.mrb[0].mxu0
        %v3446 = vpop.f32.mrb[0].mxu0
        %v3447 = vadd.f32 %v3232, %v3446
        %v3448 = vpop.f32.mrb[0].mxu0
        %3449 = vmatprep.mubr.bf16.mxu0 0
        %3450 = vmatmul.mubr.bf16.gmra.mrb[0].mxu0 %v1567
        %v3451 = vpop.f32.mrb[0].mxu0
        %v3452 = vadd.f32 %v3233, %v3451
        %v3453 = vpop.f32.mrb[0].mxu0
        %v3454 = vpop.f32.mrb[0].mxu0
        %v3455 = vadd.f32 %v3234, %v3454
        %v3456 = vpop.f32.mrb[0].mxu0
        %3457 = vmatprep.mubr.bf16.mxu0 0
        %3458 = vmatmul.mubr.bf16.gmra.mrb[0].mxu0 %v1570
        %v3459 = vpop.f32.mrb[0].mxu0
        %v3460 = vadd.f32 %v3235, %v3459
        %v3461 = vpop.f32.mrb[0].mxu0
        %v3462 = vpop.f32.mrb[0].mxu0
        %v3463 = vadd.f32 %v3236, %v3462
        %v3464 = vpop.f32.mrb[0].mxu0
        %3465 = vmatprep.mubr.bf16.mxu0 0
        %3466 = vmatmul.mubr.bf16.gmra.mrb[0].mxu0 %v1573
        %v3467 = vpop.f32.mrb[0].mxu0
        %v3468 = vadd.f32 %v3237, %v3467
        %v3469 = vpop.f32.mrb[0].mxu0
        %v3470 = vpop.f32.mrb[0].mxu0
        %v3471 = vadd.f32 %v3238, %v3470
        %v3472 = vpop.f32.mrb[0].mxu0
        %3473 = vmatprep.mubr.bf16.mxu0 0
        %3474 = vmatmul.mubr.bf16.gmra.mrb[0].mxu0 %v1576
        %v3475 = vpop.f32.mrb[0].mxu0
        %v3476 = vadd.f32 %v3239, %v3475
        %v3477 = vpop.f32.mrb[0].mxu0
        %v3478 = vpop.f32.mrb[0].mxu0
        %v3479 = vadd.f32 %v3240, %v3478
        %v3480 = vpop.f32.mrb[0].mxu0
        %3481 = vmatprep.mubr.bf16.mxu0 0
        %3482 = vmatmul.mubr.bf16.gmra.mrb[0].mxu0 %v1579
        %v3483 = vpop.f32.mrb[0].mxu0
        %v3484 = vadd.f32 %v3241, %v3483
        %v3485 = vpop.f32.mrb[0].mxu0
        %v3486 = vpop.f32.mrb[0].mxu0
        %v3487 = vadd.f32 %v3242, %v3486
        %v3488 = vpop.f32.mrb[0].mxu0
        %3489 = vmatprep.mubr.bf16.mxu0 0
        %3490 = vmatmul.mubr.bf16.gmra.mrb[0].mxu0 %v1582
        %v3491 = vpop.f32.mrb[0].mxu0
        %v3492 = vadd.f32 %v3243, %v3491
        %v3493 = vpop.f32.mrb[0].mxu0
        %v3494 = vpop.f32.mrb[0].mxu0
        %v3495 = vadd.f32 %v3244, %v3494
        %v3496 = vpop.f32.mrb[0].mxu0
        %3497 = vmatprep.mubr.bf16.mxu0 0
        %3498 = vmatmul.mubr.bf16.gmra.mrb[0].mxu0 %v1585
        %v3499 = vpop.f32.mrb[0].mxu0
        %v3500 = vadd.f32 %v3245, %v3499
        %v3501 = vpop.f32.mrb[0].mxu0
        %v3502 = vpop.f32.mrb[0].mxu0
        %v3503 = vadd.f32 %v3246, %v3502
        %v3504 = vpop.f32.mrb[0].mxu0
        %3505 = vmatprep.mubr.bf16.mxu0 0
        %3506 = vmatmul.mubr.bf16.gmra.mrb[0].mxu0 %v1588
        %v3507 = vpop.f32.mrb[0].mxu0
        %v3508 = vadd.f32 %v3247, %v3507
        %v3509 = vpop.f32.mrb[0].mxu0
        %v3510 = vpop.f32.mrb[0].mxu0
        %v3511 = vadd.f32 %v3248, %v3510
        %v3512 = vpop.f32.mrb[0].mxu0
        %3513 = vmatprep.mubr.bf16.mxu0 0
        %3514 = vmatmul.mubr.bf16.gmra.mrb[0].mxu0 %v1591
        %v3515 = vpop.f32.mrb[0].mxu0
        %v3516 = vadd.f32 %v3249, %v3515
        %v3517 = vpop.f32.mrb[0].mxu0
        %v3518 = vpop.f32.mrb[0].mxu0
        %v3519 = vadd.f32 %v3250, %v3518
        %v3520 = vpop.f32.mrb[0].mxu0
        %3521 = vmatprep.mubr.bf16.mxu0 0
        %3522 = vmatmul.mubr.bf16.gmra.mrb[0].mxu0 %v1594
        %v3523 = vpop.f32.mrb[0].mxu0
        %v3524 = vadd.f32 %v3251, %v3523
        %v3525 = vpop.f32.mrb[0].mxu0
        %v3526 = vpop.f32.mrb[0].mxu0
        %v3527 = vadd.f32 %v3252, %v3526
        %v3528 = vpop.f32.mrb[0].mxu0
        %3529 = vmatprep.mubr.bf16.mxu0 0
        %3530 = vmatmul.mubr.bf16.gmra.mrb[0].mxu0 %v1597
        %v3531 = vpop.f32.mrb[0].mxu0
        %v3532 = vadd.f32 %v3253, %v3531
        %v3533 = vpop.f32.mrb[0].mxu0
        %v3534 = vpop.f32.mrb[0].mxu0
        %v3535 = vadd.f32 %v3254, %v3534
        %v3536 = vpop.f32.mrb[0].mxu0
        %3537 = vmatprep.mubr.bf16.mxu0 0
        %3538 = vmatmul.mubr.bf16.gmra.mrb[0].mxu0 %v1600
        %v3539 = vpop.f32.mrb[0].mxu0
        %v3540 = vadd.f32 %v3255, %v3539
        %v3541 = vpop.f32.mrb[0].mxu0
        %v3542 = vpop.f32.mrb[0].mxu0
        %v3543 = vadd.f32 %v3256, %v3542
        %v3544 = vpop.f32.mrb[0].mxu0
        %3545 = vdwg.mxu0
        %v3546 = vmul.f32 %v3065, %v3292
        %v3547 = vmul.f32 %v3066, %v3295
        %v3548 = vmul.f32 %v3067, %v3300
        %v3549 = vmul.f32 %v3068, %v3303
        %v3550 = vmul.f32 %v3069, %v3308
        %v3551 = vmul.f32 %v3070, %v3311
        %v3552 = vmul.f32 %v3071, %v3316
        %v3553 = vmul.f32 %v3072, %v3319
        %v3554 = vmul.f32 %v3073, %v3324
        %v3555 = vmul.f32 %v3074, %v3327
        %v3556 = vmul.f32 %v3075, %v3332
        %v3557 = vmul.f32 %v3076, %v3335
        %v3558 = vmul.f32 %v3077, %v3340
        %v3559 = vmul.f32 %v3078, %v3343
        %v3560 = vmul.f32 %v3079, %v3348
        %v3561 = vmul.f32 %v3080, %v3351
        %v3562 = vmul.f32 %v3081, %v3356
        %v3563 = vmul.f32 %v3082, %v3359
        %v3564 = vmul.f32 %v3083, %v3364
        %v3565 = vmul.f32 %v3084, %v3367
        %v3566 = vmul.f32 %v3085, %v3372
        %v3567 = vmul.f32 %v3086, %v3375
        %v3568 = vmul.f32 %v3087, %v3380
        %v3569 = vmul.f32 %v3088, %v3383
        %v3570 = vmul.f32 %v3089, %v3388
        %v3571 = vmul.f32 %v3090, %v3391
        %v3572 = vmul.f32 %v3091, %v3396
        %v3573 = vmul.f32 %v3092, %v3399
        %v3574 = vmul.f32 %v3093, %v3404
        %v3575 = vmul.f32 %v3094, %v3407
        %v3576 = vmul.f32 %v3095, %v3412
        %v3577 = vmul.f32 %v3096, %v3415
        %v3578 = vmul.f32 %v3097, %v3420
        %v3579 = vmul.f32 %v3098, %v3423
        %v3580 = vmul.f32 %v3099, %v3428
        %v3581 = vmul.f32 %v3100, %v3431
        %v3582 = vmul.f32 %v3101, %v3436
        %v3583 = vmul.f32 %v3102, %v3439
        %v3584 = vmul.f32 %v3103, %v3444
        %v3585 = vmul.f32 %v3104, %v3447
        %v3586 = vmul.f32 %v3105, %v3452
        %v3587 = vmul.f32 %v3106, %v3455
        %v3588 = vmul.f32 %v3107, %v3460
        %v3589 = vmul.f32 %v3108, %v3463
        %v3590 = vmul.f32 %v3109, %v3468
        %v3591 = vmul.f32 %v3110, %v3471
        %v3592 = vmul.f32 %v3111, %v3476
        %v3593 = vmul.f32 %v3112, %v3479
        %v3594 = vmul.f32 %v3113, %v3484
        %v3595 = vmul.f32 %v3114, %v3487
        %v3596 = vmul.f32 %v3115, %v3492
        %v3597 = vmul.f32 %v3116, %v3495
        %v3598 = vmul.f32 %v3117, %v3500
        %v3599 = vmul.f32 %v3118, %v3503
        %v3600 = vmul.f32 %v3119, %v3508
        %v3601 = vmul.f32 %v3120, %v3511
        %v3602 = vmul.f32 %v3121, %v3516
        %v3603 = vmul.f32 %v3122, %v3519
        %v3604 = vmul.f32 %v3123, %v3524
        %v3605 = vmul.f32 %v3124, %v3527
        %v3606 = vmul.f32 %v3125, %v3532
        %v3607 = vmul.f32 %v3126, %v3535
        %v3608 = vmul.f32 %v3127, %v3540
        %v3609 = vmul.f32 %v3128, %v3543
        %v3610 = vpack.c.bf16 %v3547, %v3546
        %v3611 = vpack.c.bf16 %v3549, %v3548
        %v3612 = vpack.c.bf16 %v3551, %v3550
        %v3613 = vpack.c.bf16 %v3553, %v3552
        %v3614 = vpack.c.bf16 %v3555, %v3554
        %v3615 = vpack.c.bf16 %v3557, %v3556
        %v3616 = vpack.c.bf16 %v3559, %v3558
        %v3617 = vpack.c.bf16 %v3561, %v3560
        %v3618 = vpack.c.bf16 %v3563, %v3562
        %v3619 = vpack.c.bf16 %v3565, %v3564
        %v3620 = vpack.c.bf16 %v3567, %v3566
        %v3621 = vpack.c.bf16 %v3569, %v3568
        %v3622 = vpack.c.bf16 %v3571, %v3570
        %v3623 = vpack.c.bf16 %v3573, %v3572
        %v3624 = vpack.c.bf16 %v3575, %v3574
        %v3625 = vpack.c.bf16 %v3577, %v3576
        %v3626 = vpack.c.bf16 %v3579, %v3578
        %v3627 = vpack.c.bf16 %v3581, %v3580
        %v3628 = vpack.c.bf16 %v3583, %v3582
        %v3629 = vpack.c.bf16 %v3585, %v3584
        %v3630 = vpack.c.bf16 %v3587, %v3586
        %v3631 = vpack.c.bf16 %v3589, %v3588
        %v3632 = vpack.c.bf16 %v3591, %v3590
        %v3633 = vpack.c.bf16 %v3593, %v3592
        %v3634 = vpack.c.bf16 %v3595, %v3594
        %v3635 = vpack.c.bf16 %v3597, %v3596
        %v3636 = vpack.c.bf16 %v3599, %v3598
        %v3637 = vpack.c.bf16 %v3601, %v3600
        %v3638 = vpack.c.bf16 %v3603, %v3602
        %v3639 = vpack.c.bf16 %v3605, %v3604
        %v3640 = vpack.c.bf16 %v3607, %v3606
        %v3641 = vpack.c.bf16 %v3609, %v3608
        %3642 = vmatprep.subr.bf16.mxu0 0
        %3643 = vmatpush1.bf16.msra.mxu0 %v3610
        %3644 = vmatprep.subr.bf16.mxu0 0
        %3645 = vmatpush1.bf16.msra.mxu0 %v3611
        %3646 = vmatprep.subr.bf16.mxu0 0
        %3647 = vmatpush1.bf16.msra.mxu0 %v3612
        %3648 = vmatprep.subr.bf16.mxu0 0
        %3649 = vmatpush1.bf16.msra.mxu0 %v3613
        %3650 = vmatprep.subr.bf16.mxu0 0
        %3651 = vmatpush1.bf16.msra.mxu0 %v3614
        %3652 = vmatprep.subr.bf16.mxu0 0
        %3653 = vmatpush1.bf16.msra.mxu0 %v3615
        %3654 = vmatprep.subr.bf16.mxu0 0
        %3655 = vmatpush1.bf16.msra.mxu0 %v3616
        %3656 = vmatprep.subr.bf16.mxu0 0
        %3657 = vmatpush1.bf16.msra.mxu0 %v3617
        %3658 = vmatprep.subr.bf16.mxu0 0
        %3659 = vmatpush1.bf16.msra.mxu0 %v3618
        %3660 = vmatprep.subr.bf16.mxu0 0
        %3661 = vmatpush1.bf16.msra.mxu0 %v3619
        %3662 = vmatprep.subr.bf16.mxu0 0
        %3663 = vmatpush1.bf16.msra.mxu0 %v3620
        %3664 = vmatprep.subr.bf16.mxu0 0
        %3665 = vmatpush1.bf16.msra.mxu0 %v3621
        %3666 = vmatprep.subr.bf16.mxu0 0
        %3667 = vmatpush1.bf16.msra.mxu0 %v3622
        %3668 = vmatprep.subr.bf16.mxu0 0
        %3669 = vmatpush1.bf16.msra.mxu0 %v3623
        %3670 = vmatprep.subr.bf16.mxu0 0
        %3671 = vmatpush1.bf16.msra.mxu0 %v3624
        %3672 = vmatprep.subr.bf16.mxu0 0
        %3673 = vmatpush1.bf16.msra.mxu0 %v3625
        %3674 = vmatprep.mubr.bf16.mxu0 %v2657
        %3675 = vmatmul.mubr.bf16.gmra.mrb[0].mxu0 %v2656
        %v3676 = vpop.f32.mrb[0].mxu0
        %v3677 = vadd.f32 0.0, %v3676
        %v3678 = vpop.f32.mrb[0].mxu0
        %v3679 = vpop.f32.mrb[0].mxu0
        %v3680 = vadd.f32 0.0, %v3679
        %v3681 = vpop.f32.mrb[0].mxu0
        %3682 = vmatprep.mubr.bf16.mxu0 %v2661
        %3683 = vmatmul.mubr.bf16.gmra.mrb[0].mxu0 %v2660
        %v3684 = vpop.f32.mrb[0].mxu0
        %v3685 = vadd.f32 0.0, %v3684
        %v3686 = vpop.f32.mrb[0].mxu0
        %v3687 = vpop.f32.mrb[0].mxu0
        %v3688 = vadd.f32 0.0, %v3687
        %v3689 = vpop.f32.mrb[0].mxu0
        %3690 = vdwg.mxu0
        %3691 = vmatprep.subr.bf16.mxu0 0
        %3692 = vmatpush1.bf16.msra.mxu0 %v3626
        %3693 = vmatprep.subr.bf16.mxu0 0
        %3694 = vmatpush1.bf16.msra.mxu0 %v3627
        %3695 = vmatprep.subr.bf16.mxu0 0
        %3696 = vmatpush1.bf16.msra.mxu0 %v3628
        %3697 = vmatprep.subr.bf16.mxu0 0
        %3698 = vmatpush1.bf16.msra.mxu0 %v3629
        %3699 = vmatprep.subr.bf16.mxu0 0
        %3700 = vmatpush1.bf16.msra.mxu0 %v3630
        %3701 = vmatprep.subr.bf16.mxu0 0
        %3702 = vmatpush1.bf16.msra.mxu0 %v3631
        %3703 = vmatprep.subr.bf16.mxu0 0
        %3704 = vmatpush1.bf16.msra.mxu0 %v3632
        %3705 = vmatprep.subr.bf16.mxu0 0
        %3706 = vmatpush1.bf16.msra.mxu0 %v3633
        %3707 = vmatprep.subr.bf16.mxu0 0
        %3708 = vmatpush1.bf16.msra.mxu0 %v3634
        %3709 = vmatprep.subr.bf16.mxu0 0
        %3710 = vmatpush1.bf16.msra.mxu0 %v3635
        %3711 = vmatprep.subr.bf16.mxu0 0
        %3712 = vmatpush1.bf16.msra.mxu0 %v3636
        %3713 = vmatprep.subr.bf16.mxu0 0
        %3714 = vmatpush1.bf16.msra.mxu0 %v3637
        %3715 = vmatprep.subr.bf16.mxu0 0
        %3716 = vmatpush1.bf16.msra.mxu0 %v3638
        %3717 = vmatprep.subr.bf16.mxu0 0
        %3718 = vmatpush1.bf16.msra.mxu0 %v3639
        %3719 = vmatprep.subr.bf16.mxu0 0
        %3720 = vmatpush1.bf16.msra.mxu0 %v3640
        %3721 = vmatprep.subr.bf16.mxu0 0
        %3722 = vmatpush1.bf16.msra.mxu0 %v3641
        %3723 = vmatprep.mubr.bf16.mxu0 %v2659
        %3724 = vmatmul.mubr.bf16.gmra.mrb[0].mxu0 %v2658
        %v3725 = vpop.f32.mrb[0].mxu0
        %v3726 = vadd.f32 %v3677, %v3725
        %v3727 = vpop.f32.mrb[0].mxu0
        %v3728 = vpop.f32.mrb[0].mxu0
        %v3729 = vadd.f32 %v3680, %v3728
        %v3730 = vpop.f32.mrb[0].mxu0
        %3731 = vmatprep.mubr.bf16.mxu0 %v2663
        %3732 = vmatmul.mubr.bf16.gmra.mrb[0].mxu0 %v2662
        %v3733 = vpop.f32.mrb[0].mxu0
        %v3734 = vadd.f32 %v3685, %v3733
        %v3735 = vpop.f32.mrb[0].mxu0
        %v3736 = vpop.f32.mrb[0].mxu0
        %v3737 = vadd.f32 %v3688, %v3736
        %v3738 = vpop.f32.mrb[0].mxu0
        %3739 = vdwg.mxu0
        %vm3740 = vcmp.gt.f32.partialorder %v3726, 0.0
        %vm3741 = vcmp.gt.f32.partialorder %v3729, 0.0
        %vm3742 = vcmp.gt.f32.partialorder %v3734, 0.0
        %vm3743 = vcmp.gt.f32.partialorder %v3737, 0.0
        %v3744 = vmul.f32 %v3726, 1.442695
        %v3745 = vpow.pop %v3744
        %v3746 = vmul.f32 %v3729, 1.442695
        %v3747 = vpow.pop %v3746
        %v3748 = vmul.f32 %v3734, 1.442695
        %v3749 = vpow.pop %v3748
        %v3750 = vmul.f32 %v3737, 1.442695
        %v3751 = vpow.pop %v3750
        %v3752 = vsub.f32 %v3745, 1.0
        %v3753 = vsub.f32 %v3747, 1.0
        %v3754 = vsub.f32 %v3749, 1.0
        %v3755 = vsub.f32 %v3751, 1.0
        %v3756 = vsel %vm3740, %v3726, %v3752
        %v3757 = vsel %vm3741, %v3729, %v3753
        %v3758 = vsel %vm3742, %v3734, %v3754
        %v3759 = vsel %vm3743, %v3737, %v3755
        %3760 = vst.msk [vmem:[#allocation2] sm:$0xff] %vm592, %v3756
        %3761 = vst.msk [vmem:[#allocation2 + $0x8] sm:$0xff] %vm592, %v3757
        %3762 = vst.msk [vmem:[#allocation2 + $0x10] sm:$0xff] %vm592, %v3758
        %3763 = vst.msk [vmem:[#allocation2 + $0x18] sm:$0xff] %vm592, %v3759
        %p3764 = scmp.eq.s32.totalorder %s28, 3
        // Predicated region
        $region61: #{tpu_custom_call.1} parent=55 // pred_check
          %p3765 = pneg %p3764
        $region62: #{tpu_custom_call.1} parent=55 // pred_check_branch
          %3767 = sbr.rel (%p3765) target = $region64
        $region63: #{tpu_custom_call.1} parent=55 // pred_region
          %v3768 = vpack.c.bf16 %v3757, %v3756
          %v3769 = vpack.c.bf16 %v3759, %v3758
          %v3770 = vld [vmem:[%s520] sm:$0x1]
          %v3772 = vsel %vm952, %v3770, 0
          %3774 = vmatprep.subr.bf16.mxu0 0
          %3775 = vmatpush1.bf16.msra.mxu0 %v3768
          %3776 = vmatprep.subr.bf16.mxu0 0
          %3777 = vmatpush1.bf16.msra.mxu0 %v3769
          %3778 = vmatprep.subr.bf16.mxu0 0
          %3779 = vmatpush1.bf16.msra.mxu0 0
          %3780 = vmatprep.subr.bf16.mxu0 0
          %3781 = vmatpush1.bf16.msra.mxu0 0
          %3782 = vmatprep.subr.bf16.mxu0 0
          %3783 = vmatpush1.bf16.msra.mxu0 0
          %3784 = vmatprep.subr.bf16.mxu0 0
          %3785 = vmatpush1.bf16.msra.mxu0 0
          %3786 = vmatprep.subr.bf16.mxu0 0
          %3787 = vmatpush1.bf16.msra.mxu0 0
          %3788 = vmatprep.subr.bf16.mxu0 0
          %3789 = vmatpush1.bf16.msra.mxu0 0
          %3790 = vmatprep.subr.bf16.mxu0 0
          %3791 = vmatpush1.bf16.msra.mxu0 0
          %3792 = vmatprep.subr.bf16.mxu0 0
          %3793 = vmatpush1.bf16.msra.mxu0 0
          %3794 = vmatprep.subr.bf16.mxu0 0
          %3795 = vmatpush1.bf16.msra.mxu0 0
          %3796 = vmatprep.subr.bf16.mxu0 0
          %3797 = vmatpush1.bf16.msra.mxu0 0
          %3798 = vmatprep.subr.bf16.mxu0 0
          %3799 = vmatpush1.bf16.msra.mxu0 0
          %3800 = vmatprep.subr.bf16.mxu0 0
          %3801 = vmatpush1.bf16.msra.mxu0 0
          %3802 = vmatprep.subr.bf16.mxu0 0
          %3803 = vmatpush1.bf16.msra.mxu0 0
          %3804 = vmatprep.subr.bf16.mxu0 0
          %3805 = vmatpush1.bf16.msra.mxu0 0
          %3806 = vmatprep.mubr.bf16.mxu0 0
          %3807 = vmatmul.mubr.bf16.gmra.mrb[0].mxu0 %v3772
          %v3808 = vpop.f32.mrb[0].mxu0
          %v3809 = vadd.f32 0.0, %v3808
          %v3810 = vpop.f32.mrb[0].mxu0
          %v3811 = vpop.f32.mrb[0].mxu0
          %v3812 = vpop.f32.mrb[0].mxu0
          %3813 = vdwg.mxu0
          %v3814 = vld [vmem:[%s523] sm:$0x1]
          %v3816 = vsel %vm952, %v3814, 0
          %3818 = vmatprep.subr.bf16.mxu0 0
          %3819 = vmatpush1.bf16.msra.mxu0 %v3768
          %3820 = vmatprep.subr.bf16.mxu0 0
          %3821 = vmatpush1.bf16.msra.mxu0 %v3769
          %3822 = vmatprep.subr.bf16.mxu0 0
          %3823 = vmatpush1.bf16.msra.mxu0 0
          %3824 = vmatprep.subr.bf16.mxu0 0
          %3825 = vmatpush1.bf16.msra.mxu0 0
          %3826 = vmatprep.subr.bf16.mxu0 0
          %3827 = vmatpush1.bf16.msra.mxu0 0
          %3828 = vmatprep.subr.bf16.mxu0 0
          %3829 = vmatpush1.bf16.msra.mxu0 0
          %3830 = vmatprep.subr.bf16.mxu0 0
          %3831 = vmatpush1.bf16.msra.mxu0 0
          %3832 = vmatprep.subr.bf16.mxu0 0
          %3833 = vmatpush1.bf16.msra.mxu0 0
          %3834 = vmatprep.subr.bf16.mxu0 0
          %3835 = vmatpush1.bf16.msra.mxu0 0
          %3836 = vmatprep.subr.bf16.mxu0 0
          %3837 = vmatpush1.bf16.msra.mxu0 0
          %3838 = vmatprep.subr.bf16.mxu0 0
          %3839 = vmatpush1.bf16.msra.mxu0 0
          %3840 = vmatprep.subr.bf16.mxu0 0
          %3841 = vmatpush1.bf16.msra.mxu0 0
          %3842 = vmatprep.subr.bf16.mxu0 0
          %3843 = vmatpush1.bf16.msra.mxu0 0
          %3844 = vmatprep.subr.bf16.mxu0 0
          %3845 = vmatpush1.bf16.msra.mxu0 0
          %3846 = vmatprep.subr.bf16.mxu0 0
          %3847 = vmatpush1.bf16.msra.mxu0 0
          %3848 = vmatprep.subr.bf16.mxu0 0
          %3849 = vmatpush1.bf16.msra.mxu0 0
          %3850 = vmatprep.mubr.bf16.mxu0 0
          %3851 = vmatmul.mubr.bf16.gmra.mrb[0].mxu0 %v3816
          %v3852 = vpop.f32.mrb[0].mxu0
          %v3853 = vadd.f32 0.0, %v3852
          %v3854 = vpop.f32.mrb[0].mxu0
          %v3855 = vpop.f32.mrb[0].mxu0
          %v3856 = vpop.f32.mrb[0].mxu0
          %3857 = vdwg.mxu0
          %v3858 = vmul.f32 %v3809, %v3853
          %vm3859 = vcmask 516096
          %v3860 = vsel %vm3859, %v3858, 0.0
          %3861 = vadd.xlane.f32.xlu0 %v3860
          %v3862 = vpop.xlane.xlu0 %3861
          %3863 = vst [vmem:[%s471] sm:$0x1] %v3862
        $region64: #{tpu_custom_call.1} parent=55 // pred_fallthru
          _
        %s3864 = sand.u32 %s281, 1
        %s3865 = scalar_lea.sflag [#allocation4], %s3864
        %s3866 = sand.u32 %s281, 1
        %s3867 = scalar_lea.vmem [#allocation3], %s3866
        // Predicated region
        $region65: #{tpu_custom_call.1} parent=55 // pred_check
          %p3868 = pneg %p291
        $region66: #{tpu_custom_call.1} parent=55 // pred_check_branch
          %3870 = sbr.rel (%p3868) target = $region68
        $region67: #{tpu_custom_call.1} parent=55 // pred_region
          %s3872 = ssub.s32 16, 16
          %3873 = vsyncadd %s3865, %s3872
          %s3874 = smul.addr %s27, 16
          %s3875 = scalar_lea.hbm %s9, %s3874
          %s3877 = sshll.u32 %s3867, 4
          %s3878 = int_to_ptr.vmem [resolvable:$true] %s3877
          %3880 = dma.vmem_to_hbm [thread:$0]  %s3878, 16, %s3875, %s3865
        $region68: #{tpu_custom_call.1} parent=55 // pred_fallthru
          _
      $region56: #{tpu_custom_call.1} parent=5 // pred_fallthru
        _
      %p3881 = scmp.le.s32.totalorder 2, %s18
      // Predicated region
      $region69: #{tpu_custom_call.1} parent=5 // pred_check
        %p3882 = pneg %p3881
      $region70: #{tpu_custom_call.1} parent=5 // pred_check_branch
        %3884 = sbr.rel (%p3882) target = $region72
      $region71: #{tpu_custom_call.1} parent=5 // pred_region
        %s3885 = ssub.s32 %s18, 2
        // Predicated region
        $region73: #{tpu_custom_call.1} parent=71 // pred_check
          %p3886 = pneg %p297
        $region74: #{tpu_custom_call.1} parent=71 // pred_check_branch
          %3888 = sbr.rel (%p3886) target = $region76
        $region75: #{tpu_custom_call.1} parent=71 // pred_region
          %s3889 = sand.u32 %s282, 1
          %s3890 = scalar_lea.sflag [#allocation4], %s3889
          %s3891 = sand.u32 %s282, 1
          %s3892 = scalar_lea.vmem [#allocation3], %s3891
          %3893 = dma.done %s3890, 16
        $region76: #{tpu_custom_call.1} parent=71 // pred_fallthru
          _
      $region72: #{tpu_custom_call.1} parent=5 // pred_fallthru
        _
    $region6: #{tpu_custom_call.1} parent=1 // loop_footer
      %s22 = sadd.s32 1, %s18
    $region7: #{tpu_custom_call.1} parent=1 // loop_footer_branch
      %17 = sbr.rel target = $region3
    $region8: #{tpu_custom_call.1} parent=1 // loop_exit
      _
    %3894 = vsyncpa [#allocation4], 1
    %s3895 = scalar_lea.sflag [#allocation4], 1
    %3896 = vsyncpa %s3895, 1

</llo_original>
